<compile_context>
chip_gen: v7x
topology: tpu7x:2x2x1
jax: 0.10.0
libtpu: 0.0.40
codegen_flags: <defaults>
</compile_context>

<pallas_src>
import functools

import jax
import jax.numpy as jnp
from jax.experimental import pallas as pl
from jax.experimental.pallas import tpu as pltpu


def _round_up(x, m):
    return (x + m - 1) // m * m


def _vmem_capacity_bytes():
    try:
        return int(pltpu.get_tpu_info().vmem_capacity_bytes)
    except Exception:
        return 128 * 1024 * 1024


def make_gcn_config(k_tile_max=2048):
    """Generation-aware tile / VMEM budget (v7x has only 64 MiB VMEM per TC)."""
    vmem_cap = _vmem_capacity_bytes()
    if vmem_cap <= 64 * 1024 * 1024:           # v7x-class part
        row_tile, vmem_limit = 256, 40 * 1024 * 1024
    else:                                      # v5e / v6e (128 MiB VMEM)
        row_tile, vmem_limit = 512, 96 * 1024 * 1024
    return dict(row_tile=row_tile, k_tile_max=k_tile_max, vmem_limit=vmem_limit)


def _pad_shapes(rows, cols, cfg):
    # Rows padded to a multiple of 512: never fall back to 128-row tiles, and
    # with ROW_TILE=256 on v7x both TensorCores get at least one tile.
    rows_pad = _round_up(rows, 512)
    k_tile = min(cfg["k_tile_max"], _round_up(cols, 128))
    cols_pad = _round_up(cols, k_tile)
    return rows_pad, cols_pad, k_tile


def prepare_adjacency(A, AT, cfg):
    """One-time prep (hoisted out of the hot path): zero-pad the dense
    behaviour matrices to tile-aligned shapes and store them bf16.  In a real
    model this layout would be kept across calls instead of being rebuilt."""
    nbeh, U, I = A.shape
    u_rows, i_cols, _ = _pad_shapes(U, I, cfg)
    i_rows, u_cols, _ = _pad_shapes(I, U, cfg)
    A_p = jnp.pad(A, ((0, 0), (0, u_rows - U), (0, i_cols - I))).astype(jnp.bfloat16)
    AT_p = jnp.pad(AT, ((0, 0), (0, i_rows - I), (0, u_cols - U))).astype(jnp.bfloat16)
    return A_p, AT_p


# ---------------------------------------------------------------------------
# Fused kernel: propagate + project + sigmoid + behaviour mean, K-tiled.
#   grid = (row_tiles 'parallel', behaviors 'arbitrary', k_tiles 'arbitrary')
#   stacked[b, rows] = sigmoid(A[b, rows, :] @ proj)
#   mean[rows]       = sigmoid(mean_b(A[b, rows, :] @ proj))
# ybuf accumulates the per-behavior partial over k (f32); the mean accumulates
# directly into the resident mean output block (constant block index over b,k).
# ---------------------------------------------------------------------------
def _fused_kernel(a_ref, p_ref, stacked_ref, mean_ref, ybuf_ref, *, inv_nbeh):
    b = pl.program_id(1)
    k = pl.program_id(2)
    nb = pl.num_programs(1)
    nk = pl.num_programs(2)

    @pl.when(jnp.logical_and(b == 0, k == 0))
    def _():
        mean_ref[...] = jnp.zeros_like(mean_ref)

    @pl.when(k == 0)
    def _():
        ybuf_ref[...] = jnp.zeros_like(ybuf_ref)

    # (ROW_TILE, K_TILE) bf16 @ (K_TILE, O) bf16 -> f32 MXU accumulation.
    ybuf_ref[...] += jnp.dot(a_ref[0], p_ref[...],
                             preferred_element_type=jnp.float32)

    @pl.when(k == nk - 1)
    def _():
        y = ybuf_ref[...]
        stacked_ref[0] = jax.nn.sigmoid(y).astype(stacked_ref.dtype)
        mean_ref[...] += y          # resident output block as mean accumulator

    @pl.when(jnp.logical_and(b == nb - 1, k == nk - 1))
    def _():
        mean_ref[...] = jax.nn.sigmoid(mean_ref[...] * inv_nbeh)


def _propagate_project(adj, proj, cfg, stacked_dtype=jnp.bfloat16):
    nbeh, rows_pad, cols_pad = adj.shape
    o = proj.shape[1]
    row_tile = cfg["row_tile"]
    k_tile = min(cfg["k_tile_max"], cols_pad)
    n_row_tiles = rows_pad // row_tile
    n_k_tiles = cols_pad // k_tile

    kernel = functools.partial(_fused_kernel, inv_nbeh=1.0 / nbeh)
    return pl.pallas_call(
        kernel,
        out_shape=(jax.ShapeDtypeStruct((nbeh, rows_pad, o), stacked_dtype),
                   jax.ShapeDtypeStruct((rows_pad, o), jnp.float32)),
        grid_spec=pltpu.PrefetchScalarGridSpec(
            num_scalar_prefetch=0,
            grid=(n_row_tiles, nbeh, n_k_tiles),
            in_specs=[
                pl.BlockSpec((1, row_tile, k_tile), lambda r, b, k: (b, r, k)),
                pl.BlockSpec((k_tile, o), lambda r, b, k: (k, 0)),
            ],
            out_specs=(
                pl.BlockSpec((1, row_tile, o), lambda r, b, k: (b, r, 0)),
                pl.BlockSpec((row_tile, o), lambda r, b, k: (r, 0)),
            ),
            scratch_shapes=[pltpu.VMEM((row_tile, o), jnp.float32)],
        ),
        compiler_params=pltpu.CompilerParams(
            dimension_semantics=("parallel", "arbitrary", "arbitrary"),
            vmem_limit_bytes=cfg["vmem_limit"]),
    )(adj, proj)


# ---------------------------------------------------------------------------
# GCNLayer forward.  A_p / AT_p are the pre-padded bf16 behaviour matrices
# produced ONCE by prepare_adjacency (not rebuilt per call).
# ---------------------------------------------------------------------------
def gcn_layer_forward(user_embedding, item_embedding, A_p, AT_p, u_w, i_w,
                      *, userNum, itemNum, cfg):
    # Reassociation: (A @ E) @ W == A @ (E @ W); the behaviour mean commutes
    # with the linear map.  The (N, D) @ (D, O) projections are tiny -> plain
    # XLA matmul (no whole-array VMEM block), stored bf16 so the fused kernel
    # reads a half-width stationary operand.
    item_proj = (item_embedding @ u_w).astype(jnp.bfloat16)
    user_proj = (user_embedding @ i_w).astype(jnp.bfloat16)
    item_proj = jnp.pad(item_proj, ((0, A_p.shape[2] - itemNum), (0, 0)))
    user_proj = jnp.pad(user_proj, ((0, AT_p.shape[2] - userNum), (0, 0)))

    user_stacked_p, user_mean_p = _propagate_project(A_p, item_proj, cfg)
    item_stacked_p, item_mean_p = _propagate_project(AT_p, user_proj, cfg)

    # Only row un-padding remains (O is written at full width, unpadded).
    # TODO(synk): at production sizes, have consumers read the row-padded
    # buffers directly (rows >= userNum/itemNum hold sigmoid(0)=0.5) to avoid
    # this slice copy entirely.
    user_embedding_out = user_mean_p[:userNum]
    item_embedding_out = item_mean_p[:itemNum]
    user_embeddings = user_stacked_p[:, :userNum]
    item_embeddings = item_stacked_p[:, :itemNum]
    return user_embedding_out, item_embedding_out, user_embeddings, item_embeddings


def xavier_uniform(key, shape):
    fan_in, fan_out = shape
    bound = (6.0 / (fan_in + fan_out)) ** 0.5
    return jax.random.uniform(key, shape, jnp.float32, -bound, bound)


if __name__ == "__main__":
    # Small deterministic example shapes.
    userNum, itemNum = 16, 24
    in_dim, out_dim = 32, 32
    n_behaviors = 3

    key = jax.random.PRNGKey(0)
    k_uw, k_iw, k_ue, k_ie, k_a = jax.random.split(key, 5)

    # Parameters (xavier-uniform, as in the module's __init__).
    u_w = xavier_uniform(k_uw, (in_dim, out_dim))
    i_w = xavier_uniform(k_iw, (in_dim, out_dim))
    # TODO(synk): ii_w is declared but never initialized/used in forward; omitted.

    # Input embeddings.
    user_embedding = jax.random.normal(k_ue, (userNum, in_dim), jnp.float32)
    item_embedding = jax.random.normal(k_ie, (itemNum, in_dim), jnp.float32)

    # Dense stand-in for behavior_mats[i]['A'] / ['AT'] (sparse in PyTorch).
    ka_vals, ka_mask = jax.random.split(k_a)
    vals = jax.random.uniform(ka_vals, (n_behaviors, userNum, itemNum), jnp.float32)
    mask = jax.random.uniform(ka_mask, (n_behaviors, userNum, itemNum)) < 0.3
    A = vals * mask.astype(jnp.float32)
    AT = jnp.transpose(A, (0, 2, 1))

    cfg = make_gcn_config()
    # One-time adjacency prep (hoisted out of the per-call hot path).
    A_p, AT_p = prepare_adjacency(A, AT, cfg)
    A_p, AT_p = jax.block_until_ready((A_p, AT_p))

    fwd = jax.jit(functools.partial(
        gcn_layer_forward, userNum=userNum, itemNum=itemNum, cfg=cfg))
    out = fwd(user_embedding, item_embedding, A_p, AT_p, u_w, i_w)
    out = jax.block_until_ready(out)

    # Reference check in plain f32 JAX (original module semantics).
    ref_u_list = jnp.einsum("bui,id->bud", A, item_embedding)
    ref_i_list = jnp.einsum("biu,ud->bid", AT, user_embedding)
    ref_user = jax.nn.sigmoid(jnp.mean(ref_u_list, axis=0) @ u_w)
    ref_item = jax.nn.sigmoid(jnp.mean(ref_i_list, axis=0) @ i_w)
    ref_users = jax.nn.sigmoid(ref_u_list @ u_w)
    ref_items = jax.nn.sigmoid(ref_i_list @ i_w)

    import numpy as np
    # bf16 adjacency / projection / stacked outputs + matmul reassociation.
    np.testing.assert_allclose(np.asarray(out[0]), np.asarray(ref_user),
                               rtol=0, atol=2e-2)
    np.testing.assert_allclose(np.asarray(out[1]), np.asarray(ref_item),
                               rtol=0, atol=2e-2)
    np.testing.assert_allclose(np.asarray(out[2].astype(jnp.float32)),
                               np.asarray(ref_users), rtol=0, atol=2e-2)
    np.testing.assert_allclose(np.asarray(out[3].astype(jnp.float32)),
                               np.asarray(ref_items), rtol=0, atol=2e-2)

    print("KERNEL_OK")
</pallas_src>

<mosaic_0001>
module attributes {stable_mosaic.version = 11 : i64} {
  func.func @_fused_kernel(%arg0: i32, %arg1: i32, %arg2: i32, %arg3: memref<1x512x128xbf16, #tpu.memory_space<vmem>>, %arg4: memref<128x32xbf16, #tpu.memory_space<vmem>>, %arg5: memref<1x512x32xbf16, #tpu.memory_space<vmem>>, %arg6: memref<512x32xf32, #tpu.memory_space<vmem>>, %arg7: memref<512x32xf32, #tpu.memory_space<vmem>>) attributes {dimension_semantics = [#tpu.dimension_semantics<parallel>, #tpu.dimension_semantics<arbitrary>, #tpu.dimension_semantics<arbitrary>], iteration_bounds = array<i64: 1, 3, 1>, scalar_prefetch = 0 : i64, scratch_operands = 1 : i64, tpu.core_type = #tpu.core_type<tc>, window_params = [{transform_indices = @transform_0, window_bounds = array<i64: 1, 512, 128>}, {transform_indices = @transform_1, window_bounds = array<i64: 128, 32>}, {transform_indices = @transform_2, window_bounds = array<i64: 1, 512, 32>}, {transform_indices = @transform_3, window_bounds = array<i64: 512, 32>}]} {
    %c0_i32 = arith.constant 0 : i32
    %0 = arith.cmpi eq, %arg1, %c0_i32 : i32
    %c0_i32_0 = arith.constant 0 : i32
    %1 = arith.cmpi eq, %arg2, %c0_i32_0 : i32
    %2 = arith.andi %0, %1 : i1
    %3 = arith.extui %2 : i1 to i32
    %c0_i32_1 = arith.constant 0 : i32
    %4 = arith.cmpi ne, %3, %c0_i32_1 : i32
    scf.if %4 {
      %cst_16 = arith.constant 0.000000e+00 : f32
      %23 = vector.broadcast %cst_16 : f32 to vector<512x32xf32>
      %c0_17 = arith.constant 0 : index
      %c0_18 = arith.constant 0 : index
      %24 = vector.load %arg6[%c0_17, %c0_18] : memref<512x32xf32, #tpu.memory_space<vmem>>, vector<512x32xf32>
      tpu.vector_store %arg6[%c0_17, %c0_18], %23 {strides = array<i32>} : memref<512x32xf32, #tpu.memory_space<vmem>>, vector<512x32xf32>,
    } else {
    }
    %c0_i32_2 = arith.constant 0 : i32
    %5 = arith.cmpi eq, %arg2, %c0_i32_2 : i32
    %6 = arith.extui %5 : i1 to i32
    %c0_i32_3 = arith.constant 0 : i32
    %7 = arith.cmpi ne, %6, %c0_i32_3 : i32
    scf.if %7 {
      %cst_16 = arith.constant 0.000000e+00 : f32
      %23 = vector.broadcast %cst_16 : f32 to vector<512x32xf32>
      %c0_17 = arith.constant 0 : index
      %c0_18 = arith.constant 0 : index
      %24 = vector.load %arg7[%c0_17, %c0_18] : memref<512x32xf32, #tpu.memory_space<vmem>>, vector<512x32xf32>
      tpu.vector_store %arg7[%c0_17, %c0_18], %23 {strides = array<i32>} : memref<512x32xf32, #tpu.memory_space<vmem>>, vector<512x32xf32>,
    } else {
    }
    %c0 = arith.constant 0 : index
    %c0_4 = arith.constant 0 : index
    %8 = vector.load %arg7[%c0, %c0_4] : memref<512x32xf32, #tpu.memory_space<vmem>>, vector<512x32xf32>
    %c0_5 = arith.constant 0 : index
    %c0_6 = arith.constant 0 : index
    %c0_7 = arith.constant 0 : index
    %9 = vector.load %arg3[%c0_5, %c0_6, %c0_7] : memref<1x512x128xbf16, #tpu.memory_space<vmem>>, vector<1x512x128xbf16>
    %10 = vector.shape_cast %9 : vector<1x512x128xbf16> to vector<512x128xbf16>
    %c0_8 = arith.constant 0 : index
    %c0_9 = arith.constant 0 : index
    %11 = vector.load %arg4[%c0_8, %c0_9] : memref<128x32xbf16, #tpu.memory_space<vmem>>, vector<128x32xbf16>
    %cst = arith.constant dense<0.000000e+00> : vector<512x32xf32>
    %12 = tpu.matmul %10, %11, %cst {dimension_numbers = #tpu.dot_dimension_numbers<[1], [0], [0], [1], [0, 0, 1, 1], [], []>} : vector<512x128xbf16>, vector<128x32xbf16>, vector<512x32xf32> -> vector<512x32xf32>
    %13 = arith.addf %8, %12 : vector<512x32xf32>
    %c0_10 = arith.constant 0 : index
    %c0_11 = arith.constant 0 : index
    %14 = vector.load %arg7[%c0_10, %c0_11] : memref<512x32xf32, #tpu.memory_space<vmem>>, vector<512x32xf32>
    tpu.vector_store %arg7[%c0_10, %c0_11], %13 {strides = array<i32>} : memref<512x32xf32, #tpu.memory_space<vmem>>, vector<512x32xf32>,
    %c0_i32_12 = arith.constant 0 : i32
    %15 = arith.cmpi eq, %arg2, %c0_i32_12 : i32
    %16 = arith.extui %15 : i1 to i32
    %c0_i32_13 = arith.constant 0 : i32
    %17 = arith.cmpi ne, %16, %c0_i32_13 : i32
    scf.if %17 {
      %c0_16 = arith.constant 0 : index
      %c0_17 = arith.constant 0 : index
      %23 = vector.load %arg7[%c0_16, %c0_17] : memref<512x32xf32, #tpu.memory_space<vmem>>, vector<512x32xf32>
      %24 = arith.negf %23 : vector<512x32xf32>
      %25 = math.exp %24 : vector<512x32xf32>
      %cst_18 = arith.constant 1.000000e+00 : f32
      %26 = vector.broadcast %cst_18 : f32 to vector<512x32xf32>
      %27 = arith.addf %26, %25 : vector<512x32xf32>
      %28 = arith.divf %26, %27 : vector<512x32xf32>
      %29 = arith.truncf %28 : vector<512x32xf32> to vector<512x32xbf16>
      %c0_19 = arith.constant 0 : index
      %c0_20 = arith.constant 0 : index
      %c0_21 = arith.constant 0 : index
      %30 = vector.load %arg5[%c0_19, %c0_20, %c0_21] : memref<1x512x32xbf16, #tpu.memory_space<vmem>>, vector<1x512x32xbf16>
      %31 = vector.shape_cast %30 : vector<1x512x32xbf16> to vector<512x32xbf16>
      %32 = vector.shape_cast %29 : vector<512x32xbf16> to vector<1x512x32xbf16>
      tpu.vector_store %arg5[%c0_19, %c0_20, %c0_21], %32 {strides = array<i32>} : memref<1x512x32xbf16, #tpu.memory_space<vmem>>, vector<1x512x32xbf16>,
      %c0_22 = arith.constant 0 : index
      %c0_23 = arith.constant 0 : index
      %33 = vector.load %arg6[%c0_22, %c0_23] : memref<512x32xf32, #tpu.memory_space<vmem>>, vector<512x32xf32>
      %34 = arith.addf %33, %23 : vector<512x32xf32>
      %c0_24 = arith.constant 0 : index
      %c0_25 = arith.constant 0 : index
      %35 = vector.load %arg6[%c0_24, %c0_25] : memref<512x32xf32, #tpu.memory_space<vmem>>, vector<512x32xf32>
      tpu.vector_store %arg6[%c0_24, %c0_25], %34 {strides = array<i32>} : memref<512x32xf32, #tpu.memory_space<vmem>>, vector<512x32xf32>,
    } else {
    }
    %c2_i32 = arith.constant 2 : i32
    %18 = arith.cmpi eq, %arg1, %c2_i32 : i32
    %c0_i32_14 = arith.constant 0 : i32
    %19 = arith.cmpi eq, %arg2, %c0_i32_14 : i32
    %20 = arith.andi %18, %19 : i1
    %21 = arith.extui %20 : i1 to i32
    %c0_i32_15 = arith.constant 0 : i32
    %22 = arith.cmpi ne, %21, %c0_i32_15 : i32
    scf.if %22 {
      %c0_16 = arith.constant 0 : index
      %c0_17 = arith.constant 0 : index
      %23 = vector.load %arg6[%c0_16, %c0_17] : memref<512x32xf32, #tpu.memory_space<vmem>>, vector<512x32xf32>
      %cst_18 = arith.constant 0.333333343 : f32
      %24 = vector.broadcast %cst_18 : f32 to vector<512x32xf32>
      %25 = arith.mulf %23, %24 : vector<512x32xf32>
      %26 = arith.negf %25 : vector<512x32xf32>
      %27 = math.exp %26 : vector<512x32xf32>
      %cst_19 = arith.constant 1.000000e+00 : f32
      %28 = vector.broadcast %cst_19 : f32 to vector<512x32xf32>
      %29 = arith.addf %28, %27 : vector<512x32xf32>
      %30 = arith.divf %28, %29 : vector<512x32xf32>
      %c0_20 = arith.constant 0 : index
      %c0_21 = arith.constant 0 : index
      %31 = vector.load %arg6[%c0_20, %c0_21] : memref<512x32xf32, #tpu.memory_space<vmem>>, vector<512x32xf32>
      tpu.vector_store %arg6[%c0_20, %c0_21], %30 {strides = array<i32>} : memref<512x32xf32, #tpu.memory_space<vmem>>, vector<512x32xf32>,
    } else {
    }
    return
  }
  func.func @transform_0(%arg0: i32, %arg1: i32, %arg2: i32) -> (i32, i32, i32) {
    %c0_i32 = arith.constant 0 : i32
    return %arg1, %arg0, %arg2 : i32, i32, i32
  }
  func.func @transform_1(%arg0: i32, %arg1: i32, %arg2: i32) -> (i32, i32) {
    %c0_i32 = arith.constant 0 : i32
    %c0_i32_0 = arith.constant 0 : i32
    return %arg2, %c0_i32 : i32, i32
  }
  func.func @transform_2(%arg0: i32, %arg1: i32, %arg2: i32) -> (i32, i32, i32) {
    %c0_i32 = arith.constant 0 : i32
    %c0_i32_0 = arith.constant 0 : i32
    return %arg1, %arg0, %c0_i32 : i32, i32, i32
  }
  func.func @transform_3(%arg0: i32, %arg1: i32, %arg2: i32) -> (i32, i32) {
    %c0_i32 = arith.constant 0 : i32
    %c0_i32_0 = arith.constant 0 : i32
    return %arg0, %c0_i32 : i32, i32
  }
}

</mosaic_0001>

<llo_original>
// kernel: gcn_layer_forward.3
$region0: #{gcn_layer_forward.3}
  #allocation0 [shape = 'u32[]', space=smem, size = 0x4, offset = 0x4, fixed_abs, tag = 'smem constant byte address 0x4 - core index']
  #allocation1 [shape = 'u32[144,128]{1,0:T(1,128)}', space=vmem, size = 0x12000, scoped, tag = 'internal scratch']
  #allocation2 [shape = 'f32[512,32]{1,0:T(8,128)}', space=vmem, size = 0x40000, scoped, tag = 'scratch operand']
  %s0 = inlined_call_operand.hbm [shape: bf16[3,512,128], index: 0, kind: input, shape index: {}]
  %s1 = inlined_call_operand.hbm [shape: bf16[128,32], index: 1, kind: input, shape index: {}]
  %s2 = inlined_call_operand.hbm [shape: bf16[3,512,32], index: 2, kind: output, shape index: {0}]
  %s3 = inlined_call_operand.hbm [shape: f32[512,32], index: 3, kind: output, shape index: {1}]
  %4 = xla_tuple %s2, %s3
  %s5 = sld [smem:[#allocation0]]
  $region73: #{gcn_layer_forward.3} parent=0
    _
  %s7 = ssub.s32 1, %s5
  %s8 = scalar_select 0, %s7, %s5
  $region1: #{gcn_layer_forward.3} parent=0
    #allocation3 [shape = 'u8[262144]{0}', space=vmem, size = 0x40000, scoped, tag = 'input window, operand 0']
    #allocation4 [shape = 's32[2]{0}', space=sflag, size = 0x8, scoped, tag = 'scoped memory for gcn_layer_forward.3']
    #allocation5 [shape = 's32[2]{0}', space=sflag, size = 0x8, scoped, tag = 'scoped memory for gcn_layer_forward.3']
    #allocation6 [shape = 'u8[32768]{0}', space=vmem, size = 0x8000, scoped, tag = 'input window, operand 1, single buffered']
    #allocation7 [shape = 's32[1]{0}', space=sflag, size = 0x4, scoped, tag = 'scoped memory for gcn_layer_forward.3']
    #allocation8 [shape = 'u8[262144]{0}', space=vmem, size = 0x40000, scoped, tag = 'output window, operand 0']
    #allocation9 [shape = 'u8[262144]{0}', space=vmem, size = 0x40000, scoped, tag = 'output window, operand 1, single buffered']
    #allocation10 [shape = 's32[1]{0}', space=sflag, size = 0x4, scoped, tag = 'scoped memory for gcn_layer_forward.3']
    %9 = vsyncpa [#allocation4], 0
    %s10 = scalar_lea.sflag [#allocation4], 1
    %11 = vsyncpa %s10, 0
    %12 = vsyncpa [#allocation7], 0
    %13 = vsyncpa [#allocation5], 0
    %s14 = scalar_lea.sflag [#allocation5], 1
    %15 = vsyncpa %s14, 0
    %16 = vsyncpa [#allocation10], 0
    loop: start=0, step=1, limit=5
    $region2: #{gcn_layer_forward.3} parent=1 // loop_pre_header
      _
    $region3: #{gcn_layer_forward.3} parent=1 // loop_header
      %s18 = sphi 0, %s22
      %p19 = scmp.ge.s32.totalorder %s18, 5
      %s25 = sphi 0, %s44
      %s26 = sphi 0, %s40
      %s27 = sphi 0, %s36
      %s28 = sphi 0, %s25
      %s29 = sphi 0, %s26
      %s30 = sphi 0, %s27
      %s31 = sphi 0, %s28
      %s32 = sphi 0, %s29
      %s33 = sphi 0, %s30
      %s51 = sphi 0, %s53
      %s54 = sphi 0, %s51
      %s55 = sphi 0, %s54
      %s71 = sphi 0, %s55
      %s77 = sphi 0, %s79
      %s80 = sphi 0, %s77
      %s81 = sphi 0, %s80
      %s97 = sphi 0, %s81
      %s105 = sphi 0, %s107
      %s108 = sphi 0, %s105
      %s109 = sphi 0, %s108
      %s125 = sphi 0, %s109
      %s131 = sphi 0, %s133
      %s134 = sphi 0, %s131
      %s135 = sphi 0, %s134
      %s151 = sphi 0, %s135
    $region4: #{gcn_layer_forward.3} parent=1 // loop_header_branch
      %21 = sbr.rel (%p19) target = $region8
    $region5: #{gcn_layer_forward.3} parent=1 // loop_body
      %s23 = ssub.s32 %s18, 1
      %s24 = ssub.s32 %s18, 2
      %s34 = sadd.s32 1, %s27
      %p35 = scmp.ge.s32.totalorder %s34, 1
      %s36 = scalar_select %p35, 0, %s34
      %s37 = sadd.s32 1, %s26
      %s38 = scalar_select %p35, %s37, %s26
      %p39 = scmp.ge.s32.totalorder %s38, 3
      %s40 = scalar_select %p39, 0, %s38
      %s41 = sadd.s32 1, %s25
      %s42 = scalar_select %p39, %s41, %s25
      %p43 = scmp.ge.s32.totalorder %s42, 1
      %s44 = scalar_select %p43, 0, %s42
      %s45 = ssub.s32 %s26, %s40
      %s46 = ssub.s32 %s25, %s44
      %s47 = sor.u32 %s45, %s46
      %s48 = ssub.s32 %s27, %s36
      %s49 = sor.u32 %s47, %s48
      %p50 = scmp.eq.s32.totalorder %s49, 0
      %s52 = sadd.s32 %s51, 1
      %s53 = scalar_select %p50, %s51, %s52
      %p56 = pneg %p50
      %p57 = scmp.eq.s32.totalorder %s18, 2
      %p58 = por %p56, %p57
      %p59 = scmp.ne.s32.totalorder %s51, %s54
      %p60 = scmp.eq.s32.totalorder %s18, 0
      %p61 = por %p59, %p60
      %p62 = scmp.ne.s32.totalorder %s51, %s54
      %p63 = scmp.eq.s32.totalorder %s23, 2
      %p64 = por %p62, %p63
      %p65 = scmp.ne.s32.totalorder %s54, %s55
      %p66 = scmp.eq.s32.totalorder %s23, 0
      %p67 = por %p65, %p66
      %p68 = scmp.ne.s32.totalorder %s54, %s55
      %p69 = scmp.eq.s32.totalorder %s24, 2
      %p70 = por %p68, %p69
      %p72 = scmp.ne.s32.totalorder %s55, %s71
      %p73 = scmp.eq.s32.totalorder %s24, 0
      %p74 = por %p72, %p73
      %s75 = ssub.s32 %s27, %s36
      %p76 = scmp.eq.s32.totalorder %s75, 0
      %s78 = sadd.s32 %s77, 1
      %s79 = scalar_select %p76, %s77, %s78
      %p82 = pneg %p76
      %p83 = scmp.eq.s32.totalorder %s18, 2
      %p84 = por %p82, %p83
      %p85 = scmp.ne.s32.totalorder %s77, %s80
      %p86 = scmp.eq.s32.totalorder %s18, 0
      %p87 = por %p85, %p86
      %p88 = scmp.ne.s32.totalorder %s77, %s80
      %p89 = scmp.eq.s32.totalorder %s23, 2
      %p90 = por %p88, %p89
      %p91 = scmp.ne.s32.totalorder %s80, %s81
      %p92 = scmp.eq.s32.totalorder %s23, 0
      %p93 = por %p91, %p92
      %p94 = scmp.ne.s32.totalorder %s80, %s81
      %p95 = scmp.eq.s32.totalorder %s24, 2
      %p96 = por %p94, %p95
      %p98 = scmp.ne.s32.totalorder %s81, %s97
      %p99 = scmp.eq.s32.totalorder %s24, 0
      %p100 = por %p98, %p99
      %s101 = ssub.s32 %s26, %s40
      %s102 = ssub.s32 %s25, %s44
      %s103 = sor.u32 %s101, %s102
      %p104 = scmp.eq.s32.totalorder %s103, 0
      %s106 = sadd.s32 %s105, 1
      %s107 = scalar_select %p104, %s105, %s106
      %p110 = pneg %p104
      %p111 = scmp.eq.s32.totalorder %s18, 2
      %p112 = por %p110, %p111
      %p113 = scmp.ne.s32.totalorder %s105, %s108
      %p114 = scmp.eq.s32.totalorder %s18, 0
      %p115 = por %p113, %p114
      %p116 = scmp.ne.s32.totalorder %s105, %s108
      %p117 = scmp.eq.s32.totalorder %s23, 2
      %p118 = por %p116, %p117
      %p119 = scmp.ne.s32.totalorder %s108, %s109
      %p120 = scmp.eq.s32.totalorder %s23, 0
      %p121 = por %p119, %p120
      %p122 = scmp.ne.s32.totalorder %s108, %s109
      %p123 = scmp.eq.s32.totalorder %s24, 2
      %p124 = por %p122, %p123
      %p126 = scmp.ne.s32.totalorder %s109, %s125
      %p127 = scmp.eq.s32.totalorder %s24, 0
      %p128 = por %p126, %p127
      %s129 = ssub.s32 %s25, %s44
      %p130 = scmp.eq.s32.totalorder %s129, 0
      %s132 = sadd.s32 %s131, 1
      %s133 = scalar_select %p130, %s131, %s132
      %p136 = pneg %p130
      %p137 = scmp.eq.s32.totalorder %s18, 2
      %p138 = por %p136, %p137
      %p139 = scmp.ne.s32.totalorder %s131, %s134
      %p140 = scmp.eq.s32.totalorder %s18, 0
      %p141 = por %p139, %p140
      %p142 = scmp.ne.s32.totalorder %s131, %s134
      %p143 = scmp.eq.s32.totalorder %s23, 2
      %p144 = por %p142, %p143
      %p145 = scmp.ne.s32.totalorder %s134, %s135
      %p146 = scmp.eq.s32.totalorder %s23, 0
      %p147 = por %p145, %p146
      %p148 = scmp.ne.s32.totalorder %s134, %s135
      %p149 = scmp.eq.s32.totalorder %s24, 2
      %p150 = por %p148, %p149
      %p152 = scmp.ne.s32.totalorder %s135, %s151
      %p153 = scmp.eq.s32.totalorder %s24, 0
      %p154 = por %p152, %p153
      %p155 = scmp.le.s32.totalorder 1, %s18
      %p156 = scmp.lt.s32.totalorder %s18, 4
      %p157 = pnand %p155, %p156
      %p158 = pneg %p157
      // Predicated region
      $region9: #{gcn_layer_forward.3} parent=5 // pred_check
        _
      $region10: #{gcn_layer_forward.3} parent=5 // pred_check_branch
        %160 = sbr.rel (%p157) target = $region12
      $region11: #{gcn_layer_forward.3} parent=5 // pred_region
        %s161 = ssub.s32 %s18, 1
        // Predicated region
        $region13: #{gcn_layer_forward.3} parent=11 // pred_check
          %p162 = pneg %p93
        $region14: #{gcn_layer_forward.3} parent=11 // pred_check_branch
          %164 = sbr.rel (%p162) target = $region16
        $region15: #{gcn_layer_forward.3} parent=11 // pred_region
          %s165 = smul.u32 16, %s30
          %s167 = ssub.s32 1024, 1024
          %168 = vsyncadd [#allocation7], %s167
          %s169 = smul.addr %s165, 64
          %s170 = scalar_lea.hbm %s1, %s169
          %s171 = sshll.u32 [#allocation6], 4
          %s172 = int_to_ptr.vmem [resolvable:$true] %s171
          %177 = dma.hbm_to_vmem [thread:$0]  %s170, 1024, %s172, [#allocation7], 64, 64, 4
        $region16: #{gcn_layer_forward.3} parent=11 // pred_fallthru
          _
      $region12: #{gcn_layer_forward.3} parent=5 // pred_fallthru
        _
      %p178 = scmp.lt.s32.totalorder %s18, 3
      // Predicated region
      $region17: #{gcn_layer_forward.3} parent=5 // pred_check
        %p179 = pneg %p178
      $region18: #{gcn_layer_forward.3} parent=5 // pred_check_branch
        %181 = sbr.rel (%p179) target = $region20
      $region19: #{gcn_layer_forward.3} parent=5 // pred_region
        // Predicated region
        $region21: #{gcn_layer_forward.3} parent=19 // pred_check
          %p182 = pneg %p61
        $region22: #{gcn_layer_forward.3} parent=19 // pred_check_branch
          %184 = sbr.rel (%p182) target = $region24
        $region23: #{gcn_layer_forward.3} parent=19 // pred_region
          %s185 = sand.u32 %s51, 1
          %s186 = scalar_lea.sflag [#allocation4], %s185
          %s187 = sand.u32 %s51, 1
          %s188 = smul.addr %s187, 256
          %s189 = scalar_lea.vmem [#allocation3], %s188
          %s190 = smul.u32 64, %s25
          %s192 = ssub.s32 4096, 4096
          %193 = vsyncadd %s186, %s192
          %s194 = sadd.s32 %s27, %s190
          %s195 = smul.addr %s26, 64
          %s196 = sadd.s32 %s194, %s195
          %s197 = smul.addr %s196, 64
          %s198 = scalar_lea.hbm %s0, %s197
          %s199 = sshll.u32 %s189, 4
          %s200 = int_to_ptr.vmem [resolvable:$true] %s199
          %205 = dma.hbm_to_vmem [thread:$0]  %s198, 4096, %s200, %s186, 64, 64, 4
        $region24: #{gcn_layer_forward.3} parent=19 // pred_fallthru
          _
      $region20: #{gcn_layer_forward.3} parent=5 // pred_fallthru
        _
      %p206 = scmp.le.s32.totalorder 1, %s18
      %p207 = scmp.lt.s32.totalorder %s18, 4
      %p208 = pnand %p206, %p207
      %p209 = pneg %p208
      // Predicated region
      $region25: #{gcn_layer_forward.3} parent=5 // pred_check
        _
      $region26: #{gcn_layer_forward.3} parent=5 // pred_check_branch
        %211 = sbr.rel (%p208) target = $region28
      $region27: #{gcn_layer_forward.3} parent=5 // pred_region
        %s212 = ssub.s32 %s18, 1
        %s213 = sand.u32 %s54, 1
        %s214 = scalar_lea.sflag [#allocation4], %s213
        %s215 = sand.u32 %s54, 1
        %s216 = smul.addr %s215, 256
        %s217 = scalar_lea.vmem [#allocation3], %s216
        // Predicated region
        $region29: #{gcn_layer_forward.3} parent=27 // pred_check
          %p218 = pneg %p67
        $region30: #{gcn_layer_forward.3} parent=27 // pred_check_branch
          %220 = sbr.rel (%p218) target = $region32
        $region31: #{gcn_layer_forward.3} parent=27 // pred_region
          %221 = dma.done %s214, 4096
        $region32: #{gcn_layer_forward.3} parent=27 // pred_fallthru
          _
        // Predicated region
        $region33: #{gcn_layer_forward.3} parent=27 // pred_check
          %p222 = pneg %p93
        $region34: #{gcn_layer_forward.3} parent=27 // pred_check_branch
          %224 = sbr.rel (%p222) target = $region36
        $region35: #{gcn_layer_forward.3} parent=27 // pred_region
          %225 = dma.done [#allocation7], 1024
        $region36: #{gcn_layer_forward.3} parent=27 // pred_fallthru
          _
        %s226 = sand.u32 %s54, 1
        %s227 = scalar_lea.sflag [#allocation4], %s226
        %s228 = sand.u32 %s54, 1
        %s229 = smul.addr %s228, 256
        %s230 = scalar_lea.vmem [#allocation3], %s229
        %p231 = pneg %p67
        %p232 = pneg %p64
        %p233 = pneg %p93
        %p234 = pneg %p90
        %p235 = pneg %p121
        %p236 = pneg %p118
        %s237 = sand.u32 %s108, 1
        %s238 = scalar_lea.sflag [#allocation5], %s237
        %s239 = sand.u32 %s108, 1
        %s240 = smul.addr %s239, 256
        %s241 = scalar_lea.vmem [#allocation8], %s240
        %p242 = pneg %p147
        %p243 = pneg %p144
        %s244 = smul.u32 64, %s28
        %s245 = smul.u32 16, %s30
        %s246 = smul.u32 64, %s28
        %s247 = smul.u32 64, %s28
        %p249 = scmp.eq.s32.totalorder %s29, 0
        %p250 = scmp.eq.s32.totalorder %s30, 0
        %p251 = pnand %p249, %p250
        %p252 = pneg %p251
        // Predicated region
        $region37: #{gcn_layer_forward.3} parent=27 // pred_check
          _
        $region38: #{gcn_layer_forward.3} parent=27 // pred_check_branch
          %254 = sbr.rel (%p251) target = $region40
        $region39: #{gcn_layer_forward.3} parent=27 // pred_region
          %vm255 = vcmask 261120
          %256 = vst.msk [vmem:[#allocation9] sm:$0xff] %vm255, 0.0
          %257 = vst.msk [vmem:[#allocation9 + $0x8] sm:$0xff] %vm255, 0.0
          %258 = vst.msk [vmem:[#allocation9 + $0x10] sm:$0xff] %vm255, 0.0
          %259 = vst.msk [vmem:[#allocation9 + $0x18] sm:$0xff] %vm255, 0.0
          %260 = vst.msk [vmem:[#allocation9 + $0x20] sm:$0xff] %vm255, 0.0
          %261 = vst.msk [vmem:[#allocation9 + $0x28] sm:$0xff] %vm255, 0.0
          %262 = vst.msk [vmem:[#allocation9 + $0x30] sm:$0xff] %vm255, 0.0
          %263 = vst.msk [vmem:[#allocation9 + $0x38] sm:$0xff] %vm255, 0.0
          %264 = vst.msk [vmem:[#allocation9 + $0x40] sm:$0xff] %vm255, 0.0
          %265 = vst.msk [vmem:[#allocation9 + $0x48] sm:$0xff] %vm255, 0.0
          %266 = vst.msk [vmem:[#allocation9 + $0x50] sm:$0xff] %vm255, 0.0
          %267 = vst.msk [vmem:[#allocation9 + $0x58] sm:$0xff] %vm255, 0.0
          %268 = vst.msk [vmem:[#allocation9 + $0x60] sm:$0xff] %vm255, 0.0
          %269 = vst.msk [vmem:[#allocation9 + $0x68] sm:$0xff] %vm255, 0.0
          %270 = vst.msk [vmem:[#allocation9 + $0x70] sm:$0xff] %vm255, 0.0
          %271 = vst.msk [vmem:[#allocation9 + $0x78] sm:$0xff] %vm255, 0.0
          %272 = vst.msk [vmem:[#allocation9 + $0x80] sm:$0xff] %vm255, 0.0
          %273 = vst.msk [vmem:[#allocation9 + $0x88] sm:$0xff] %vm255, 0.0
          %274 = vst.msk [vmem:[#allocation9 + $0x90] sm:$0xff] %vm255, 0.0
          %275 = vst.msk [vmem:[#allocation9 + $0x98] sm:$0xff] %vm255, 0.0
          %276 = vst.msk [vmem:[#allocation9 + $0xa0] sm:$0xff] %vm255, 0.0
          %277 = vst.msk [vmem:[#allocation9 + $0xa8] sm:$0xff] %vm255, 0.0
          %278 = vst.msk [vmem:[#allocation9 + $0xb0] sm:$0xff] %vm255, 0.0
          %279 = vst.msk [vmem:[#allocation9 + $0xb8] sm:$0xff] %vm255, 0.0
          %280 = vst.msk [vmem:[#allocation9 + $0xc0] sm:$0xff] %vm255, 0.0
          %281 = vst.msk [vmem:[#allocation9 + $0xc8] sm:$0xff] %vm255, 0.0
          %282 = vst.msk [vmem:[#allocation9 + $0xd0] sm:$0xff] %vm255, 0.0
          %283 = vst.msk [vmem:[#allocation9 + $0xd8] sm:$0xff] %vm255, 0.0
          %284 = vst.msk [vmem:[#allocation9 + $0xe0] sm:$0xff] %vm255, 0.0
          %285 = vst.msk [vmem:[#allocation9 + $0xe8] sm:$0xff] %vm255, 0.0
          %286 = vst.msk [vmem:[#allocation9 + $0xf0] sm:$0xff] %vm255, 0.0
          %287 = vst.msk [vmem:[#allocation9 + $0xf8] sm:$0xff] %vm255, 0.0
          %288 = vst.msk [vmem:[#allocation9 + $0x100] sm:$0xff] %vm255, 0.0
          %289 = vst.msk [vmem:[#allocation9 + $0x108] sm:$0xff] %vm255, 0.0
          %290 = vst.msk [vmem:[#allocation9 + $0x110] sm:$0xff] %vm255, 0.0
          %291 = vst.msk [vmem:[#allocation9 + $0x118] sm:$0xff] %vm255, 0.0
          %292 = vst.msk [vmem:[#allocation9 + $0x120] sm:$0xff] %vm255, 0.0
          %293 = vst.msk [vmem:[#allocation9 + $0x128] sm:$0xff] %vm255, 0.0
          %294 = vst.msk [vmem:[#allocation9 + $0x130] sm:$0xff] %vm255, 0.0
          %295 = vst.msk [vmem:[#allocation9 + $0x138] sm:$0xff] %vm255, 0.0
          %296 = vst.msk [vmem:[#allocation9 + $0x140] sm:$0xff] %vm255, 0.0
          %297 = vst.msk [vmem:[#allocation9 + $0x148] sm:$0xff] %vm255, 0.0
          %298 = vst.msk [vmem:[#allocation9 + $0x150] sm:$0xff] %vm255, 0.0
          %299 = vst.msk [vmem:[#allocation9 + $0x158] sm:$0xff] %vm255, 0.0
          %300 = vst.msk [vmem:[#allocation9 + $0x160] sm:$0xff] %vm255, 0.0
          %301 = vst.msk [vmem:[#allocation9 + $0x168] sm:$0xff] %vm255, 0.0
          %302 = vst.msk [vmem:[#allocation9 + $0x170] sm:$0xff] %vm255, 0.0
          %303 = vst.msk [vmem:[#allocation9 + $0x178] sm:$0xff] %vm255, 0.0
          %304 = vst.msk [vmem:[#allocation9 + $0x180] sm:$0xff] %vm255, 0.0
          %305 = vst.msk [vmem:[#allocation9 + $0x188] sm:$0xff] %vm255, 0.0
          %306 = vst.msk [vmem:[#allocation9 + $0x190] sm:$0xff] %vm255, 0.0
          %307 = vst.msk [vmem:[#allocation9 + $0x198] sm:$0xff] %vm255, 0.0
          %308 = vst.msk [vmem:[#allocation9 + $0x1a0] sm:$0xff] %vm255, 0.0
          %309 = vst.msk [vmem:[#allocation9 + $0x1a8] sm:$0xff] %vm255, 0.0
          %310 = vst.msk [vmem:[#allocation9 + $0x1b0] sm:$0xff] %vm255, 0.0
          %311 = vst.msk [vmem:[#allocation9 + $0x1b8] sm:$0xff] %vm255, 0.0
          %312 = vst.msk [vmem:[#allocation9 + $0x1c0] sm:$0xff] %vm255, 0.0
          %313 = vst.msk [vmem:[#allocation9 + $0x1c8] sm:$0xff] %vm255, 0.0
          %314 = vst.msk [vmem:[#allocation9 + $0x1d0] sm:$0xff] %vm255, 0.0
          %315 = vst.msk [vmem:[#allocation9 + $0x1d8] sm:$0xff] %vm255, 0.0
          %316 = vst.msk [vmem:[#allocation9 + $0x1e0] sm:$0xff] %vm255, 0.0
          %317 = vst.msk [vmem:[#allocation9 + $0x1e8] sm:$0xff] %vm255, 0.0
          %318 = vst.msk [vmem:[#allocation9 + $0x1f0] sm:$0xff] %vm255, 0.0
          %319 = vst.msk [vmem:[#allocation9 + $0x1f8] sm:$0xff] %vm255, 0.0
        $region40: #{gcn_layer_forward.3} parent=27 // pred_fallthru
          _
        // Predicated region
        $region41: #{gcn_layer_forward.3} parent=27 // pred_check
          %p320 = pneg %p250
        $region42: #{gcn_layer_forward.3} parent=27 // pred_check_branch
          %322 = sbr.rel (%p320) target = $region44
        $region43: #{gcn_layer_forward.3} parent=27 // pred_region
          %vm323 = vcmask 261120
          %324 = vst.msk [vmem:[#allocation2] sm:$0xff] %vm323, 0.0
          %325 = vst.msk [vmem:[#allocation2 + $0x8] sm:$0xff] %vm323, 0.0
          %326 = vst.msk [vmem:[#allocation2 + $0x10] sm:$0xff] %vm323, 0.0
          %327 = vst.msk [vmem:[#allocation2 + $0x18] sm:$0xff] %vm323, 0.0
          %328 = vst.msk [vmem:[#allocation2 + $0x20] sm:$0xff] %vm323, 0.0
          %329 = vst.msk [vmem:[#allocation2 + $0x28] sm:$0xff] %vm323, 0.0
          %330 = vst.msk [vmem:[#allocation2 + $0x30] sm:$0xff] %vm323, 0.0
          %331 = vst.msk [vmem:[#allocation2 + $0x38] sm:$0xff] %vm323, 0.0
          %332 = vst.msk [vmem:[#allocation2 + $0x40] sm:$0xff] %vm323, 0.0
          %333 = vst.msk [vmem:[#allocation2 + $0x48] sm:$0xff] %vm323, 0.0
          %334 = vst.msk [vmem:[#allocation2 + $0x50] sm:$0xff] %vm323, 0.0
          %335 = vst.msk [vmem:[#allocation2 + $0x58] sm:$0xff] %vm323, 0.0
          %336 = vst.msk [vmem:[#allocation2 + $0x60] sm:$0xff] %vm323, 0.0
          %337 = vst.msk [vmem:[#allocation2 + $0x68] sm:$0xff] %vm323, 0.0
          %338 = vst.msk [vmem:[#allocation2 + $0x70] sm:$0xff] %vm323, 0.0
          %339 = vst.msk [vmem:[#allocation2 + $0x78] sm:$0xff] %vm323, 0.0
          %340 = vst.msk [vmem:[#allocation2 + $0x80] sm:$0xff] %vm323, 0.0
          %341 = vst.msk [vmem:[#allocation2 + $0x88] sm:$0xff] %vm323, 0.0
          %342 = vst.msk [vmem:[#allocation2 + $0x90] sm:$0xff] %vm323, 0.0
          %343 = vst.msk [vmem:[#allocation2 + $0x98] sm:$0xff] %vm323, 0.0
          %344 = vst.msk [vmem:[#allocation2 + $0xa0] sm:$0xff] %vm323, 0.0
          %345 = vst.msk [vmem:[#allocation2 + $0xa8] sm:$0xff] %vm323, 0.0
          %346 = vst.msk [vmem:[#allocation2 + $0xb0] sm:$0xff] %vm323, 0.0
          %347 = vst.msk [vmem:[#allocation2 + $0xb8] sm:$0xff] %vm323, 0.0
          %348 = vst.msk [vmem:[#allocation2 + $0xc0] sm:$0xff] %vm323, 0.0
          %349 = vst.msk [vmem:[#allocation2 + $0xc8] sm:$0xff] %vm323, 0.0
          %350 = vst.msk [vmem:[#allocation2 + $0xd0] sm:$0xff] %vm323, 0.0
          %351 = vst.msk [vmem:[#allocation2 + $0xd8] sm:$0xff] %vm323, 0.0
          %352 = vst.msk [vmem:[#allocation2 + $0xe0] sm:$0xff] %vm323, 0.0
          %353 = vst.msk [vmem:[#allocation2 + $0xe8] sm:$0xff] %vm323, 0.0
          %354 = vst.msk [vmem:[#allocation2 + $0xf0] sm:$0xff] %vm323, 0.0
          %355 = vst.msk [vmem:[#allocation2 + $0xf8] sm:$0xff] %vm323, 0.0
          %356 = vst.msk [vmem:[#allocation2 + $0x100] sm:$0xff] %vm323, 0.0
          %357 = vst.msk [vmem:[#allocation2 + $0x108] sm:$0xff] %vm323, 0.0
          %358 = vst.msk [vmem:[#allocation2 + $0x110] sm:$0xff] %vm323, 0.0
          %359 = vst.msk [vmem:[#allocation2 + $0x118] sm:$0xff] %vm323, 0.0
          %360 = vst.msk [vmem:[#allocation2 + $0x120] sm:$0xff] %vm323, 0.0
          %361 = vst.msk [vmem:[#allocation2 + $0x128] sm:$0xff] %vm323, 0.0
          %362 = vst.msk [vmem:[#allocation2 + $0x130] sm:$0xff] %vm323, 0.0
          %363 = vst.msk [vmem:[#allocation2 + $0x138] sm:$0xff] %vm323, 0.0
          %364 = vst.msk [vmem:[#allocation2 + $0x140] sm:$0xff] %vm323, 0.0
          %365 = vst.msk [vmem:[#allocation2 + $0x148] sm:$0xff] %vm323, 0.0
          %366 = vst.msk [vmem:[#allocation2 + $0x150] sm:$0xff] %vm323, 0.0
          %367 = vst.msk [vmem:[#allocation2 + $0x158] sm:$0xff] %vm323, 0.0
          %368 = vst.msk [vmem:[#allocation2 + $0x160] sm:$0xff] %vm323, 0.0
          %369 = vst.msk [vmem:[#allocation2 + $0x168] sm:$0xff] %vm323, 0.0
          %370 = vst.msk [vmem:[#allocation2 + $0x170] sm:$0xff] %vm323, 0.0
          %371 = vst.msk [vmem:[#allocation2 + $0x178] sm:$0xff] %vm323, 0.0
          %372 = vst.msk [vmem:[#allocation2 + $0x180] sm:$0xff] %vm323, 0.0
          %373 = vst.msk [vmem:[#allocation2 + $0x188] sm:$0xff] %vm323, 0.0
          %374 = vst.msk [vmem:[#allocation2 + $0x190] sm:$0xff] %vm323, 0.0
          %375 = vst.msk [vmem:[#allocation2 + $0x198] sm:$0xff] %vm323, 0.0
          %376 = vst.msk [vmem:[#allocation2 + $0x1a0] sm:$0xff] %vm323, 0.0
          %377 = vst.msk [vmem:[#allocation2 + $0x1a8] sm:$0xff] %vm323, 0.0
          %378 = vst.msk [vmem:[#allocation2 + $0x1b0] sm:$0xff] %vm323, 0.0
          %379 = vst.msk [vmem:[#allocation2 + $0x1b8] sm:$0xff] %vm323, 0.0
          %380 = vst.msk [vmem:[#allocation2 + $0x1c0] sm:$0xff] %vm323, 0.0
          %381 = vst.msk [vmem:[#allocation2 + $0x1c8] sm:$0xff] %vm323, 0.0
          %382 = vst.msk [vmem:[#allocation2 + $0x1d0] sm:$0xff] %vm323, 0.0
          %383 = vst.msk [vmem:[#allocation2 + $0x1d8] sm:$0xff] %vm323, 0.0
          %384 = vst.msk [vmem:[#allocation2 + $0x1e0] sm:$0xff] %vm323, 0.0
          %385 = vst.msk [vmem:[#allocation2 + $0x1e8] sm:$0xff] %vm323, 0.0
          %386 = vst.msk [vmem:[#allocation2 + $0x1f0] sm:$0xff] %vm323, 0.0
          %387 = vst.msk [vmem:[#allocation2 + $0x1f8] sm:$0xff] %vm323, 0.0
        $region44: #{gcn_layer_forward.3} parent=27 // pred_fallthru
          _
        %v388 = vld [vmem:[#allocation2] sm:$0xff]
        %v389 = vld [vmem:[#allocation2 + $0x8] sm:$0xff]
        %v390 = vld [vmem:[#allocation2 + $0x10] sm:$0xff]
        %v391 = vld [vmem:[#allocation2 + $0x18] sm:$0xff]
        %v392 = vld [vmem:[#allocation2 + $0x20] sm:$0xff]
        %v393 = vld [vmem:[#allocation2 + $0x28] sm:$0xff]
        %v394 = vld [vmem:[#allocation2 + $0x30] sm:$0xff]
        %v395 = vld [vmem:[#allocation2 + $0x38] sm:$0xff]
        %v396 = vld [vmem:[#allocation2 + $0x40] sm:$0xff]
        %v397 = vld [vmem:[#allocation2 + $0x48] sm:$0xff]
        %v398 = vld [vmem:[#allocation2 + $0x50] sm:$0xff]
        %v399 = vld [vmem:[#allocation2 + $0x58] sm:$0xff]
        %v400 = vld [vmem:[#allocation2 + $0x60] sm:$0xff]
        %v401 = vld [vmem:[#allocation2 + $0x68] sm:$0xff]
        %v402 = vld [vmem:[#allocation2 + $0x70] sm:$0xff]
        %v403 = vld [vmem:[#allocation2 + $0x78] sm:$0xff]
        %v404 = vld [vmem:[#allocation2 + $0x80] sm:$0xff]
        %v405 = vld [vmem:[#allocation2 + $0x88] sm:$0xff]
        %v406 = vld [vmem:[#allocation2 + $0x90] sm:$0xff]
        %v407 = vld [vmem:[#allocation2 + $0x98] sm:$0xff]
        %v408 = vld [vmem:[#allocation2 + $0xa0] sm:$0xff]
        %v409 = vld [vmem:[#allocation2 + $0xa8] sm:$0xff]
        %v410 = vld [vmem:[#allocation2 + $0xb0] sm:$0xff]
        %v411 = vld [vmem:[#allocation2 + $0xb8] sm:$0xff]
        %v412 = vld [vmem:[#allocation2 + $0xc0] sm:$0xff]
        %v413 = vld [vmem:[#allocation2 + $0xc8] sm:$0xff]
        %v414 = vld [vmem:[#allocation2 + $0xd0] sm:$0xff]
        %v415 = vld [vmem:[#allocation2 + $0xd8] sm:$0xff]
        %v416 = vld [vmem:[#allocation2 + $0xe0] sm:$0xff]
        %v417 = vld [vmem:[#allocation2 + $0xe8] sm:$0xff]
        %v418 = vld [vmem:[#allocation2 + $0xf0] sm:$0xff]
        %v419 = vld [vmem:[#allocation2 + $0xf8] sm:$0xff]
        %v420 = vld [vmem:[#allocation2 + $0x100] sm:$0xff]
        %v421 = vld [vmem:[#allocation2 + $0x108] sm:$0xff]
        %v422 = vld [vmem:[#allocation2 + $0x110] sm:$0xff]
        %v423 = vld [vmem:[#allocation2 + $0x118] sm:$0xff]
        %v424 = vld [vmem:[#allocation2 + $0x120] sm:$0xff]
        %v425 = vld [vmem:[#allocation2 + $0x128] sm:$0xff]
        %v426 = vld [vmem:[#allocation2 + $0x130] sm:$0xff]
        %v427 = vld [vmem:[#allocation2 + $0x138] sm:$0xff]
        %v428 = vld [vmem:[#allocation2 + $0x140] sm:$0xff]
        %v429 = vld [vmem:[#allocation2 + $0x148] sm:$0xff]
        %v430 = vld [vmem:[#allocation2 + $0x150] sm:$0xff]
        %v431 = vld [vmem:[#allocation2 + $0x158] sm:$0xff]
        %v432 = vld [vmem:[#allocation2 + $0x160] sm:$0xff]
        %v433 = vld [vmem:[#allocation2 + $0x168] sm:$0xff]
        %v434 = vld [vmem:[#allocation2 + $0x170] sm:$0xff]
        %v435 = vld [vmem:[#allocation2 + $0x178] sm:$0xff]
        %v436 = vld [vmem:[#allocation2 + $0x180] sm:$0xff]
        %v437 = vld [vmem:[#allocation2 + $0x188] sm:$0xff]
        %v438 = vld [vmem:[#allocation2 + $0x190] sm:$0xff]
        %v439 = vld [vmem:[#allocation2 + $0x198] sm:$0xff]
        %v440 = vld [vmem:[#allocation2 + $0x1a0] sm:$0xff]
        %v441 = vld [vmem:[#allocation2 + $0x1a8] sm:$0xff]
        %v442 = vld [vmem:[#allocation2 + $0x1b0] sm:$0xff]
        %v443 = vld [vmem:[#allocation2 + $0x1b8] sm:$0xff]
        %v444 = vld [vmem:[#allocation2 + $0x1c0] sm:$0xff]
        %v445 = vld [vmem:[#allocation2 + $0x1c8] sm:$0xff]
        %v446 = vld [vmem:[#allocation2 + $0x1d0] sm:$0xff]
        %v447 = vld [vmem:[#allocation2 + $0x1d8] sm:$0xff]
        %v448 = vld [vmem:[#allocation2 + $0x1e0] sm:$0xff]
        %v449 = vld [vmem:[#allocation2 + $0x1e8] sm:$0xff]
        %v450 = vld [vmem:[#allocation2 + $0x1f0] sm:$0xff]
        %v451 = vld [vmem:[#allocation2 + $0x1f8] sm:$0xff]
        %v452 = vld [vmem:[%s217] sm:$0xf]
        %v453 = vld [vmem:[%s217 + $0x4] sm:$0xf]
        %v454 = vld [vmem:[%s217 + $0x8] sm:$0xf]
        %v455 = vld [vmem:[%s217 + $0xc] sm:$0xf]
        %v456 = vld [vmem:[%s217 + $0x10] sm:$0xf]
        %v457 = vld [vmem:[%s217 + $0x14] sm:$0xf]
        %v458 = vld [vmem:[%s217 + $0x18] sm:$0xf]
        %v459 = vld [vmem:[%s217 + $0x1c] sm:$0xf]
        %v460 = vld [vmem:[%s217 + $0x20] sm:$0xf]
        %v461 = vld [vmem:[%s217 + $0x24] sm:$0xf]
        %v462 = vld [vmem:[%s217 + $0x28] sm:$0xf]
        %v463 = vld [vmem:[%s217 + $0x2c] sm:$0xf]
        %v464 = vld [vmem:[%s217 + $0x30] sm:$0xf]
        %v465 = vld [vmem:[%s217 + $0x34] sm:$0xf]
        %v466 = vld [vmem:[%s217 + $0x38] sm:$0xf]
        %v467 = vld [vmem:[%s217 + $0x3c] sm:$0xf]
        %v468 = vld [vmem:[%s217 + $0x40] sm:$0xf]
        %v469 = vld [vmem:[%s217 + $0x44] sm:$0xf]
        %v470 = vld [vmem:[%s217 + $0x48] sm:$0xf]
        %v471 = vld [vmem:[%s217 + $0x4c] sm:$0xf]
        %v472 = vld [vmem:[%s217 + $0x50] sm:$0xf]
        %v473 = vld [vmem:[%s217 + $0x54] sm:$0xf]
        %v474 = vld [vmem:[%s217 + $0x58] sm:$0xf]
        %v475 = vld [vmem:[%s217 + $0x5c] sm:$0xf]
        %v476 = vld [vmem:[%s217 + $0x60] sm:$0xf]
        %v477 = vld [vmem:[%s217 + $0x64] sm:$0xf]
        %v478 = vld [vmem:[%s217 + $0x68] sm:$0xf]
        %v479 = vld [vmem:[%s217 + $0x6c] sm:$0xf]
        %v480 = vld [vmem:[%s217 + $0x70] sm:$0xf]
        %v481 = vld [vmem:[%s217 + $0x74] sm:$0xf]
        %v482 = vld [vmem:[%s217 + $0x78] sm:$0xf]
        %v483 = vld [vmem:[%s217 + $0x7c] sm:$0xf]
        %v484 = vld [vmem:[%s217 + $0x80] sm:$0xf]
        %v485 = vld [vmem:[%s217 + $0x84] sm:$0xf]
        %v486 = vld [vmem:[%s217 + $0x88] sm:$0xf]
        %v487 = vld [vmem:[%s217 + $0x8c] sm:$0xf]
        %v488 = vld [vmem:[%s217 + $0x90] sm:$0xf]
        %v489 = vld [vmem:[%s217 + $0x94] sm:$0xf]
        %v490 = vld [vmem:[%s217 + $0x98] sm:$0xf]
        %v491 = vld [vmem:[%s217 + $0x9c] sm:$0xf]
        %v492 = vld [vmem:[%s217 + $0xa0] sm:$0xf]
        %v493 = vld [vmem:[%s217 + $0xa4] sm:$0xf]
        %v494 = vld [vmem:[%s217 + $0xa8] sm:$0xf]
        %v495 = vld [vmem:[%s217 + $0xac] sm:$0xf]
        %v496 = vld [vmem:[%s217 + $0xb0] sm:$0xf]
        %v497 = vld [vmem:[%s217 + $0xb4] sm:$0xf]
        %v498 = vld [vmem:[%s217 + $0xb8] sm:$0xf]
        %v499 = vld [vmem:[%s217 + $0xbc] sm:$0xf]
        %v500 = vld [vmem:[%s217 + $0xc0] sm:$0xf]
        %v501 = vld [vmem:[%s217 + $0xc4] sm:$0xf]
        %v502 = vld [vmem:[%s217 + $0xc8] sm:$0xf]
        %v503 = vld [vmem:[%s217 + $0xcc] sm:$0xf]
        %v504 = vld [vmem:[%s217 + $0xd0] sm:$0xf]
        %v505 = vld [vmem:[%s217 + $0xd4] sm:$0xf]
        %v506 = vld [vmem:[%s217 + $0xd8] sm:$0xf]
        %v507 = vld [vmem:[%s217 + $0xdc] sm:$0xf]
        %v508 = vld [vmem:[%s217 + $0xe0] sm:$0xf]
        %v509 = vld [vmem:[%s217 + $0xe4] sm:$0xf]
        %v510 = vld [vmem:[%s217 + $0xe8] sm:$0xf]
        %v511 = vld [vmem:[%s217 + $0xec] sm:$0xf]
        %v512 = vld [vmem:[%s217 + $0xf0] sm:$0xf]
        %v513 = vld [vmem:[%s217 + $0xf4] sm:$0xf]
        %v514 = vld [vmem:[%s217 + $0xf8] sm:$0xf]
        %v515 = vld [vmem:[%s217 + $0xfc] sm:$0xf]
        %v516 = vld [vmem:[#allocation6] sm:$0xf]
        %v517 = vld [vmem:[#allocation6 + $0x4] sm:$0xf]
        %v518 = vld [vmem:[#allocation6 + $0x8] sm:$0xf]
        %v519 = vld [vmem:[#allocation6 + $0xc] sm:$0xf]
        %v520 = vld [vmem:[#allocation6 + $0x10] sm:$0xf]
        %v521 = vld [vmem:[#allocation6 + $0x14] sm:$0xf]
        %v522 = vld [vmem:[#allocation6 + $0x18] sm:$0xf]
        %v523 = vld [vmem:[#allocation6 + $0x1c] sm:$0xf]
        %v524 = vld [vmem:[#allocation6 + $0x20] sm:$0xf]
        %v525 = vld [vmem:[#allocation6 + $0x24] sm:$0xf]
        %v526 = vld [vmem:[#allocation6 + $0x28] sm:$0xf]
        %v527 = vld [vmem:[#allocation6 + $0x2c] sm:$0xf]
        %v528 = vld [vmem:[#allocation6 + $0x30] sm:$0xf]
        %v529 = vld [vmem:[#allocation6 + $0x34] sm:$0xf]
        %v530 = vld [vmem:[#allocation6 + $0x38] sm:$0xf]
        %v531 = vld [vmem:[#allocation6 + $0x3c] sm:$0xf]
        %v596 = vunpack.c.l.b16 %v452
        %v597 = vunpack.c.l.b16 %v453
        %v598 = vunpack.c.l.b16 %v454
        %v599 = vunpack.c.l.b16 %v455
        %v600 = vunpack.c.l.b16 %v456
        %v601 = vunpack.c.l.b16 %v457
        %v602 = vunpack.c.l.b16 %v458
        %v603 = vunpack.c.l.b16 %v459
        %v604 = vunpack.c.l.b16 %v460
        %v605 = vunpack.c.l.b16 %v461
        %v606 = vunpack.c.l.b16 %v462
        %v607 = vunpack.c.l.b16 %v463
        %v608 = vunpack.c.l.b16 %v464
        %v609 = vunpack.c.l.b16 %v465
        %v610 = vunpack.c.l.b16 %v466
        %v611 = vunpack.c.l.b16 %v467
        %v612 = vunpack.c.l.b16 %v468
        %v613 = vunpack.c.l.b16 %v469
        %v614 = vunpack.c.l.b16 %v470
        %v615 = vunpack.c.l.b16 %v471
        %v616 = vunpack.c.l.b16 %v472
        %v617 = vunpack.c.l.b16 %v473
        %v618 = vunpack.c.l.b16 %v474
        %v619 = vunpack.c.l.b16 %v475
        %v620 = vunpack.c.l.b16 %v476
        %v621 = vunpack.c.l.b16 %v477
        %v622 = vunpack.c.l.b16 %v478
        %v623 = vunpack.c.l.b16 %v479
        %v624 = vunpack.c.l.b16 %v480
        %v625 = vunpack.c.l.b16 %v481
        %v626 = vunpack.c.l.b16 %v482
        %v627 = vunpack.c.l.b16 %v483
        %v628 = vunpack.c.l.b16 %v484
        %v629 = vunpack.c.l.b16 %v485
        %v630 = vunpack.c.l.b16 %v486
        %v631 = vunpack.c.l.b16 %v487
        %v632 = vunpack.c.l.b16 %v488
        %v633 = vunpack.c.l.b16 %v489
        %v634 = vunpack.c.l.b16 %v490
        %v635 = vunpack.c.l.b16 %v491
        %v636 = vunpack.c.l.b16 %v492
        %v637 = vunpack.c.l.b16 %v493
        %v638 = vunpack.c.l.b16 %v494
        %v639 = vunpack.c.l.b16 %v495
        %v640 = vunpack.c.l.b16 %v496
        %v641 = vunpack.c.l.b16 %v497
        %v642 = vunpack.c.l.b16 %v498
        %v643 = vunpack.c.l.b16 %v499
        %v644 = vunpack.c.l.b16 %v500
        %v645 = vunpack.c.l.b16 %v501
        %v646 = vunpack.c.l.b16 %v502
        %v647 = vunpack.c.l.b16 %v503
        %v648 = vunpack.c.l.b16 %v504
        %v649 = vunpack.c.l.b16 %v505
        %v650 = vunpack.c.l.b16 %v506
        %v651 = vunpack.c.l.b16 %v507
        %v652 = vunpack.c.l.b16 %v508
        %v653 = vunpack.c.l.b16 %v509
        %v654 = vunpack.c.l.b16 %v510
        %v655 = vunpack.c.l.b16 %v511
        %v656 = vunpack.c.l.b16 %v512
        %v657 = vunpack.c.l.b16 %v513
        %v658 = vunpack.c.l.b16 %v514
        %v659 = vunpack.c.l.b16 %v515
        %v660 = vpack.c.b16 %v597, %v596
        %v661 = vpack.c.b16 %v599, %v598
        %v662 = vpack.c.b16 %v601, %v600
        %v663 = vpack.c.b16 %v603, %v602
        %v664 = vpack.c.b16 %v605, %v604
        %v665 = vpack.c.b16 %v607, %v606
        %v666 = vpack.c.b16 %v609, %v608
        %v667 = vpack.c.b16 %v611, %v610
        %v668 = vpack.c.b16 %v613, %v612
        %v669 = vpack.c.b16 %v615, %v614
        %v670 = vpack.c.b16 %v617, %v616
        %v671 = vpack.c.b16 %v619, %v618
        %v672 = vpack.c.b16 %v621, %v620
        %v673 = vpack.c.b16 %v623, %v622
        %v674 = vpack.c.b16 %v625, %v624
        %v675 = vpack.c.b16 %v627, %v626
        %v676 = vpack.c.b16 %v629, %v628
        %v677 = vpack.c.b16 %v631, %v630
        %v678 = vpack.c.b16 %v633, %v632
        %v679 = vpack.c.b16 %v635, %v634
        %v680 = vpack.c.b16 %v637, %v636
        %v681 = vpack.c.b16 %v639, %v638
        %v682 = vpack.c.b16 %v641, %v640
        %v683 = vpack.c.b16 %v643, %v642
        %v684 = vpack.c.b16 %v645, %v644
        %v685 = vpack.c.b16 %v647, %v646
        %v686 = vpack.c.b16 %v649, %v648
        %v687 = vpack.c.b16 %v651, %v650
        %v688 = vpack.c.b16 %v653, %v652
        %v689 = vpack.c.b16 %v655, %v654
        %v690 = vpack.c.b16 %v657, %v656
        %v691 = vpack.c.b16 %v659, %v658
        %v740 = vunpack.c.l.b16 %v516
        %v741 = vunpack.c.l.b16 %v517
        %v742 = vunpack.c.l.b16 %v518
        %v743 = vunpack.c.l.b16 %v519
        %v744 = vunpack.c.l.b16 %v520
        %v745 = vunpack.c.l.b16 %v521
        %v746 = vunpack.c.l.b16 %v522
        %v747 = vunpack.c.l.b16 %v523
        %v748 = vunpack.c.l.b16 %v524
        %v749 = vunpack.c.l.b16 %v525
        %v750 = vunpack.c.l.b16 %v526
        %v751 = vunpack.c.l.b16 %v527
        %v752 = vunpack.c.l.b16 %v528
        %v753 = vunpack.c.l.b16 %v529
        %v754 = vunpack.c.l.b16 %v530
        %v755 = vunpack.c.l.b16 %v531
        %v756 = vpack.c.b16 %v741, %v740
        %v757 = vpack.c.b16 %v743, %v742
        %v758 = vpack.c.b16 %v745, %v744
        %v759 = vpack.c.b16 %v747, %v746
        %v760 = vpack.c.b16 %v749, %v748
        %v761 = vpack.c.b16 %v751, %v750
        %v762 = vpack.c.b16 %v753, %v752
        %v763 = vpack.c.b16 %v755, %v754
        %772 = vmatprep.subr.bf16.mxu0 0
        %773 = vmatpush1.bf16.msra.mxu0 %v756
        %774 = vmatprep.subr.bf16.mxu0 0
        %775 = vmatpush1.bf16.msra.mxu0 %v757
        %776 = vmatprep.subr.bf16.mxu0 0
        %777 = vmatpush1.bf16.msra.mxu0 %v758
        %778 = vmatprep.subr.bf16.mxu0 0
        %779 = vmatpush1.bf16.msra.mxu0 %v759
        %780 = vmatprep.subr.bf16.mxu0 0
        %781 = vmatpush1.bf16.msra.mxu0 %v760
        %782 = vmatprep.subr.bf16.mxu0 0
        %783 = vmatpush1.bf16.msra.mxu0 %v761
        %784 = vmatprep.subr.bf16.mxu0 0
        %785 = vmatpush1.bf16.msra.mxu0 %v762
        %786 = vmatprep.subr.bf16.mxu0 0
        %787 = vmatpush1.bf16.msra.mxu0 %v763
        %788 = vmatprep.subr.bf16.mxu0 0
        %789 = vmatpush1.bf16.msra.mxu0 0
        %790 = vmatprep.subr.bf16.mxu0 0
        %791 = vmatpush1.bf16.msra.mxu0 0
        %792 = vmatprep.subr.bf16.mxu0 0
        %793 = vmatpush1.bf16.msra.mxu0 0
        %794 = vmatprep.subr.bf16.mxu0 0
        %795 = vmatpush1.bf16.msra.mxu0 0
        %796 = vmatprep.subr.bf16.mxu0 0
        %797 = vmatpush1.bf16.msra.mxu0 0
        %798 = vmatprep.subr.bf16.mxu0 0
        %799 = vmatpush1.bf16.msra.mxu0 0
        %800 = vmatprep.subr.bf16.mxu0 0
        %801 = vmatpush1.bf16.msra.mxu0 0
        %802 = vmatprep.subr.bf16.mxu0 0
        %803 = vmatpush1.bf16.msra.mxu0 0
        %804 = vmatprep.mubr.bf16.mxu0 0
        %805 = vmatmul.mubr.bf16.gmra.mrb[0].mxu0 %v660
        %v806 = vpop.f32.mrb[0].mxu0
        %v807 = vadd.f32 0.0, %v806
        %v808 = vpop.f32.mrb[0].mxu0
        %v809 = vpop.f32.mrb[0].mxu0
        %v810 = vadd.f32 0.0, %v809
        %v811 = vpop.f32.mrb[0].mxu0
        %812 = vmatprep.mubr.bf16.mxu0 0
        %813 = vmatmul.mubr.bf16.gmra.mrb[0].mxu0 %v661
        %v814 = vpop.f32.mrb[0].mxu0
        %v815 = vadd.f32 0.0, %v814
        %v816 = vpop.f32.mrb[0].mxu0
        %v817 = vpop.f32.mrb[0].mxu0
        %v818 = vadd.f32 0.0, %v817
        %v819 = vpop.f32.mrb[0].mxu0
        %820 = vmatprep.mubr.bf16.mxu0 0
        %821 = vmatmul.mubr.bf16.gmra.mrb[0].mxu0 %v662
        %v822 = vpop.f32.mrb[0].mxu0
        %v823 = vadd.f32 0.0, %v822
        %v824 = vpop.f32.mrb[0].mxu0
        %v825 = vpop.f32.mrb[0].mxu0
        %v826 = vadd.f32 0.0, %v825
        %v827 = vpop.f32.mrb[0].mxu0
        %828 = vmatprep.mubr.bf16.mxu0 0
        %829 = vmatmul.mubr.bf16.gmra.mrb[0].mxu0 %v663
        %v830 = vpop.f32.mrb[0].mxu0
        %v831 = vadd.f32 0.0, %v830
        %v832 = vpop.f32.mrb[0].mxu0
        %v833 = vpop.f32.mrb[0].mxu0
        %v834 = vadd.f32 0.0, %v833
        %v835 = vpop.f32.mrb[0].mxu0
        %836 = vmatprep.mubr.bf16.mxu0 0
        %837 = vmatmul.mubr.bf16.gmra.mrb[0].mxu0 %v664
        %v838 = vpop.f32.mrb[0].mxu0
        %v839 = vadd.f32 0.0, %v838
        %v840 = vpop.f32.mrb[0].mxu0
        %v841 = vpop.f32.mrb[0].mxu0
        %v842 = vadd.f32 0.0, %v841
        %v843 = vpop.f32.mrb[0].mxu0
        %844 = vmatprep.mubr.bf16.mxu0 0
        %845 = vmatmul.mubr.bf16.gmra.mrb[0].mxu0 %v665
        %v846 = vpop.f32.mrb[0].mxu0
        %v847 = vadd.f32 0.0, %v846
        %v848 = vpop.f32.mrb[0].mxu0
        %v849 = vpop.f32.mrb[0].mxu0
        %v850 = vadd.f32 0.0, %v849
        %v851 = vpop.f32.mrb[0].mxu0
        %852 = vmatprep.mubr.bf16.mxu0 0
        %853 = vmatmul.mubr.bf16.gmra.mrb[0].mxu0 %v666
        %v854 = vpop.f32.mrb[0].mxu0
        %v855 = vadd.f32 0.0, %v854
        %v856 = vpop.f32.mrb[0].mxu0
        %v857 = vpop.f32.mrb[0].mxu0
        %v858 = vadd.f32 0.0, %v857
        %v859 = vpop.f32.mrb[0].mxu0
        %860 = vmatprep.mubr.bf16.mxu0 0
        %861 = vmatmul.mubr.bf16.gmra.mrb[0].mxu0 %v667
        %v862 = vpop.f32.mrb[0].mxu0
        %v863 = vadd.f32 0.0, %v862
        %v864 = vpop.f32.mrb[0].mxu0
        %v865 = vpop.f32.mrb[0].mxu0
        %v866 = vadd.f32 0.0, %v865
        %v867 = vpop.f32.mrb[0].mxu0
        %868 = vmatprep.mubr.bf16.mxu0 0
        %869 = vmatmul.mubr.bf16.gmra.mrb[0].mxu0 %v668
        %v870 = vpop.f32.mrb[0].mxu0
        %v871 = vadd.f32 0.0, %v870
        %v872 = vpop.f32.mrb[0].mxu0
        %v873 = vpop.f32.mrb[0].mxu0
        %v874 = vadd.f32 0.0, %v873
        %v875 = vpop.f32.mrb[0].mxu0
        %876 = vmatprep.mubr.bf16.mxu0 0
        %877 = vmatmul.mubr.bf16.gmra.mrb[0].mxu0 %v669
        %v878 = vpop.f32.mrb[0].mxu0
        %v879 = vadd.f32 0.0, %v878
        %v880 = vpop.f32.mrb[0].mxu0
        %v881 = vpop.f32.mrb[0].mxu0
        %v882 = vadd.f32 0.0, %v881
        %v883 = vpop.f32.mrb[0].mxu0
        %884 = vmatprep.mubr.bf16.mxu0 0
        %885 = vmatmul.mubr.bf16.gmra.mrb[0].mxu0 %v670
        %v886 = vpop.f32.mrb[0].mxu0
        %v887 = vadd.f32 0.0, %v886
        %v888 = vpop.f32.mrb[0].mxu0
        %v889 = vpop.f32.mrb[0].mxu0
        %v890 = vadd.f32 0.0, %v889
        %v891 = vpop.f32.mrb[0].mxu0
        %892 = vmatprep.mubr.bf16.mxu0 0
        %893 = vmatmul.mubr.bf16.gmra.mrb[0].mxu0 %v671
        %v894 = vpop.f32.mrb[0].mxu0
        %v895 = vadd.f32 0.0, %v894
        %v896 = vpop.f32.mrb[0].mxu0
        %v897 = vpop.f32.mrb[0].mxu0
        %v898 = vadd.f32 0.0, %v897
        %v899 = vpop.f32.mrb[0].mxu0
        %900 = vmatprep.mubr.bf16.mxu0 0
        %901 = vmatmul.mubr.bf16.gmra.mrb[0].mxu0 %v672
        %v902 = vpop.f32.mrb[0].mxu0
        %v903 = vadd.f32 0.0, %v902
        %v904 = vpop.f32.mrb[0].mxu0
        %v905 = vpop.f32.mrb[0].mxu0
        %v906 = vadd.f32 0.0, %v905
        %v907 = vpop.f32.mrb[0].mxu0
        %908 = vmatprep.mubr.bf16.mxu0 0
        %909 = vmatmul.mubr.bf16.gmra.mrb[0].mxu0 %v673
        %v910 = vpop.f32.mrb[0].mxu0
        %v911 = vadd.f32 0.0, %v910
        %v912 = vpop.f32.mrb[0].mxu0
        %v913 = vpop.f32.mrb[0].mxu0
        %v914 = vadd.f32 0.0, %v913
        %v915 = vpop.f32.mrb[0].mxu0
        %916 = vmatprep.mubr.bf16.mxu0 0
        %917 = vmatmul.mubr.bf16.gmra.mrb[0].mxu0 %v674
        %v918 = vpop.f32.mrb[0].mxu0
        %v919 = vadd.f32 0.0, %v918
        %v920 = vpop.f32.mrb[0].mxu0
        %v921 = vpop.f32.mrb[0].mxu0
        %v922 = vadd.f32 0.0, %v921
        %v923 = vpop.f32.mrb[0].mxu0
        %924 = vmatprep.mubr.bf16.mxu0 0
        %925 = vmatmul.mubr.bf16.gmra.mrb[0].mxu0 %v675
        %v926 = vpop.f32.mrb[0].mxu0
        %v927 = vadd.f32 0.0, %v926
        %v928 = vpop.f32.mrb[0].mxu0
        %v929 = vpop.f32.mrb[0].mxu0
        %v930 = vadd.f32 0.0, %v929
        %v931 = vpop.f32.mrb[0].mxu0
        %932 = vmatprep.mubr.bf16.mxu0 0
        %933 = vmatmul.mubr.bf16.gmra.mrb[0].mxu0 %v676
        %v934 = vpop.f32.mrb[0].mxu0
        %v935 = vadd.f32 0.0, %v934
        %v936 = vpop.f32.mrb[0].mxu0
        %v937 = vpop.f32.mrb[0].mxu0
        %v938 = vadd.f32 0.0, %v937
        %v939 = vpop.f32.mrb[0].mxu0
        %940 = vmatprep.mubr.bf16.mxu0 0
        %941 = vmatmul.mubr.bf16.gmra.mrb[0].mxu0 %v677
        %v942 = vpop.f32.mrb[0].mxu0
        %v943 = vadd.f32 0.0, %v942
        %v944 = vpop.f32.mrb[0].mxu0
        %v945 = vpop.f32.mrb[0].mxu0
        %v946 = vadd.f32 0.0, %v945
        %v947 = vpop.f32.mrb[0].mxu0
        %948 = vmatprep.mubr.bf16.mxu0 0
        %949 = vmatmul.mubr.bf16.gmra.mrb[0].mxu0 %v678
        %v950 = vpop.f32.mrb[0].mxu0
        %v951 = vadd.f32 0.0, %v950
        %v952 = vpop.f32.mrb[0].mxu0
        %v953 = vpop.f32.mrb[0].mxu0
        %v954 = vadd.f32 0.0, %v953
        %v955 = vpop.f32.mrb[0].mxu0
        %956 = vmatprep.mubr.bf16.mxu0 0
        %957 = vmatmul.mubr.bf16.gmra.mrb[0].mxu0 %v679
        %v958 = vpop.f32.mrb[0].mxu0
        %v959 = vadd.f32 0.0, %v958
        %v960 = vpop.f32.mrb[0].mxu0
        %v961 = vpop.f32.mrb[0].mxu0
        %v962 = vadd.f32 0.0, %v961
        %v963 = vpop.f32.mrb[0].mxu0
        %964 = vmatprep.mubr.bf16.mxu0 0
        %965 = vmatmul.mubr.bf16.gmra.mrb[0].mxu0 %v680
        %v966 = vpop.f32.mrb[0].mxu0
        %v967 = vadd.f32 0.0, %v966
        %v968 = vpop.f32.mrb[0].mxu0
        %v969 = vpop.f32.mrb[0].mxu0
        %v970 = vadd.f32 0.0, %v969
        %v971 = vpop.f32.mrb[0].mxu0
        %972 = vmatprep.mubr.bf16.mxu0 0
        %973 = vmatmul.mubr.bf16.gmra.mrb[0].mxu0 %v681
        %v974 = vpop.f32.mrb[0].mxu0
        %v975 = vadd.f32 0.0, %v974
        %v976 = vpop.f32.mrb[0].mxu0
        %v977 = vpop.f32.mrb[0].mxu0
        %v978 = vadd.f32 0.0, %v977
        %v979 = vpop.f32.mrb[0].mxu0
        %980 = vmatprep.mubr.bf16.mxu0 0
        %981 = vmatmul.mubr.bf16.gmra.mrb[0].mxu0 %v682
        %v982 = vpop.f32.mrb[0].mxu0
        %v983 = vadd.f32 0.0, %v982
        %v984 = vpop.f32.mrb[0].mxu0
        %v985 = vpop.f32.mrb[0].mxu0
        %v986 = vadd.f32 0.0, %v985
        %v987 = vpop.f32.mrb[0].mxu0
        %988 = vmatprep.mubr.bf16.mxu0 0
        %989 = vmatmul.mubr.bf16.gmra.mrb[0].mxu0 %v683
        %v990 = vpop.f32.mrb[0].mxu0
        %v991 = vadd.f32 0.0, %v990
        %v992 = vpop.f32.mrb[0].mxu0
        %v993 = vpop.f32.mrb[0].mxu0
        %v994 = vadd.f32 0.0, %v993
        %v995 = vpop.f32.mrb[0].mxu0
        %996 = vmatprep.mubr.bf16.mxu0 0
        %997 = vmatmul.mubr.bf16.gmra.mrb[0].mxu0 %v684
        %v998 = vpop.f32.mrb[0].mxu0
        %v999 = vadd.f32 0.0, %v998
        %v1000 = vpop.f32.mrb[0].mxu0
        %v1001 = vpop.f32.mrb[0].mxu0
        %v1002 = vadd.f32 0.0, %v1001
        %v1003 = vpop.f32.mrb[0].mxu0
        %1004 = vmatprep.mubr.bf16.mxu0 0
        %1005 = vmatmul.mubr.bf16.gmra.mrb[0].mxu0 %v685
        %v1006 = vpop.f32.mrb[0].mxu0
        %v1007 = vadd.f32 0.0, %v1006
        %v1008 = vpop.f32.mrb[0].mxu0
        %v1009 = vpop.f32.mrb[0].mxu0
        %v1010 = vadd.f32 0.0, %v1009
        %v1011 = vpop.f32.mrb[0].mxu0
        %1012 = vmatprep.mubr.bf16.mxu0 0
        %1013 = vmatmul.mubr.bf16.gmra.mrb[0].mxu0 %v686
        %v1014 = vpop.f32.mrb[0].mxu0
        %v1015 = vadd.f32 0.0, %v1014
        %v1016 = vpop.f32.mrb[0].mxu0
        %v1017 = vpop.f32.mrb[0].mxu0
        %v1018 = vadd.f32 0.0, %v1017
        %v1019 = vpop.f32.mrb[0].mxu0
        %1020 = vmatprep.mubr.bf16.mxu0 0
        %1021 = vmatmul.mubr.bf16.gmra.mrb[0].mxu0 %v687
        %v1022 = vpop.f32.mrb[0].mxu0
        %v1023 = vadd.f32 0.0, %v1022
        %v1024 = vpop.f32.mrb[0].mxu0
        %v1025 = vpop.f32.mrb[0].mxu0
        %v1026 = vadd.f32 0.0, %v1025
        %v1027 = vpop.f32.mrb[0].mxu0
        %1028 = vmatprep.mubr.bf16.mxu0 0
        %1029 = vmatmul.mubr.bf16.gmra.mrb[0].mxu0 %v688
        %v1030 = vpop.f32.mrb[0].mxu0
        %v1031 = vadd.f32 0.0, %v1030
        %v1032 = vpop.f32.mrb[0].mxu0
        %v1033 = vpop.f32.mrb[0].mxu0
        %v1034 = vadd.f32 0.0, %v1033
        %v1035 = vpop.f32.mrb[0].mxu0
        %1036 = vmatprep.mubr.bf16.mxu0 0
        %1037 = vmatmul.mubr.bf16.gmra.mrb[0].mxu0 %v689
        %v1038 = vpop.f32.mrb[0].mxu0
        %v1039 = vadd.f32 0.0, %v1038
        %v1040 = vpop.f32.mrb[0].mxu0
        %v1041 = vpop.f32.mrb[0].mxu0
        %v1042 = vadd.f32 0.0, %v1041
        %v1043 = vpop.f32.mrb[0].mxu0
        %1044 = vmatprep.mubr.bf16.mxu0 0
        %1045 = vmatmul.mubr.bf16.gmra.mrb[0].mxu0 %v690
        %v1046 = vpop.f32.mrb[0].mxu0
        %v1047 = vadd.f32 0.0, %v1046
        %v1048 = vpop.f32.mrb[0].mxu0
        %v1049 = vpop.f32.mrb[0].mxu0
        %v1050 = vadd.f32 0.0, %v1049
        %v1051 = vpop.f32.mrb[0].mxu0
        %1052 = vmatprep.mubr.bf16.mxu0 0
        %1053 = vmatmul.mubr.bf16.gmra.mrb[0].mxu0 %v691
        %v1054 = vpop.f32.mrb[0].mxu0
        %v1055 = vadd.f32 0.0, %v1054
        %v1056 = vpop.f32.mrb[0].mxu0
        %v1057 = vpop.f32.mrb[0].mxu0
        %v1058 = vadd.f32 0.0, %v1057
        %v1059 = vpop.f32.mrb[0].mxu0
        %1060 = vdwg.mxu0
        %v1061 = vadd.f32 %v388, %v807
        %v1062 = vadd.f32 %v389, %v810
        %v1063 = vadd.f32 %v390, %v815
        %v1064 = vadd.f32 %v391, %v818
        %v1065 = vadd.f32 %v392, %v823
        %v1066 = vadd.f32 %v393, %v826
        %v1067 = vadd.f32 %v394, %v831
        %v1068 = vadd.f32 %v395, %v834
        %v1069 = vadd.f32 %v396, %v839
        %v1070 = vadd.f32 %v397, %v842
        %v1071 = vadd.f32 %v398, %v847
        %v1072 = vadd.f32 %v399, %v850
        %v1073 = vadd.f32 %v400, %v855
        %v1074 = vadd.f32 %v401, %v858
        %v1075 = vadd.f32 %v402, %v863
        %v1076 = vadd.f32 %v403, %v866
        %v1077 = vadd.f32 %v404, %v871
        %v1078 = vadd.f32 %v405, %v874
        %v1079 = vadd.f32 %v406, %v879
        %v1080 = vadd.f32 %v407, %v882
        %v1081 = vadd.f32 %v408, %v887
        %v1082 = vadd.f32 %v409, %v890
        %v1083 = vadd.f32 %v410, %v895
        %v1084 = vadd.f32 %v411, %v898
        %v1085 = vadd.f32 %v412, %v903
        %v1086 = vadd.f32 %v413, %v906
        %v1087 = vadd.f32 %v414, %v911
        %v1088 = vadd.f32 %v415, %v914
        %v1089 = vadd.f32 %v416, %v919
        %v1090 = vadd.f32 %v417, %v922
        %v1091 = vadd.f32 %v418, %v927
        %v1092 = vadd.f32 %v419, %v930
        %v1093 = vadd.f32 %v420, %v935
        %v1094 = vadd.f32 %v421, %v938
        %v1095 = vadd.f32 %v422, %v943
        %v1096 = vadd.f32 %v423, %v946
        %v1097 = vadd.f32 %v424, %v951
        %v1098 = vadd.f32 %v425, %v954
        %v1099 = vadd.f32 %v426, %v959
        %v1100 = vadd.f32 %v427, %v962
        %v1101 = vadd.f32 %v428, %v967
        %v1102 = vadd.f32 %v429, %v970
        %v1103 = vadd.f32 %v430, %v975
        %v1104 = vadd.f32 %v431, %v978
        %v1105 = vadd.f32 %v432, %v983
        %v1106 = vadd.f32 %v433, %v986
        %v1107 = vadd.f32 %v434, %v991
        %v1108 = vadd.f32 %v435, %v994
        %v1109 = vadd.f32 %v436, %v999
        %v1110 = vadd.f32 %v437, %v1002
        %v1111 = vadd.f32 %v438, %v1007
        %v1112 = vadd.f32 %v439, %v1010
        %v1113 = vadd.f32 %v440, %v1015
        %v1114 = vadd.f32 %v441, %v1018
        %v1115 = vadd.f32 %v442, %v1023
        %v1116 = vadd.f32 %v443, %v1026
        %v1117 = vadd.f32 %v444, %v1031
        %v1118 = vadd.f32 %v445, %v1034
        %v1119 = vadd.f32 %v446, %v1039
        %v1120 = vadd.f32 %v447, %v1042
        %v1121 = vadd.f32 %v448, %v1047
        %v1122 = vadd.f32 %v449, %v1050
        %v1123 = vadd.f32 %v450, %v1055
        %v1124 = vadd.f32 %v451, %v1058
        %vm1125 = vcmask 261120
        %1126 = vst.msk [vmem:[#allocation2] sm:$0xff] %vm1125, %v1061
        %1127 = vst.msk [vmem:[#allocation2 + $0x8] sm:$0xff] %vm1125, %v1062
        %1128 = vst.msk [vmem:[#allocation2 + $0x10] sm:$0xff] %vm1125, %v1063
        %1129 = vst.msk [vmem:[#allocation2 + $0x18] sm:$0xff] %vm1125, %v1064
        %1130 = vst.msk [vmem:[#allocation2 + $0x20] sm:$0xff] %vm1125, %v1065
        %1131 = vst.msk [vmem:[#allocation2 + $0x28] sm:$0xff] %vm1125, %v1066
        %1132 = vst.msk [vmem:[#allocation2 + $0x30] sm:$0xff] %vm1125, %v1067
        %1133 = vst.msk [vmem:[#allocation2 + $0x38] sm:$0xff] %vm1125, %v1068
        %1134 = vst.msk [vmem:[#allocation2 + $0x40] sm:$0xff] %vm1125, %v1069
        %1135 = vst.msk [vmem:[#allocation2 + $0x48] sm:$0xff] %vm1125, %v1070
        %1136 = vst.msk [vmem:[#allocation2 + $0x50] sm:$0xff] %vm1125, %v1071
        %1137 = vst.msk [vmem:[#allocation2 + $0x58] sm:$0xff] %vm1125, %v1072
        %1138 = vst.msk [vmem:[#allocation2 + $0x60] sm:$0xff] %vm1125, %v1073
        %1139 = vst.msk [vmem:[#allocation2 + $0x68] sm:$0xff] %vm1125, %v1074
        %1140 = vst.msk [vmem:[#allocation2 + $0x70] sm:$0xff] %vm1125, %v1075
        %1141 = vst.msk [vmem:[#allocation2 + $0x78] sm:$0xff] %vm1125, %v1076
        %1142 = vst.msk [vmem:[#allocation2 + $0x80] sm:$0xff] %vm1125, %v1077
        %1143 = vst.msk [vmem:[#allocation2 + $0x88] sm:$0xff] %vm1125, %v1078
        %1144 = vst.msk [vmem:[#allocation2 + $0x90] sm:$0xff] %vm1125, %v1079
        %1145 = vst.msk [vmem:[#allocation2 + $0x98] sm:$0xff] %vm1125, %v1080
        %1146 = vst.msk [vmem:[#allocation2 + $0xa0] sm:$0xff] %vm1125, %v1081
        %1147 = vst.msk [vmem:[#allocation2 + $0xa8] sm:$0xff] %vm1125, %v1082
        %1148 = vst.msk [vmem:[#allocation2 + $0xb0] sm:$0xff] %vm1125, %v1083
        %1149 = vst.msk [vmem:[#allocation2 + $0xb8] sm:$0xff] %vm1125, %v1084
        %1150 = vst.msk [vmem:[#allocation2 + $0xc0] sm:$0xff] %vm1125, %v1085
        %1151 = vst.msk [vmem:[#allocation2 + $0xc8] sm:$0xff] %vm1125, %v1086
        %1152 = vst.msk [vmem:[#allocation2 + $0xd0] sm:$0xff] %vm1125, %v1087
        %1153 = vst.msk [vmem:[#allocation2 + $0xd8] sm:$0xff] %vm1125, %v1088
        %1154 = vst.msk [vmem:[#allocation2 + $0xe0] sm:$0xff] %vm1125, %v1089
        %1155 = vst.msk [vmem:[#allocation2 + $0xe8] sm:$0xff] %vm1125, %v1090
        %1156 = vst.msk [vmem:[#allocation2 + $0xf0] sm:$0xff] %vm1125, %v1091
        %1157 = vst.msk [vmem:[#allocation2 + $0xf8] sm:$0xff] %vm1125, %v1092
        %1158 = vst.msk [vmem:[#allocation2 + $0x100] sm:$0xff] %vm1125, %v1093
        %1159 = vst.msk [vmem:[#allocation2 + $0x108] sm:$0xff] %vm1125, %v1094
        %1160 = vst.msk [vmem:[#allocation2 + $0x110] sm:$0xff] %vm1125, %v1095
        %1161 = vst.msk [vmem:[#allocation2 + $0x118] sm:$0xff] %vm1125, %v1096
        %1162 = vst.msk [vmem:[#allocation2 + $0x120] sm:$0xff] %vm1125, %v1097
        %1163 = vst.msk [vmem:[#allocation2 + $0x128] sm:$0xff] %vm1125, %v1098
        %1164 = vst.msk [vmem:[#allocation2 + $0x130] sm:$0xff] %vm1125, %v1099
        %1165 = vst.msk [vmem:[#allocation2 + $0x138] sm:$0xff] %vm1125, %v1100
        %1166 = vst.msk [vmem:[#allocation2 + $0x140] sm:$0xff] %vm1125, %v1101
        %1167 = vst.msk [vmem:[#allocation2 + $0x148] sm:$0xff] %vm1125, %v1102
        %1168 = vst.msk [vmem:[#allocation2 + $0x150] sm:$0xff] %vm1125, %v1103
        %1169 = vst.msk [vmem:[#allocation2 + $0x158] sm:$0xff] %vm1125, %v1104
        %1170 = vst.msk [vmem:[#allocation2 + $0x160] sm:$0xff] %vm1125, %v1105
        %1171 = vst.msk [vmem:[#allocation2 + $0x168] sm:$0xff] %vm1125, %v1106
        %1172 = vst.msk [vmem:[#allocation2 + $0x170] sm:$0xff] %vm1125, %v1107
        %1173 = vst.msk [vmem:[#allocation2 + $0x178] sm:$0xff] %vm1125, %v1108
        %1174 = vst.msk [vmem:[#allocation2 + $0x180] sm:$0xff] %vm1125, %v1109
        %1175 = vst.msk [vmem:[#allocation2 + $0x188] sm:$0xff] %vm1125, %v1110
        %1176 = vst.msk [vmem:[#allocation2 + $0x190] sm:$0xff] %vm1125, %v1111
        %1177 = vst.msk [vmem:[#allocation2 + $0x198] sm:$0xff] %vm1125, %v1112
        %1178 = vst.msk [vmem:[#allocation2 + $0x1a0] sm:$0xff] %vm1125, %v1113
        %1179 = vst.msk [vmem:[#allocation2 + $0x1a8] sm:$0xff] %vm1125, %v1114
        %1180 = vst.msk [vmem:[#allocation2 + $0x1b0] sm:$0xff] %vm1125, %v1115
        %1181 = vst.msk [vmem:[#allocation2 + $0x1b8] sm:$0xff] %vm1125, %v1116
        %1182 = vst.msk [vmem:[#allocation2 + $0x1c0] sm:$0xff] %vm1125, %v1117
        %1183 = vst.msk [vmem:[#allocation2 + $0x1c8] sm:$0xff] %vm1125, %v1118
        %1184 = vst.msk [vmem:[#allocation2 + $0x1d0] sm:$0xff] %vm1125, %v1119
        %1185 = vst.msk [vmem:[#allocation2 + $0x1d8] sm:$0xff] %vm1125, %v1120
        %1186 = vst.msk [vmem:[#allocation2 + $0x1e0] sm:$0xff] %vm1125, %v1121
        %1187 = vst.msk [vmem:[#allocation2 + $0x1e8] sm:$0xff] %vm1125, %v1122
        %1188 = vst.msk [vmem:[#allocation2 + $0x1f0] sm:$0xff] %vm1125, %v1123
        %1189 = vst.msk [vmem:[#allocation2 + $0x1f8] sm:$0xff] %vm1125, %v1124
        // Predicated region
        $region45: #{gcn_layer_forward.3} parent=27 // pred_check
          %p1190 = pneg %p250
        $region46: #{gcn_layer_forward.3} parent=27 // pred_check_branch
          %1192 = sbr.rel (%p1190) target = $region48
        $region47: #{gcn_layer_forward.3} parent=27 // pred_region
          %v1193 = vld [vmem:[#allocation2] sm:$0xff]
          %v1194 = vld [vmem:[#allocation2 + $0x8] sm:$0xff]
          %v1195 = vld [vmem:[#allocation2 + $0x10] sm:$0xff]
          %v1196 = vld [vmem:[#allocation2 + $0x18] sm:$0xff]
          %v1197 = vld [vmem:[#allocation2 + $0x20] sm:$0xff]
          %v1198 = vld [vmem:[#allocation2 + $0x28] sm:$0xff]
          %v1199 = vld [vmem:[#allocation2 + $0x30] sm:$0xff]
          %v1200 = vld [vmem:[#allocation2 + $0x38] sm:$0xff]
          %v1201 = vld [vmem:[#allocation2 + $0x40] sm:$0xff]
          %v1202 = vld [vmem:[#allocation2 + $0x48] sm:$0xff]
          %v1203 = vld [vmem:[#allocation2 + $0x50] sm:$0xff]
          %v1204 = vld [vmem:[#allocation2 + $0x58] sm:$0xff]
          %v1205 = vld [vmem:[#allocation2 + $0x60] sm:$0xff]
          %v1206 = vld [vmem:[#allocation2 + $0x68] sm:$0xff]
          %v1207 = vld [vmem:[#allocation2 + $0x70] sm:$0xff]
          %v1208 = vld [vmem:[#allocation2 + $0x78] sm:$0xff]
          %v1209 = vld [vmem:[#allocation2 + $0x80] sm:$0xff]
          %v1210 = vld [vmem:[#allocation2 + $0x88] sm:$0xff]
          %v1211 = vld [vmem:[#allocation2 + $0x90] sm:$0xff]
          %v1212 = vld [vmem:[#allocation2 + $0x98] sm:$0xff]
          %v1213 = vld [vmem:[#allocation2 + $0xa0] sm:$0xff]
          %v1214 = vld [vmem:[#allocation2 + $0xa8] sm:$0xff]
          %v1215 = vld [vmem:[#allocation2 + $0xb0] sm:$0xff]
          %v1216 = vld [vmem:[#allocation2 + $0xb8] sm:$0xff]
          %v1217 = vld [vmem:[#allocation2 + $0xc0] sm:$0xff]
          %v1218 = vld [vmem:[#allocation2 + $0xc8] sm:$0xff]
          %v1219 = vld [vmem:[#allocation2 + $0xd0] sm:$0xff]
          %v1220 = vld [vmem:[#allocation2 + $0xd8] sm:$0xff]
          %v1221 = vld [vmem:[#allocation2 + $0xe0] sm:$0xff]
          %v1222 = vld [vmem:[#allocation2 + $0xe8] sm:$0xff]
          %v1223 = vld [vmem:[#allocation2 + $0xf0] sm:$0xff]
          %v1224 = vld [vmem:[#allocation2 + $0xf8] sm:$0xff]
          %v1225 = vld [vmem:[#allocation2 + $0x100] sm:$0xff]
          %v1226 = vld [vmem:[#allocation2 + $0x108] sm:$0xff]
          %v1227 = vld [vmem:[#allocation2 + $0x110] sm:$0xff]
          %v1228 = vld [vmem:[#allocation2 + $0x118] sm:$0xff]
          %v1229 = vld [vmem:[#allocation2 + $0x120] sm:$0xff]
          %v1230 = vld [vmem:[#allocation2 + $0x128] sm:$0xff]
          %v1231 = vld [vmem:[#allocation2 + $0x130] sm:$0xff]
          %v1232 = vld [vmem:[#allocation2 + $0x138] sm:$0xff]
          %v1233 = vld [vmem:[#allocation2 + $0x140] sm:$0xff]
          %v1234 = vld [vmem:[#allocation2 + $0x148] sm:$0xff]
          %v1235 = vld [vmem:[#allocation2 + $0x150] sm:$0xff]
          %v1236 = vld [vmem:[#allocation2 + $0x158] sm:$0xff]
          %v1237 = vld [vmem:[#allocation2 + $0x160] sm:$0xff]
          %v1238 = vld [vmem:[#allocation2 + $0x168] sm:$0xff]
          %v1239 = vld [vmem:[#allocation2 + $0x170] sm:$0xff]
          %v1240 = vld [vmem:[#allocation2 + $0x178] sm:$0xff]
          %v1241 = vld [vmem:[#allocation2 + $0x180] sm:$0xff]
          %v1242 = vld [vmem:[#allocation2 + $0x188] sm:$0xff]
          %v1243 = vld [vmem:[#allocation2 + $0x190] sm:$0xff]
          %v1244 = vld [vmem:[#allocation2 + $0x198] sm:$0xff]
          %v1245 = vld [vmem:[#allocation2 + $0x1a0] sm:$0xff]
          %v1246 = vld [vmem:[#allocation2 + $0x1a8] sm:$0xff]
          %v1247 = vld [vmem:[#allocation2 + $0x1b0] sm:$0xff]
          %v1248 = vld [vmem:[#allocation2 + $0x1b8] sm:$0xff]
          %v1249 = vld [vmem:[#allocation2 + $0x1c0] sm:$0xff]
          %v1250 = vld [vmem:[#allocation2 + $0x1c8] sm:$0xff]
          %v1251 = vld [vmem:[#allocation2 + $0x1d0] sm:$0xff]
          %v1252 = vld [vmem:[#allocation2 + $0x1d8] sm:$0xff]
          %v1253 = vld [vmem:[#allocation2 + $0x1e0] sm:$0xff]
          %v1254 = vld [vmem:[#allocation2 + $0x1e8] sm:$0xff]
          %v1255 = vld [vmem:[#allocation2 + $0x1f0] sm:$0xff]
          %v1256 = vld [vmem:[#allocation2 + $0x1f8] sm:$0xff]
          %v1257 = vxor.u32 %v1193, 2147483648
          %v1258 = vxor.u32 %v1194, 2147483648
          %v1259 = vxor.u32 %v1195, 2147483648
          %v1260 = vxor.u32 %v1196, 2147483648
          %v1261 = vxor.u32 %v1197, 2147483648
          %v1262 = vxor.u32 %v1198, 2147483648
          %v1263 = vxor.u32 %v1199, 2147483648
          %v1264 = vxor.u32 %v1200, 2147483648
          %v1265 = vxor.u32 %v1201, 2147483648
          %v1266 = vxor.u32 %v1202, 2147483648
          %v1267 = vxor.u32 %v1203, 2147483648
          %v1268 = vxor.u32 %v1204, 2147483648
          %v1269 = vxor.u32 %v1205, 2147483648
          %v1270 = vxor.u32 %v1206, 2147483648
          %v1271 = vxor.u32 %v1207, 2147483648
          %v1272 = vxor.u32 %v1208, 2147483648
          %v1273 = vxor.u32 %v1209, 2147483648
          %v1274 = vxor.u32 %v1210, 2147483648
          %v1275 = vxor.u32 %v1211, 2147483648
          %v1276 = vxor.u32 %v1212, 2147483648
          %v1277 = vxor.u32 %v1213, 2147483648
          %v1278 = vxor.u32 %v1214, 2147483648
          %v1279 = vxor.u32 %v1215, 2147483648
          %v1280 = vxor.u32 %v1216, 2147483648
          %v1281 = vxor.u32 %v1217, 2147483648
          %v1282 = vxor.u32 %v1218, 2147483648
          %v1283 = vxor.u32 %v1219, 2147483648
          %v1284 = vxor.u32 %v1220, 2147483648
          %v1285 = vxor.u32 %v1221, 2147483648
          %v1286 = vxor.u32 %v1222, 2147483648
          %v1287 = vxor.u32 %v1223, 2147483648
          %v1288 = vxor.u32 %v1224, 2147483648
          %v1289 = vxor.u32 %v1225, 2147483648
          %v1290 = vxor.u32 %v1226, 2147483648
          %v1291 = vxor.u32 %v1227, 2147483648
          %v1292 = vxor.u32 %v1228, 2147483648
          %v1293 = vxor.u32 %v1229, 2147483648
          %v1294 = vxor.u32 %v1230, 2147483648
          %v1295 = vxor.u32 %v1231, 2147483648
          %v1296 = vxor.u32 %v1232, 2147483648
          %v1297 = vxor.u32 %v1233, 2147483648
          %v1298 = vxor.u32 %v1234, 2147483648
          %v1299 = vxor.u32 %v1235, 2147483648
          %v1300 = vxor.u32 %v1236, 2147483648
          %v1301 = vxor.u32 %v1237, 2147483648
          %v1302 = vxor.u32 %v1238, 2147483648
          %v1303 = vxor.u32 %v1239, 2147483648
          %v1304 = vxor.u32 %v1240, 2147483648
          %v1305 = vxor.u32 %v1241, 2147483648
          %v1306 = vxor.u32 %v1242, 2147483648
          %v1307 = vxor.u32 %v1243, 2147483648
          %v1308 = vxor.u32 %v1244, 2147483648
          %v1309 = vxor.u32 %v1245, 2147483648
          %v1310 = vxor.u32 %v1246, 2147483648
          %v1311 = vxor.u32 %v1247, 2147483648
          %v1312 = vxor.u32 %v1248, 2147483648
          %v1313 = vxor.u32 %v1249, 2147483648
          %v1314 = vxor.u32 %v1250, 2147483648
          %v1315 = vxor.u32 %v1251, 2147483648
          %v1316 = vxor.u32 %v1252, 2147483648
          %v1317 = vxor.u32 %v1253, 2147483648
          %v1318 = vxor.u32 %v1254, 2147483648
          %v1319 = vxor.u32 %v1255, 2147483648
          %v1320 = vxor.u32 %v1256, 2147483648
          %v1321 = vmul.f32 %v1257, 1.442695
          %v1322 = vpow.pop %v1321
          %v1323 = vmul.f32 %v1258, 1.442695
          %v1324 = vpow.pop %v1323
          %v1325 = vmul.f32 %v1259, 1.442695
          %v1326 = vpow.pop %v1325
          %v1327 = vmul.f32 %v1260, 1.442695
          %v1328 = vpow.pop %v1327
          %v1329 = vmul.f32 %v1261, 1.442695
          %v1330 = vpow.pop %v1329
          %v1331 = vmul.f32 %v1262, 1.442695
          %v1332 = vpow.pop %v1331
          %v1333 = vmul.f32 %v1263, 1.442695
          %v1334 = vpow.pop %v1333
          %v1335 = vmul.f32 %v1264, 1.442695
          %v1336 = vpow.pop %v1335
          %v1337 = vmul.f32 %v1265, 1.442695
          %v1338 = vpow.pop %v1337
          %v1339 = vmul.f32 %v1266, 1.442695
          %v1340 = vpow.pop %v1339
          %v1341 = vmul.f32 %v1267, 1.442695
          %v1342 = vpow.pop %v1341
          %v1343 = vmul.f32 %v1268, 1.442695
          %v1344 = vpow.pop %v1343
          %v1345 = vmul.f32 %v1269, 1.442695
          %v1346 = vpow.pop %v1345
          %v1347 = vmul.f32 %v1270, 1.442695
          %v1348 = vpow.pop %v1347
          %v1349 = vmul.f32 %v1271, 1.442695
          %v1350 = vpow.pop %v1349
          %v1351 = vmul.f32 %v1272, 1.442695
          %v1352 = vpow.pop %v1351
          %v1353 = vmul.f32 %v1273, 1.442695
          %v1354 = vpow.pop %v1353
          %v1355 = vmul.f32 %v1274, 1.442695
          %v1356 = vpow.pop %v1355
          %v1357 = vmul.f32 %v1275, 1.442695
          %v1358 = vpow.pop %v1357
          %v1359 = vmul.f32 %v1276, 1.442695
          %v1360 = vpow.pop %v1359
          %v1361 = vmul.f32 %v1277, 1.442695
          %v1362 = vpow.pop %v1361
          %v1363 = vmul.f32 %v1278, 1.442695
          %v1364 = vpow.pop %v1363
          %v1365 = vmul.f32 %v1279, 1.442695
          %v1366 = vpow.pop %v1365
          %v1367 = vmul.f32 %v1280, 1.442695
          %v1368 = vpow.pop %v1367
          %v1369 = vmul.f32 %v1281, 1.442695
          %v1370 = vpow.pop %v1369
          %v1371 = vmul.f32 %v1282, 1.442695
          %v1372 = vpow.pop %v1371
          %v1373 = vmul.f32 %v1283, 1.442695
          %v1374 = vpow.pop %v1373
          %v1375 = vmul.f32 %v1284, 1.442695
          %v1376 = vpow.pop %v1375
          %v1377 = vmul.f32 %v1285, 1.442695
          %v1378 = vpow.pop %v1377
          %v1379 = vmul.f32 %v1286, 1.442695
          %v1380 = vpow.pop %v1379
          %v1381 = vmul.f32 %v1287, 1.442695
          %v1382 = vpow.pop %v1381
          %v1383 = vmul.f32 %v1288, 1.442695
          %v1384 = vpow.pop %v1383
          %v1385 = vmul.f32 %v1289, 1.442695
          %v1386 = vpow.pop %v1385
          %v1387 = vmul.f32 %v1290, 1.442695
          %v1388 = vpow.pop %v1387
          %v1389 = vmul.f32 %v1291, 1.442695
          %v1390 = vpow.pop %v1389
          %v1391 = vmul.f32 %v1292, 1.442695
          %v1392 = vpow.pop %v1391
          %v1393 = vmul.f32 %v1293, 1.442695
          %v1394 = vpow.pop %v1393
          %v1395 = vmul.f32 %v1294, 1.442695
          %v1396 = vpow.pop %v1395
          %v1397 = vmul.f32 %v1295, 1.442695
          %v1398 = vpow.pop %v1397
          %v1399 = vmul.f32 %v1296, 1.442695
          %v1400 = vpow.pop %v1399
          %v1401 = vmul.f32 %v1297, 1.442695
          %v1402 = vpow.pop %v1401
          %v1403 = vmul.f32 %v1298, 1.442695
          %v1404 = vpow.pop %v1403
          %v1405 = vmul.f32 %v1299, 1.442695
          %v1406 = vpow.pop %v1405
          %v1407 = vmul.f32 %v1300, 1.442695
          %v1408 = vpow.pop %v1407
          %v1409 = vmul.f32 %v1301, 1.442695
          %v1410 = vpow.pop %v1409
          %v1411 = vmul.f32 %v1302, 1.442695
          %v1412 = vpow.pop %v1411
          %v1413 = vmul.f32 %v1303, 1.442695
          %v1414 = vpow.pop %v1413
          %v1415 = vmul.f32 %v1304, 1.442695
          %v1416 = vpow.pop %v1415
          %v1417 = vmul.f32 %v1305, 1.442695
          %v1418 = vpow.pop %v1417
          %v1419 = vmul.f32 %v1306, 1.442695
          %v1420 = vpow.pop %v1419
          %v1421 = vmul.f32 %v1307, 1.442695
          %v1422 = vpow.pop %v1421
          %v1423 = vmul.f32 %v1308, 1.442695
          %v1424 = vpow.pop %v1423
          %v1425 = vmul.f32 %v1309, 1.442695
          %v1426 = vpow.pop %v1425
          %v1427 = vmul.f32 %v1310, 1.442695
          %v1428 = vpow.pop %v1427
          %v1429 = vmul.f32 %v1311, 1.442695
          %v1430 = vpow.pop %v1429
          %v1431 = vmul.f32 %v1312, 1.442695
          %v1432 = vpow.pop %v1431
          %v1433 = vmul.f32 %v1313, 1.442695
          %v1434 = vpow.pop %v1433
          %v1435 = vmul.f32 %v1314, 1.442695
          %v1436 = vpow.pop %v1435
          %v1437 = vmul.f32 %v1315, 1.442695
          %v1438 = vpow.pop %v1437
          %v1439 = vmul.f32 %v1316, 1.442695
          %v1440 = vpow.pop %v1439
          %v1441 = vmul.f32 %v1317, 1.442695
          %v1442 = vpow.pop %v1441
          %v1443 = vmul.f32 %v1318, 1.442695
          %v1444 = vpow.pop %v1443
          %v1445 = vmul.f32 %v1319, 1.442695
          %v1446 = vpow.pop %v1445
          %v1447 = vmul.f32 %v1320, 1.442695
          %v1448 = vpow.pop %v1447
          %v1449 = vadd.f32 %v1322, 1.0
          %v1450 = vadd.f32 %v1324, 1.0
          %v1451 = vadd.f32 %v1326, 1.0
          %v1452 = vadd.f32 %v1328, 1.0
          %v1453 = vadd.f32 %v1330, 1.0
          %v1454 = vadd.f32 %v1332, 1.0
          %v1455 = vadd.f32 %v1334, 1.0
          %v1456 = vadd.f32 %v1336, 1.0
          %v1457 = vadd.f32 %v1338, 1.0
          %v1458 = vadd.f32 %v1340, 1.0
          %v1459 = vadd.f32 %v1342, 1.0
          %v1460 = vadd.f32 %v1344, 1.0
          %v1461 = vadd.f32 %v1346, 1.0
          %v1462 = vadd.f32 %v1348, 1.0
          %v1463 = vadd.f32 %v1350, 1.0
          %v1464 = vadd.f32 %v1352, 1.0
          %v1465 = vadd.f32 %v1354, 1.0
          %v1466 = vadd.f32 %v1356, 1.0
          %v1467 = vadd.f32 %v1358, 1.0
          %v1468 = vadd.f32 %v1360, 1.0
          %v1469 = vadd.f32 %v1362, 1.0
          %v1470 = vadd.f32 %v1364, 1.0
          %v1471 = vadd.f32 %v1366, 1.0
          %v1472 = vadd.f32 %v1368, 1.0
          %v1473 = vadd.f32 %v1370, 1.0
          %v1474 = vadd.f32 %v1372, 1.0
          %v1475 = vadd.f32 %v1374, 1.0
          %v1476 = vadd.f32 %v1376, 1.0
          %v1477 = vadd.f32 %v1378, 1.0
          %v1478 = vadd.f32 %v1380, 1.0
          %v1479 = vadd.f32 %v1382, 1.0
          %v1480 = vadd.f32 %v1384, 1.0
          %v1481 = vadd.f32 %v1386, 1.0
          %v1482 = vadd.f32 %v1388, 1.0
          %v1483 = vadd.f32 %v1390, 1.0
          %v1484 = vadd.f32 %v1392, 1.0
          %v1485 = vadd.f32 %v1394, 1.0
          %v1486 = vadd.f32 %v1396, 1.0
          %v1487 = vadd.f32 %v1398, 1.0
          %v1488 = vadd.f32 %v1400, 1.0
          %v1489 = vadd.f32 %v1402, 1.0
          %v1490 = vadd.f32 %v1404, 1.0
          %v1491 = vadd.f32 %v1406, 1.0
          %v1492 = vadd.f32 %v1408, 1.0
          %v1493 = vadd.f32 %v1410, 1.0
          %v1494 = vadd.f32 %v1412, 1.0
          %v1495 = vadd.f32 %v1414, 1.0
          %v1496 = vadd.f32 %v1416, 1.0
          %v1497 = vadd.f32 %v1418, 1.0
          %v1498 = vadd.f32 %v1420, 1.0
          %v1499 = vadd.f32 %v1422, 1.0
          %v1500 = vadd.f32 %v1424, 1.0
          %v1501 = vadd.f32 %v1426, 1.0
          %v1502 = vadd.f32 %v1428, 1.0
          %v1503 = vadd.f32 %v1430, 1.0
          %v1504 = vadd.f32 %v1432, 1.0
          %v1505 = vadd.f32 %v1434, 1.0
          %v1506 = vadd.f32 %v1436, 1.0
          %v1507 = vadd.f32 %v1438, 1.0
          %v1508 = vadd.f32 %v1440, 1.0
          %v1509 = vadd.f32 %v1442, 1.0
          %v1510 = vadd.f32 %v1444, 1.0
          %v1511 = vadd.f32 %v1446, 1.0
          %v1512 = vadd.f32 %v1448, 1.0
          %v1513 = vrcp.pop %v1449
          %v1514 = vmul.f32 1.0, %v1513
          %v1515 = vrcp.pop %v1450
          %v1516 = vmul.f32 1.0, %v1515
          %v1517 = vrcp.pop %v1451
          %v1518 = vmul.f32 1.0, %v1517
          %v1519 = vrcp.pop %v1452
          %v1520 = vmul.f32 1.0, %v1519
          %v1521 = vrcp.pop %v1453
          %v1522 = vmul.f32 1.0, %v1521
          %v1523 = vrcp.pop %v1454
          %v1524 = vmul.f32 1.0, %v1523
          %v1525 = vrcp.pop %v1455
          %v1526 = vmul.f32 1.0, %v1525
          %v1527 = vrcp.pop %v1456
          %v1528 = vmul.f32 1.0, %v1527
          %v1529 = vrcp.pop %v1457
          %v1530 = vmul.f32 1.0, %v1529
          %v1531 = vrcp.pop %v1458
          %v1532 = vmul.f32 1.0, %v1531
          %v1533 = vrcp.pop %v1459
          %v1534 = vmul.f32 1.0, %v1533
          %v1535 = vrcp.pop %v1460
          %v1536 = vmul.f32 1.0, %v1535
          %v1537 = vrcp.pop %v1461
          %v1538 = vmul.f32 1.0, %v1537
          %v1539 = vrcp.pop %v1462
          %v1540 = vmul.f32 1.0, %v1539
          %v1541 = vrcp.pop %v1463
          %v1542 = vmul.f32 1.0, %v1541
          %v1543 = vrcp.pop %v1464
          %v1544 = vmul.f32 1.0, %v1543
          %v1545 = vrcp.pop %v1465
          %v1546 = vmul.f32 1.0, %v1545
          %v1547 = vrcp.pop %v1466
          %v1548 = vmul.f32 1.0, %v1547
          %v1549 = vrcp.pop %v1467
          %v1550 = vmul.f32 1.0, %v1549
          %v1551 = vrcp.pop %v1468
          %v1552 = vmul.f32 1.0, %v1551
          %v1553 = vrcp.pop %v1469
          %v1554 = vmul.f32 1.0, %v1553
          %v1555 = vrcp.pop %v1470
          %v1556 = vmul.f32 1.0, %v1555
          %v1557 = vrcp.pop %v1471
          %v1558 = vmul.f32 1.0, %v1557
          %v1559 = vrcp.pop %v1472
          %v1560 = vmul.f32 1.0, %v1559
          %v1561 = vrcp.pop %v1473
          %v1562 = vmul.f32 1.0, %v1561
          %v1563 = vrcp.pop %v1474
          %v1564 = vmul.f32 1.0, %v1563
          %v1565 = vrcp.pop %v1475
          %v1566 = vmul.f32 1.0, %v1565
          %v1567 = vrcp.pop %v1476
          %v1568 = vmul.f32 1.0, %v1567
          %v1569 = vrcp.pop %v1477
          %v1570 = vmul.f32 1.0, %v1569
          %v1571 = vrcp.pop %v1478
          %v1572 = vmul.f32 1.0, %v1571
          %v1573 = vrcp.pop %v1479
          %v1574 = vmul.f32 1.0, %v1573
          %v1575 = vrcp.pop %v1480
          %v1576 = vmul.f32 1.0, %v1575
          %v1577 = vrcp.pop %v1481
          %v1578 = vmul.f32 1.0, %v1577
          %v1579 = vrcp.pop %v1482
          %v1580 = vmul.f32 1.0, %v1579
          %v1581 = vrcp.pop %v1483
          %v1582 = vmul.f32 1.0, %v1581
          %v1583 = vrcp.pop %v1484
          %v1584 = vmul.f32 1.0, %v1583
          %v1585 = vrcp.pop %v1485
          %v1586 = vmul.f32 1.0, %v1585
          %v1587 = vrcp.pop %v1486
          %v1588 = vmul.f32 1.0, %v1587
          %v1589 = vrcp.pop %v1487
          %v1590 = vmul.f32 1.0, %v1589
          %v1591 = vrcp.pop %v1488
          %v1592 = vmul.f32 1.0, %v1591
          %v1593 = vrcp.pop %v1489
          %v1594 = vmul.f32 1.0, %v1593
          %v1595 = vrcp.pop %v1490
          %v1596 = vmul.f32 1.0, %v1595
          %v1597 = vrcp.pop %v1491
          %v1598 = vmul.f32 1.0, %v1597
          %v1599 = vrcp.pop %v1492
          %v1600 = vmul.f32 1.0, %v1599
          %v1601 = vrcp.pop %v1493
          %v1602 = vmul.f32 1.0, %v1601
          %v1603 = vrcp.pop %v1494
          %v1604 = vmul.f32 1.0, %v1603
          %v1605 = vrcp.pop %v1495
          %v1606 = vmul.f32 1.0, %v1605
          %v1607 = vrcp.pop %v1496
          %v1608 = vmul.f32 1.0, %v1607
          %v1609 = vrcp.pop %v1497
          %v1610 = vmul.f32 1.0, %v1609
          %v1611 = vrcp.pop %v1498
          %v1612 = vmul.f32 1.0, %v1611
          %v1613 = vrcp.pop %v1499
          %v1614 = vmul.f32 1.0, %v1613
          %v1615 = vrcp.pop %v1500
          %v1616 = vmul.f32 1.0, %v1615
          %v1617 = vrcp.pop %v1501
          %v1618 = vmul.f32 1.0, %v1617
          %v1619 = vrcp.pop %v1502
          %v1620 = vmul.f32 1.0, %v1619
          %v1621 = vrcp.pop %v1503
          %v1622 = vmul.f32 1.0, %v1621
          %v1623 = vrcp.pop %v1504
          %v1624 = vmul.f32 1.0, %v1623
          %v1625 = vrcp.pop %v1505
          %v1626 = vmul.f32 1.0, %v1625
          %v1627 = vrcp.pop %v1506
          %v1628 = vmul.f32 1.0, %v1627
          %v1629 = vrcp.pop %v1507
          %v1630 = vmul.f32 1.0, %v1629
          %v1631 = vrcp.pop %v1508
          %v1632 = vmul.f32 1.0, %v1631
          %v1633 = vrcp.pop %v1509
          %v1634 = vmul.f32 1.0, %v1633
          %v1635 = vrcp.pop %v1510
          %v1636 = vmul.f32 1.0, %v1635
          %v1637 = vrcp.pop %v1511
          %v1638 = vmul.f32 1.0, %v1637
          %v1639 = vrcp.pop %v1512
          %v1640 = vmul.f32 1.0, %v1639
          %v1641 = vpack.c.bf16 %v1516, %v1514
          %v1642 = vpack.c.bf16 %v1520, %v1518
          %v1643 = vpack.c.bf16 %v1524, %v1522
          %v1644 = vpack.c.bf16 %v1528, %v1526
          %v1645 = vpack.c.bf16 %v1532, %v1530
          %v1646 = vpack.c.bf16 %v1536, %v1534
          %v1647 = vpack.c.bf16 %v1540, %v1538
          %v1648 = vpack.c.bf16 %v1544, %v1542
          %v1649 = vpack.c.bf16 %v1548, %v1546
          %v1650 = vpack.c.bf16 %v1552, %v1550
          %v1651 = vpack.c.bf16 %v1556, %v1554
          %v1652 = vpack.c.bf16 %v1560, %v1558
          %v1653 = vpack.c.bf16 %v1564, %v1562
          %v1654 = vpack.c.bf16 %v1568, %v1566
          %v1655 = vpack.c.bf16 %v1572, %v1570
          %v1656 = vpack.c.bf16 %v1576, %v1574
          %v1657 = vpack.c.bf16 %v1580, %v1578
          %v1658 = vpack.c.bf16 %v1584, %v1582
          %v1659 = vpack.c.bf16 %v1588, %v1586
          %v1660 = vpack.c.bf16 %v1592, %v1590
          %v1661 = vpack.c.bf16 %v1596, %v1594
          %v1662 = vpack.c.bf16 %v1600, %v1598
          %v1663 = vpack.c.bf16 %v1604, %v1602
          %v1664 = vpack.c.bf16 %v1608, %v1606
          %v1665 = vpack.c.bf16 %v1612, %v1610
          %v1666 = vpack.c.bf16 %v1616, %v1614
          %v1667 = vpack.c.bf16 %v1620, %v1618
          %v1668 = vpack.c.bf16 %v1624, %v1622
          %v1669 = vpack.c.bf16 %v1628, %v1626
          %v1670 = vpack.c.bf16 %v1632, %v1630
          %v1671 = vpack.c.bf16 %v1636, %v1634
          %v1672 = vpack.c.bf16 %v1640, %v1638
          %v1705 = vunpack.c.l.b16 %v1641
          %v1706 = vunpack.c.h.b16 %v1641
          %v1707 = vunpack.c.l.b16 %v1642
          %v1708 = vunpack.c.h.b16 %v1642
          %v1709 = vunpack.c.l.b16 %v1643
          %v1710 = vunpack.c.h.b16 %v1643
          %v1711 = vunpack.c.l.b16 %v1644
          %v1712 = vunpack.c.h.b16 %v1644
          %v1713 = vunpack.c.l.b16 %v1645
          %v1714 = vunpack.c.h.b16 %v1645
          %v1715 = vunpack.c.l.b16 %v1646
          %v1716 = vunpack.c.h.b16 %v1646
          %v1717 = vunpack.c.l.b16 %v1647
          %v1718 = vunpack.c.h.b16 %v1647
          %v1719 = vunpack.c.l.b16 %v1648
          %v1720 = vunpack.c.h.b16 %v1648
          %v1721 = vunpack.c.l.b16 %v1649
          %v1722 = vunpack.c.h.b16 %v1649
          %v1723 = vunpack.c.l.b16 %v1650
          %v1724 = vunpack.c.h.b16 %v1650
          %v1725 = vunpack.c.l.b16 %v1651
          %v1726 = vunpack.c.h.b16 %v1651
          %v1727 = vunpack.c.l.b16 %v1652
          %v1728 = vunpack.c.h.b16 %v1652
          %v1729 = vunpack.c.l.b16 %v1653
          %v1730 = vunpack.c.h.b16 %v1653
          %v1731 = vunpack.c.l.b16 %v1654
          %v1732 = vunpack.c.h.b16 %v1654
          %v1733 = vunpack.c.l.b16 %v1655
          %v1734 = vunpack.c.h.b16 %v1655
          %v1735 = vunpack.c.l.b16 %v1656
          %v1736 = vunpack.c.h.b16 %v1656
          %v1737 = vunpack.c.l.b16 %v1657
          %v1738 = vunpack.c.h.b16 %v1657
          %v1739 = vunpack.c.l.b16 %v1658
          %v1740 = vunpack.c.h.b16 %v1658
          %v1741 = vunpack.c.l.b16 %v1659
          %v1742 = vunpack.c.h.b16 %v1659
          %v1743 = vunpack.c.l.b16 %v1660
          %v1744 = vunpack.c.h.b16 %v1660
          %v1745 = vunpack.c.l.b16 %v1661
          %v1746 = vunpack.c.h.b16 %v1661
          %v1747 = vunpack.c.l.b16 %v1662
          %v1748 = vunpack.c.h.b16 %v1662
          %v1749 = vunpack.c.l.b16 %v1663
          %v1750 = vunpack.c.h.b16 %v1663
          %v1751 = vunpack.c.l.b16 %v1664
          %v1752 = vunpack.c.h.b16 %v1664
          %v1753 = vunpack.c.l.b16 %v1665
          %v1754 = vunpack.c.h.b16 %v1665
          %v1755 = vunpack.c.l.b16 %v1666
          %v1756 = vunpack.c.h.b16 %v1666
          %v1757 = vunpack.c.l.b16 %v1667
          %v1758 = vunpack.c.h.b16 %v1667
          %v1759 = vunpack.c.l.b16 %v1668
          %v1760 = vunpack.c.h.b16 %v1668
          %v1761 = vunpack.c.l.b16 %v1669
          %v1762 = vunpack.c.h.b16 %v1669
          %v1763 = vunpack.c.l.b16 %v1670
          %v1764 = vunpack.c.h.b16 %v1670
          %v1765 = vunpack.c.l.b16 %v1671
          %v1766 = vunpack.c.h.b16 %v1671
          %v1767 = vunpack.c.l.b16 %v1672
          %v1768 = vunpack.c.h.b16 %v1672
          %v1769 = vpack.c.b16 %v1705, %v1705
          %v1770 = vpack.c.b16 %v1706, %v1706
          %v1771 = vpack.c.b16 %v1707, %v1707
          %v1772 = vpack.c.b16 %v1708, %v1708
          %v1773 = vpack.c.b16 %v1709, %v1709
          %v1774 = vpack.c.b16 %v1710, %v1710
          %v1775 = vpack.c.b16 %v1711, %v1711
          %v1776 = vpack.c.b16 %v1712, %v1712
          %v1777 = vpack.c.b16 %v1713, %v1713
          %v1778 = vpack.c.b16 %v1714, %v1714
          %v1779 = vpack.c.b16 %v1715, %v1715
          %v1780 = vpack.c.b16 %v1716, %v1716
          %v1781 = vpack.c.b16 %v1717, %v1717
          %v1782 = vpack.c.b16 %v1718, %v1718
          %v1783 = vpack.c.b16 %v1719, %v1719
          %v1784 = vpack.c.b16 %v1720, %v1720
          %v1785 = vpack.c.b16 %v1721, %v1721
          %v1786 = vpack.c.b16 %v1722, %v1722
          %v1787 = vpack.c.b16 %v1723, %v1723
          %v1788 = vpack.c.b16 %v1724, %v1724
          %v1789 = vpack.c.b16 %v1725, %v1725
          %v1790 = vpack.c.b16 %v1726, %v1726
          %v1791 = vpack.c.b16 %v1727, %v1727
          %v1792 = vpack.c.b16 %v1728, %v1728
          %v1793 = vpack.c.b16 %v1729, %v1729
          %v1794 = vpack.c.b16 %v1730, %v1730
          %v1795 = vpack.c.b16 %v1731, %v1731
          %v1796 = vpack.c.b16 %v1732, %v1732
          %v1797 = vpack.c.b16 %v1733, %v1733
          %v1798 = vpack.c.b16 %v1734, %v1734
          %v1799 = vpack.c.b16 %v1735, %v1735
          %v1800 = vpack.c.b16 %v1736, %v1736
          %v1801 = vpack.c.b16 %v1737, %v1737
          %v1802 = vpack.c.b16 %v1738, %v1738
          %v1803 = vpack.c.b16 %v1739, %v1739
          %v1804 = vpack.c.b16 %v1740, %v1740
          %v1805 = vpack.c.b16 %v1741, %v1741
          %v1806 = vpack.c.b16 %v1742, %v1742
          %v1807 = vpack.c.b16 %v1743, %v1743
          %v1808 = vpack.c.b16 %v1744, %v1744
          %v1809 = vpack.c.b16 %v1745, %v1745
          %v1810 = vpack.c.b16 %v1746, %v1746
          %v1811 = vpack.c.b16 %v1747, %v1747
          %v1812 = vpack.c.b16 %v1748, %v1748
          %v1813 = vpack.c.b16 %v1749, %v1749
          %v1814 = vpack.c.b16 %v1750, %v1750
          %v1815 = vpack.c.b16 %v1751, %v1751
          %v1816 = vpack.c.b16 %v1752, %v1752
          %v1817 = vpack.c.b16 %v1753, %v1753
          %v1818 = vpack.c.b16 %v1754, %v1754
          %v1819 = vpack.c.b16 %v1755, %v1755
          %v1820 = vpack.c.b16 %v1756, %v1756
          %v1821 = vpack.c.b16 %v1757, %v1757
          %v1822 = vpack.c.b16 %v1758, %v1758
          %v1823 = vpack.c.b16 %v1759, %v1759
          %v1824 = vpack.c.b16 %v1760, %v1760
          %v1825 = vpack.c.b16 %v1761, %v1761
          %v1826 = vpack.c.b16 %v1762, %v1762
          %v1827 = vpack.c.b16 %v1763, %v1763
          %v1828 = vpack.c.b16 %v1764, %v1764
          %v1829 = vpack.c.b16 %v1765, %v1765
          %v1830 = vpack.c.b16 %v1766, %v1766
          %v1831 = vpack.c.b16 %v1767, %v1767
          %v1832 = vpack.c.b16 %v1768, %v1768
          %vm1897 = vcmask 257024
          %1898 = vst.msk [vmem:[%s241] sm:$0xf] %vm1897, %v1769
          %1899 = vst.msk [vmem:[%s241 + $0x4] sm:$0xf] %vm1897, %v1770
          %1900 = vst.msk [vmem:[%s241 + $0x8] sm:$0xf] %vm1897, %v1771
          %1901 = vst.msk [vmem:[%s241 + $0xc] sm:$0xf] %vm1897, %v1772
          %1902 = vst.msk [vmem:[%s241 + $0x10] sm:$0xf] %vm1897, %v1773
          %1903 = vst.msk [vmem:[%s241 + $0x14] sm:$0xf] %vm1897, %v1774
          %1904 = vst.msk [vmem:[%s241 + $0x18] sm:$0xf] %vm1897, %v1775
          %1905 = vst.msk [vmem:[%s241 + $0x1c] sm:$0xf] %vm1897, %v1776
          %1906 = vst.msk [vmem:[%s241 + $0x20] sm:$0xf] %vm1897, %v1777
          %1907 = vst.msk [vmem:[%s241 + $0x24] sm:$0xf] %vm1897, %v1778
          %1908 = vst.msk [vmem:[%s241 + $0x28] sm:$0xf] %vm1897, %v1779
          %1909 = vst.msk [vmem:[%s241 + $0x2c] sm:$0xf] %vm1897, %v1780
          %1910 = vst.msk [vmem:[%s241 + $0x30] sm:$0xf] %vm1897, %v1781
          %1911 = vst.msk [vmem:[%s241 + $0x34] sm:$0xf] %vm1897, %v1782
          %1912 = vst.msk [vmem:[%s241 + $0x38] sm:$0xf] %vm1897, %v1783
          %1913 = vst.msk [vmem:[%s241 + $0x3c] sm:$0xf] %vm1897, %v1784
          %1914 = vst.msk [vmem:[%s241 + $0x40] sm:$0xf] %vm1897, %v1785
          %1915 = vst.msk [vmem:[%s241 + $0x44] sm:$0xf] %vm1897, %v1786
          %1916 = vst.msk [vmem:[%s241 + $0x48] sm:$0xf] %vm1897, %v1787
          %1917 = vst.msk [vmem:[%s241 + $0x4c] sm:$0xf] %vm1897, %v1788
          %1918 = vst.msk [vmem:[%s241 + $0x50] sm:$0xf] %vm1897, %v1789
          %1919 = vst.msk [vmem:[%s241 + $0x54] sm:$0xf] %vm1897, %v1790
          %1920 = vst.msk [vmem:[%s241 + $0x58] sm:$0xf] %vm1897, %v1791
          %1921 = vst.msk [vmem:[%s241 + $0x5c] sm:$0xf] %vm1897, %v1792
          %1922 = vst.msk [vmem:[%s241 + $0x60] sm:$0xf] %vm1897, %v1793
          %1923 = vst.msk [vmem:[%s241 + $0x64] sm:$0xf] %vm1897, %v1794
          %1924 = vst.msk [vmem:[%s241 + $0x68] sm:$0xf] %vm1897, %v1795
          %1925 = vst.msk [vmem:[%s241 + $0x6c] sm:$0xf] %vm1897, %v1796
          %1926 = vst.msk [vmem:[%s241 + $0x70] sm:$0xf] %vm1897, %v1797
          %1927 = vst.msk [vmem:[%s241 + $0x74] sm:$0xf] %vm1897, %v1798
          %1928 = vst.msk [vmem:[%s241 + $0x78] sm:$0xf] %vm1897, %v1799
          %1929 = vst.msk [vmem:[%s241 + $0x7c] sm:$0xf] %vm1897, %v1800
          %1930 = vst.msk [vmem:[%s241 + $0x80] sm:$0xf] %vm1897, %v1801
          %1931 = vst.msk [vmem:[%s241 + $0x84] sm:$0xf] %vm1897, %v1802
          %1932 = vst.msk [vmem:[%s241 + $0x88] sm:$0xf] %vm1897, %v1803
          %1933 = vst.msk [vmem:[%s241 + $0x8c] sm:$0xf] %vm1897, %v1804
          %1934 = vst.msk [vmem:[%s241 + $0x90] sm:$0xf] %vm1897, %v1805
          %1935 = vst.msk [vmem:[%s241 + $0x94] sm:$0xf] %vm1897, %v1806
          %1936 = vst.msk [vmem:[%s241 + $0x98] sm:$0xf] %vm1897, %v1807
          %1937 = vst.msk [vmem:[%s241 + $0x9c] sm:$0xf] %vm1897, %v1808
          %1938 = vst.msk [vmem:[%s241 + $0xa0] sm:$0xf] %vm1897, %v1809
          %1939 = vst.msk [vmem:[%s241 + $0xa4] sm:$0xf] %vm1897, %v1810
          %1940 = vst.msk [vmem:[%s241 + $0xa8] sm:$0xf] %vm1897, %v1811
          %1941 = vst.msk [vmem:[%s241 + $0xac] sm:$0xf] %vm1897, %v1812
          %1942 = vst.msk [vmem:[%s241 + $0xb0] sm:$0xf] %vm1897, %v1813
          %1943 = vst.msk [vmem:[%s241 + $0xb4] sm:$0xf] %vm1897, %v1814
          %1944 = vst.msk [vmem:[%s241 + $0xb8] sm:$0xf] %vm1897, %v1815
          %1945 = vst.msk [vmem:[%s241 + $0xbc] sm:$0xf] %vm1897, %v1816
          %1946 = vst.msk [vmem:[%s241 + $0xc0] sm:$0xf] %vm1897, %v1817
          %1947 = vst.msk [vmem:[%s241 + $0xc4] sm:$0xf] %vm1897, %v1818
          %1948 = vst.msk [vmem:[%s241 + $0xc8] sm:$0xf] %vm1897, %v1819
          %1949 = vst.msk [vmem:[%s241 + $0xcc] sm:$0xf] %vm1897, %v1820
          %1950 = vst.msk [vmem:[%s241 + $0xd0] sm:$0xf] %vm1897, %v1821
          %1951 = vst.msk [vmem:[%s241 + $0xd4] sm:$0xf] %vm1897, %v1822
          %1952 = vst.msk [vmem:[%s241 + $0xd8] sm:$0xf] %vm1897, %v1823
          %1953 = vst.msk [vmem:[%s241 + $0xdc] sm:$0xf] %vm1897, %v1824
          %1954 = vst.msk [vmem:[%s241 + $0xe0] sm:$0xf] %vm1897, %v1825
          %1955 = vst.msk [vmem:[%s241 + $0xe4] sm:$0xf] %vm1897, %v1826
          %1956 = vst.msk [vmem:[%s241 + $0xe8] sm:$0xf] %vm1897, %v1827
          %1957 = vst.msk [vmem:[%s241 + $0xec] sm:$0xf] %vm1897, %v1828
          %1958 = vst.msk [vmem:[%s241 + $0xf0] sm:$0xf] %vm1897, %v1829
          %1959 = vst.msk [vmem:[%s241 + $0xf4] sm:$0xf] %vm1897, %v1830
          %1960 = vst.msk [vmem:[%s241 + $0xf8] sm:$0xf] %vm1897, %v1831
          %1961 = vst.msk [vmem:[%s241 + $0xfc] sm:$0xf] %vm1897, %v1832
          %v1962 = vld [vmem:[#allocation9] sm:$0xff]
          %v1963 = vld [vmem:[#allocation9 + $0x8] sm:$0xff]
          %v1964 = vld [vmem:[#allocation9 + $0x10] sm:$0xff]
          %v1965 = vld [vmem:[#allocation9 + $0x18] sm:$0xff]
          %v1966 = vld [vmem:[#allocation9 + $0x20] sm:$0xff]
          %v1967 = vld [vmem:[#allocation9 + $0x28] sm:$0xff]
          %v1968 = vld [vmem:[#allocation9 + $0x30] sm:$0xff]
          %v1969 = vld [vmem:[#allocation9 + $0x38] sm:$0xff]
          %v1970 = vld [vmem:[#allocation9 + $0x40] sm:$0xff]
          %v1971 = vld [vmem:[#allocation9 + $0x48] sm:$0xff]
          %v1972 = vld [vmem:[#allocation9 + $0x50] sm:$0xff]
          %v1973 = vld [vmem:[#allocation9 + $0x58] sm:$0xff]
          %v1974 = vld [vmem:[#allocation9 + $0x60] sm:$0xff]
          %v1975 = vld [vmem:[#allocation9 + $0x68] sm:$0xff]
          %v1976 = vld [vmem:[#allocation9 + $0x70] sm:$0xff]
          %v1977 = vld [vmem:[#allocation9 + $0x78] sm:$0xff]
          %v1978 = vld [vmem:[#allocation9 + $0x80] sm:$0xff]
          %v1979 = vld [vmem:[#allocation9 + $0x88] sm:$0xff]
          %v1980 = vld [vmem:[#allocation9 + $0x90] sm:$0xff]
          %v1981 = vld [vmem:[#allocation9 + $0x98] sm:$0xff]
          %v1982 = vld [vmem:[#allocation9 + $0xa0] sm:$0xff]
          %v1983 = vld [vmem:[#allocation9 + $0xa8] sm:$0xff]
          %v1984 = vld [vmem:[#allocation9 + $0xb0] sm:$0xff]
          %v1985 = vld [vmem:[#allocation9 + $0xb8] sm:$0xff]
          %v1986 = vld [vmem:[#allocation9 + $0xc0] sm:$0xff]
          %v1987 = vld [vmem:[#allocation9 + $0xc8] sm:$0xff]
          %v1988 = vld [vmem:[#allocation9 + $0xd0] sm:$0xff]
          %v1989 = vld [vmem:[#allocation9 + $0xd8] sm:$0xff]
          %v1990 = vld [vmem:[#allocation9 + $0xe0] sm:$0xff]
          %v1991 = vld [vmem:[#allocation9 + $0xe8] sm:$0xff]
          %v1992 = vld [vmem:[#allocation9 + $0xf0] sm:$0xff]
          %v1993 = vld [vmem:[#allocation9 + $0xf8] sm:$0xff]
          %v1994 = vld [vmem:[#allocation9 + $0x100] sm:$0xff]
          %v1995 = vld [vmem:[#allocation9 + $0x108] sm:$0xff]
          %v1996 = vld [vmem:[#allocation9 + $0x110] sm:$0xff]
          %v1997 = vld [vmem:[#allocation9 + $0x118] sm:$0xff]
          %v1998 = vld [vmem:[#allocation9 + $0x120] sm:$0xff]
          %v1999 = vld [vmem:[#allocation9 + $0x128] sm:$0xff]
          %v2000 = vld [vmem:[#allocation9 + $0x130] sm:$0xff]
          %v2001 = vld [vmem:[#allocation9 + $0x138] sm:$0xff]
          %v2002 = vld [vmem:[#allocation9 + $0x140] sm:$0xff]
          %v2003 = vld [vmem:[#allocation9 + $0x148] sm:$0xff]
          %v2004 = vld [vmem:[#allocation9 + $0x150] sm:$0xff]
          %v2005 = vld [vmem:[#allocation9 + $0x158] sm:$0xff]
          %v2006 = vld [vmem:[#allocation9 + $0x160] sm:$0xff]
          %v2007 = vld [vmem:[#allocation9 + $0x168] sm:$0xff]
          %v2008 = vld [vmem:[#allocation9 + $0x170] sm:$0xff]
          %v2009 = vld [vmem:[#allocation9 + $0x178] sm:$0xff]
          %v2010 = vld [vmem:[#allocation9 + $0x180] sm:$0xff]
          %v2011 = vld [vmem:[#allocation9 + $0x188] sm:$0xff]
          %v2012 = vld [vmem:[#allocation9 + $0x190] sm:$0xff]
          %v2013 = vld [vmem:[#allocation9 + $0x198] sm:$0xff]
          %v2014 = vld [vmem:[#allocation9 + $0x1a0] sm:$0xff]
          %v2015 = vld [vmem:[#allocation9 + $0x1a8] sm:$0xff]
          %v2016 = vld [vmem:[#allocation9 + $0x1b0] sm:$0xff]
          %v2017 = vld [vmem:[#allocation9 + $0x1b8] sm:$0xff]
          %v2018 = vld [vmem:[#allocation9 + $0x1c0] sm:$0xff]
          %v2019 = vld [vmem:[#allocation9 + $0x1c8] sm:$0xff]
          %v2020 = vld [vmem:[#allocation9 + $0x1d0] sm:$0xff]
          %v2021 = vld [vmem:[#allocation9 + $0x1d8] sm:$0xff]
          %v2022 = vld [vmem:[#allocation9 + $0x1e0] sm:$0xff]
          %v2023 = vld [vmem:[#allocation9 + $0x1e8] sm:$0xff]
          %v2024 = vld [vmem:[#allocation9 + $0x1f0] sm:$0xff]
          %v2025 = vld [vmem:[#allocation9 + $0x1f8] sm:$0xff]
          %v2026 = vadd.f32 %v1962, %v1193
          %v2027 = vadd.f32 %v1963, %v1194
          %v2028 = vadd.f32 %v1964, %v1195
          %v2029 = vadd.f32 %v1965, %v1196
          %v2030 = vadd.f32 %v1966, %v1197
          %v2031 = vadd.f32 %v1967, %v1198
          %v2032 = vadd.f32 %v1968, %v1199
          %v2033 = vadd.f32 %v1969, %v1200
          %v2034 = vadd.f32 %v1970, %v1201
          %v2035 = vadd.f32 %v1971, %v1202
          %v2036 = vadd.f32 %v1972, %v1203
          %v2037 = vadd.f32 %v1973, %v1204
          %v2038 = vadd.f32 %v1974, %v1205
          %v2039 = vadd.f32 %v1975, %v1206
          %v2040 = vadd.f32 %v1976, %v1207
          %v2041 = vadd.f32 %v1977, %v1208
          %v2042 = vadd.f32 %v1978, %v1209
          %v2043 = vadd.f32 %v1979, %v1210
          %v2044 = vadd.f32 %v1980, %v1211
          %v2045 = vadd.f32 %v1981, %v1212
          %v2046 = vadd.f32 %v1982, %v1213
          %v2047 = vadd.f32 %v1983, %v1214
          %v2048 = vadd.f32 %v1984, %v1215
          %v2049 = vadd.f32 %v1985, %v1216
          %v2050 = vadd.f32 %v1986, %v1217
          %v2051 = vadd.f32 %v1987, %v1218
          %v2052 = vadd.f32 %v1988, %v1219
          %v2053 = vadd.f32 %v1989, %v1220
          %v2054 = vadd.f32 %v1990, %v1221
          %v2055 = vadd.f32 %v1991, %v1222
          %v2056 = vadd.f32 %v1992, %v1223
          %v2057 = vadd.f32 %v1993, %v1224
          %v2058 = vadd.f32 %v1994, %v1225
          %v2059 = vadd.f32 %v1995, %v1226
          %v2060 = vadd.f32 %v1996, %v1227
          %v2061 = vadd.f32 %v1997, %v1228
          %v2062 = vadd.f32 %v1998, %v1229
          %v2063 = vadd.f32 %v1999, %v1230
          %v2064 = vadd.f32 %v2000, %v1231
          %v2065 = vadd.f32 %v2001, %v1232
          %v2066 = vadd.f32 %v2002, %v1233
          %v2067 = vadd.f32 %v2003, %v1234
          %v2068 = vadd.f32 %v2004, %v1235
          %v2069 = vadd.f32 %v2005, %v1236
          %v2070 = vadd.f32 %v2006, %v1237
          %v2071 = vadd.f32 %v2007, %v1238
          %v2072 = vadd.f32 %v2008, %v1239
          %v2073 = vadd.f32 %v2009, %v1240
          %v2074 = vadd.f32 %v2010, %v1241
          %v2075 = vadd.f32 %v2011, %v1242
          %v2076 = vadd.f32 %v2012, %v1243
          %v2077 = vadd.f32 %v2013, %v1244
          %v2078 = vadd.f32 %v2014, %v1245
          %v2079 = vadd.f32 %v2015, %v1246
          %v2080 = vadd.f32 %v2016, %v1247
          %v2081 = vadd.f32 %v2017, %v1248
          %v2082 = vadd.f32 %v2018, %v1249
          %v2083 = vadd.f32 %v2019, %v1250
          %v2084 = vadd.f32 %v2020, %v1251
          %v2085 = vadd.f32 %v2021, %v1252
          %v2086 = vadd.f32 %v2022, %v1253
          %v2087 = vadd.f32 %v2023, %v1254
          %v2088 = vadd.f32 %v2024, %v1255
          %v2089 = vadd.f32 %v2025, %v1256
          %2090 = vst.msk [vmem:[#allocation9] sm:$0xff] %vm1125, %v2026
          %2091 = vst.msk [vmem:[#allocation9 + $0x8] sm:$0xff] %vm1125, %v2027
          %2092 = vst.msk [vmem:[#allocation9 + $0x10] sm:$0xff] %vm1125, %v2028
          %2093 = vst.msk [vmem:[#allocation9 + $0x18] sm:$0xff] %vm1125, %v2029
          %2094 = vst.msk [vmem:[#allocation9 + $0x20] sm:$0xff] %vm1125, %v2030
          %2095 = vst.msk [vmem:[#allocation9 + $0x28] sm:$0xff] %vm1125, %v2031
          %2096 = vst.msk [vmem:[#allocation9 + $0x30] sm:$0xff] %vm1125, %v2032
          %2097 = vst.msk [vmem:[#allocation9 + $0x38] sm:$0xff] %vm1125, %v2033
          %2098 = vst.msk [vmem:[#allocation9 + $0x40] sm:$0xff] %vm1125, %v2034
          %2099 = vst.msk [vmem:[#allocation9 + $0x48] sm:$0xff] %vm1125, %v2035
          %2100 = vst.msk [vmem:[#allocation9 + $0x50] sm:$0xff] %vm1125, %v2036
          %2101 = vst.msk [vmem:[#allocation9 + $0x58] sm:$0xff] %vm1125, %v2037
          %2102 = vst.msk [vmem:[#allocation9 + $0x60] sm:$0xff] %vm1125, %v2038
          %2103 = vst.msk [vmem:[#allocation9 + $0x68] sm:$0xff] %vm1125, %v2039
          %2104 = vst.msk [vmem:[#allocation9 + $0x70] sm:$0xff] %vm1125, %v2040
          %2105 = vst.msk [vmem:[#allocation9 + $0x78] sm:$0xff] %vm1125, %v2041
          %2106 = vst.msk [vmem:[#allocation9 + $0x80] sm:$0xff] %vm1125, %v2042
          %2107 = vst.msk [vmem:[#allocation9 + $0x88] sm:$0xff] %vm1125, %v2043
          %2108 = vst.msk [vmem:[#allocation9 + $0x90] sm:$0xff] %vm1125, %v2044
          %2109 = vst.msk [vmem:[#allocation9 + $0x98] sm:$0xff] %vm1125, %v2045
          %2110 = vst.msk [vmem:[#allocation9 + $0xa0] sm:$0xff] %vm1125, %v2046
          %2111 = vst.msk [vmem:[#allocation9 + $0xa8] sm:$0xff] %vm1125, %v2047
          %2112 = vst.msk [vmem:[#allocation9 + $0xb0] sm:$0xff] %vm1125, %v2048
          %2113 = vst.msk [vmem:[#allocation9 + $0xb8] sm:$0xff] %vm1125, %v2049
          %2114 = vst.msk [vmem:[#allocation9 + $0xc0] sm:$0xff] %vm1125, %v2050
          %2115 = vst.msk [vmem:[#allocation9 + $0xc8] sm:$0xff] %vm1125, %v2051
          %2116 = vst.msk [vmem:[#allocation9 + $0xd0] sm:$0xff] %vm1125, %v2052
          %2117 = vst.msk [vmem:[#allocation9 + $0xd8] sm:$0xff] %vm1125, %v2053
          %2118 = vst.msk [vmem:[#allocation9 + $0xe0] sm:$0xff] %vm1125, %v2054
          %2119 = vst.msk [vmem:[#allocation9 + $0xe8] sm:$0xff] %vm1125, %v2055
          %2120 = vst.msk [vmem:[#allocation9 + $0xf0] sm:$0xff] %vm1125, %v2056
          %2121 = vst.msk [vmem:[#allocation9 + $0xf8] sm:$0xff] %vm1125, %v2057
          %2122 = vst.msk [vmem:[#allocation9 + $0x100] sm:$0xff] %vm1125, %v2058
          %2123 = vst.msk [vmem:[#allocation9 + $0x108] sm:$0xff] %vm1125, %v2059
          %2124 = vst.msk [vmem:[#allocation9 + $0x110] sm:$0xff] %vm1125, %v2060
          %2125 = vst.msk [vmem:[#allocation9 + $0x118] sm:$0xff] %vm1125, %v2061
          %2126 = vst.msk [vmem:[#allocation9 + $0x120] sm:$0xff] %vm1125, %v2062
          %2127 = vst.msk [vmem:[#allocation9 + $0x128] sm:$0xff] %vm1125, %v2063
          %2128 = vst.msk [vmem:[#allocation9 + $0x130] sm:$0xff] %vm1125, %v2064
          %2129 = vst.msk [vmem:[#allocation9 + $0x138] sm:$0xff] %vm1125, %v2065
          %2130 = vst.msk [vmem:[#allocation9 + $0x140] sm:$0xff] %vm1125, %v2066
          %2131 = vst.msk [vmem:[#allocation9 + $0x148] sm:$0xff] %vm1125, %v2067
          %2132 = vst.msk [vmem:[#allocation9 + $0x150] sm:$0xff] %vm1125, %v2068
          %2133 = vst.msk [vmem:[#allocation9 + $0x158] sm:$0xff] %vm1125, %v2069
          %2134 = vst.msk [vmem:[#allocation9 + $0x160] sm:$0xff] %vm1125, %v2070
          %2135 = vst.msk [vmem:[#allocation9 + $0x168] sm:$0xff] %vm1125, %v2071
          %2136 = vst.msk [vmem:[#allocation9 + $0x170] sm:$0xff] %vm1125, %v2072
          %2137 = vst.msk [vmem:[#allocation9 + $0x178] sm:$0xff] %vm1125, %v2073
          %2138 = vst.msk [vmem:[#allocation9 + $0x180] sm:$0xff] %vm1125, %v2074
          %2139 = vst.msk [vmem:[#allocation9 + $0x188] sm:$0xff] %vm1125, %v2075
          %2140 = vst.msk [vmem:[#allocation9 + $0x190] sm:$0xff] %vm1125, %v2076
          %2141 = vst.msk [vmem:[#allocation9 + $0x198] sm:$0xff] %vm1125, %v2077
          %2142 = vst.msk [vmem:[#allocation9 + $0x1a0] sm:$0xff] %vm1125, %v2078
          %2143 = vst.msk [vmem:[#allocation9 + $0x1a8] sm:$0xff] %vm1125, %v2079
          %2144 = vst.msk [vmem:[#allocation9 + $0x1b0] sm:$0xff] %vm1125, %v2080
          %2145 = vst.msk [vmem:[#allocation9 + $0x1b8] sm:$0xff] %vm1125, %v2081
          %2146 = vst.msk [vmem:[#allocation9 + $0x1c0] sm:$0xff] %vm1125, %v2082
          %2147 = vst.msk [vmem:[#allocation9 + $0x1c8] sm:$0xff] %vm1125, %v2083
          %2148 = vst.msk [vmem:[#allocation9 + $0x1d0] sm:$0xff] %vm1125, %v2084
          %2149 = vst.msk [vmem:[#allocation9 + $0x1d8] sm:$0xff] %vm1125, %v2085
          %2150 = vst.msk [vmem:[#allocation9 + $0x1e0] sm:$0xff] %vm1125, %v2086
          %2151 = vst.msk [vmem:[#allocation9 + $0x1e8] sm:$0xff] %vm1125, %v2087
          %2152 = vst.msk [vmem:[#allocation9 + $0x1f0] sm:$0xff] %vm1125, %v2088
          %2153 = vst.msk [vmem:[#allocation9 + $0x1f8] sm:$0xff] %vm1125, %v2089
        $region48: #{gcn_layer_forward.3} parent=27 // pred_fallthru
          _
        %p2154 = scmp.eq.s32.totalorder %s29, 2
        %p2155 = pnand %p2154, %p250
        %p2156 = pneg %p2155
        // Predicated region
        $region49: #{gcn_layer_forward.3} parent=27 // pred_check
          _
        $region50: #{gcn_layer_forward.3} parent=27 // pred_check_branch
          %2158 = sbr.rel (%p2155) target = $region52
        $region51: #{gcn_layer_forward.3} parent=27 // pred_region
          %v2159 = vld [vmem:[#allocation9] sm:$0xff]
          %v2160 = vld [vmem:[#allocation9 + $0x8] sm:$0xff]
          %v2161 = vld [vmem:[#allocation9 + $0x10] sm:$0xff]
          %v2162 = vld [vmem:[#allocation9 + $0x18] sm:$0xff]
          %v2163 = vld [vmem:[#allocation9 + $0x20] sm:$0xff]
          %v2164 = vld [vmem:[#allocation9 + $0x28] sm:$0xff]
          %v2165 = vld [vmem:[#allocation9 + $0x30] sm:$0xff]
          %v2166 = vld [vmem:[#allocation9 + $0x38] sm:$0xff]
          %v2167 = vld [vmem:[#allocation9 + $0x40] sm:$0xff]
          %v2168 = vld [vmem:[#allocation9 + $0x48] sm:$0xff]
          %v2169 = vld [vmem:[#allocation9 + $0x50] sm:$0xff]
          %v2170 = vld [vmem:[#allocation9 + $0x58] sm:$0xff]
          %v2171 = vld [vmem:[#allocation9 + $0x60] sm:$0xff]
          %v2172 = vld [vmem:[#allocation9 + $0x68] sm:$0xff]
          %v2173 = vld [vmem:[#allocation9 + $0x70] sm:$0xff]
          %v2174 = vld [vmem:[#allocation9 + $0x78] sm:$0xff]
          %v2175 = vld [vmem:[#allocation9 + $0x80] sm:$0xff]
          %v2176 = vld [vmem:[#allocation9 + $0x88] sm:$0xff]
          %v2177 = vld [vmem:[#allocation9 + $0x90] sm:$0xff]
          %v2178 = vld [vmem:[#allocation9 + $0x98] sm:$0xff]
          %v2179 = vld [vmem:[#allocation9 + $0xa0] sm:$0xff]
          %v2180 = vld [vmem:[#allocation9 + $0xa8] sm:$0xff]
          %v2181 = vld [vmem:[#allocation9 + $0xb0] sm:$0xff]
          %v2182 = vld [vmem:[#allocation9 + $0xb8] sm:$0xff]
          %v2183 = vld [vmem:[#allocation9 + $0xc0] sm:$0xff]
          %v2184 = vld [vmem:[#allocation9 + $0xc8] sm:$0xff]
          %v2185 = vld [vmem:[#allocation9 + $0xd0] sm:$0xff]
          %v2186 = vld [vmem:[#allocation9 + $0xd8] sm:$0xff]
          %v2187 = vld [vmem:[#allocation9 + $0xe0] sm:$0xff]
          %v2188 = vld [vmem:[#allocation9 + $0xe8] sm:$0xff]
          %v2189 = vld [vmem:[#allocation9 + $0xf0] sm:$0xff]
          %v2190 = vld [vmem:[#allocation9 + $0xf8] sm:$0xff]
          %v2191 = vld [vmem:[#allocation9 + $0x100] sm:$0xff]
          %v2192 = vld [vmem:[#allocation9 + $0x108] sm:$0xff]
          %v2193 = vld [vmem:[#allocation9 + $0x110] sm:$0xff]
          %v2194 = vld [vmem:[#allocation9 + $0x118] sm:$0xff]
          %v2195 = vld [vmem:[#allocation9 + $0x120] sm:$0xff]
          %v2196 = vld [vmem:[#allocation9 + $0x128] sm:$0xff]
          %v2197 = vld [vmem:[#allocation9 + $0x130] sm:$0xff]
          %v2198 = vld [vmem:[#allocation9 + $0x138] sm:$0xff]
          %v2199 = vld [vmem:[#allocation9 + $0x140] sm:$0xff]
          %v2200 = vld [vmem:[#allocation9 + $0x148] sm:$0xff]
          %v2201 = vld [vmem:[#allocation9 + $0x150] sm:$0xff]
          %v2202 = vld [vmem:[#allocation9 + $0x158] sm:$0xff]
          %v2203 = vld [vmem:[#allocation9 + $0x160] sm:$0xff]
          %v2204 = vld [vmem:[#allocation9 + $0x168] sm:$0xff]
          %v2205 = vld [vmem:[#allocation9 + $0x170] sm:$0xff]
          %v2206 = vld [vmem:[#allocation9 + $0x178] sm:$0xff]
          %v2207 = vld [vmem:[#allocation9 + $0x180] sm:$0xff]
          %v2208 = vld [vmem:[#allocation9 + $0x188] sm:$0xff]
          %v2209 = vld [vmem:[#allocation9 + $0x190] sm:$0xff]
          %v2210 = vld [vmem:[#allocation9 + $0x198] sm:$0xff]
          %v2211 = vld [vmem:[#allocation9 + $0x1a0] sm:$0xff]
          %v2212 = vld [vmem:[#allocation9 + $0x1a8] sm:$0xff]
          %v2213 = vld [vmem:[#allocation9 + $0x1b0] sm:$0xff]
          %v2214 = vld [vmem:[#allocation9 + $0x1b8] sm:$0xff]
          %v2215 = vld [vmem:[#allocation9 + $0x1c0] sm:$0xff]
          %v2216 = vld [vmem:[#allocation9 + $0x1c8] sm:$0xff]
          %v2217 = vld [vmem:[#allocation9 + $0x1d0] sm:$0xff]
          %v2218 = vld [vmem:[#allocation9 + $0x1d8] sm:$0xff]
          %v2219 = vld [vmem:[#allocation9 + $0x1e0] sm:$0xff]
          %v2220 = vld [vmem:[#allocation9 + $0x1e8] sm:$0xff]
          %v2221 = vld [vmem:[#allocation9 + $0x1f0] sm:$0xff]
          %v2222 = vld [vmem:[#allocation9 + $0x1f8] sm:$0xff]
          %v2223 = vmul.f32 %v2159, 0.33333334
          %v2224 = vmul.f32 %v2160, 0.33333334
          %v2225 = vmul.f32 %v2161, 0.33333334
          %v2226 = vmul.f32 %v2162, 0.33333334
          %v2227 = vmul.f32 %v2163, 0.33333334
          %v2228 = vmul.f32 %v2164, 0.33333334
          %v2229 = vmul.f32 %v2165, 0.33333334
          %v2230 = vmul.f32 %v2166, 0.33333334
          %v2231 = vmul.f32 %v2167, 0.33333334
          %v2232 = vmul.f32 %v2168, 0.33333334
          %v2233 = vmul.f32 %v2169, 0.33333334
          %v2234 = vmul.f32 %v2170, 0.33333334
          %v2235 = vmul.f32 %v2171, 0.33333334
          %v2236 = vmul.f32 %v2172, 0.33333334
          %v2237 = vmul.f32 %v2173, 0.33333334
          %v2238 = vmul.f32 %v2174, 0.33333334
          %v2239 = vmul.f32 %v2175, 0.33333334
          %v2240 = vmul.f32 %v2176, 0.33333334
          %v2241 = vmul.f32 %v2177, 0.33333334
          %v2242 = vmul.f32 %v2178, 0.33333334
          %v2243 = vmul.f32 %v2179, 0.33333334
          %v2244 = vmul.f32 %v2180, 0.33333334
          %v2245 = vmul.f32 %v2181, 0.33333334
          %v2246 = vmul.f32 %v2182, 0.33333334
          %v2247 = vmul.f32 %v2183, 0.33333334
          %v2248 = vmul.f32 %v2184, 0.33333334
          %v2249 = vmul.f32 %v2185, 0.33333334
          %v2250 = vmul.f32 %v2186, 0.33333334
          %v2251 = vmul.f32 %v2187, 0.33333334
          %v2252 = vmul.f32 %v2188, 0.33333334
          %v2253 = vmul.f32 %v2189, 0.33333334
          %v2254 = vmul.f32 %v2190, 0.33333334
          %v2255 = vmul.f32 %v2191, 0.33333334
          %v2256 = vmul.f32 %v2192, 0.33333334
          %v2257 = vmul.f32 %v2193, 0.33333334
          %v2258 = vmul.f32 %v2194, 0.33333334
          %v2259 = vmul.f32 %v2195, 0.33333334
          %v2260 = vmul.f32 %v2196, 0.33333334
          %v2261 = vmul.f32 %v2197, 0.33333334
          %v2262 = vmul.f32 %v2198, 0.33333334
          %v2263 = vmul.f32 %v2199, 0.33333334
          %v2264 = vmul.f32 %v2200, 0.33333334
          %v2265 = vmul.f32 %v2201, 0.33333334
          %v2266 = vmul.f32 %v2202, 0.33333334
          %v2267 = vmul.f32 %v2203, 0.33333334
          %v2268 = vmul.f32 %v2204, 0.33333334
          %v2269 = vmul.f32 %v2205, 0.33333334
          %v2270 = vmul.f32 %v2206, 0.33333334
          %v2271 = vmul.f32 %v2207, 0.33333334
          %v2272 = vmul.f32 %v2208, 0.33333334
          %v2273 = vmul.f32 %v2209, 0.33333334
          %v2274 = vmul.f32 %v2210, 0.33333334
          %v2275 = vmul.f32 %v2211, 0.33333334
          %v2276 = vmul.f32 %v2212, 0.33333334
          %v2277 = vmul.f32 %v2213, 0.33333334
          %v2278 = vmul.f32 %v2214, 0.33333334
          %v2279 = vmul.f32 %v2215, 0.33333334
          %v2280 = vmul.f32 %v2216, 0.33333334
          %v2281 = vmul.f32 %v2217, 0.33333334
          %v2282 = vmul.f32 %v2218, 0.33333334
          %v2283 = vmul.f32 %v2219, 0.33333334
          %v2284 = vmul.f32 %v2220, 0.33333334
          %v2285 = vmul.f32 %v2221, 0.33333334
          %v2286 = vmul.f32 %v2222, 0.33333334
          %v2287 = vxor.u32 %v2223, 2147483648
          %v2288 = vxor.u32 %v2224, 2147483648
          %v2289 = vxor.u32 %v2225, 2147483648
          %v2290 = vxor.u32 %v2226, 2147483648
          %v2291 = vxor.u32 %v2227, 2147483648
          %v2292 = vxor.u32 %v2228, 2147483648
          %v2293 = vxor.u32 %v2229, 2147483648
          %v2294 = vxor.u32 %v2230, 2147483648
          %v2295 = vxor.u32 %v2231, 2147483648
          %v2296 = vxor.u32 %v2232, 2147483648
          %v2297 = vxor.u32 %v2233, 2147483648
          %v2298 = vxor.u32 %v2234, 2147483648
          %v2299 = vxor.u32 %v2235, 2147483648
          %v2300 = vxor.u32 %v2236, 2147483648
          %v2301 = vxor.u32 %v2237, 2147483648
          %v2302 = vxor.u32 %v2238, 2147483648
          %v2303 = vxor.u32 %v2239, 2147483648
          %v2304 = vxor.u32 %v2240, 2147483648
          %v2305 = vxor.u32 %v2241, 2147483648
          %v2306 = vxor.u32 %v2242, 2147483648
          %v2307 = vxor.u32 %v2243, 2147483648
          %v2308 = vxor.u32 %v2244, 2147483648
          %v2309 = vxor.u32 %v2245, 2147483648
          %v2310 = vxor.u32 %v2246, 2147483648
          %v2311 = vxor.u32 %v2247, 2147483648
          %v2312 = vxor.u32 %v2248, 2147483648
          %v2313 = vxor.u32 %v2249, 2147483648
          %v2314 = vxor.u32 %v2250, 2147483648
          %v2315 = vxor.u32 %v2251, 2147483648
          %v2316 = vxor.u32 %v2252, 2147483648
          %v2317 = vxor.u32 %v2253, 2147483648
          %v2318 = vxor.u32 %v2254, 2147483648
          %v2319 = vxor.u32 %v2255, 2147483648
          %v2320 = vxor.u32 %v2256, 2147483648
          %v2321 = vxor.u32 %v2257, 2147483648
          %v2322 = vxor.u32 %v2258, 2147483648
          %v2323 = vxor.u32 %v2259, 2147483648
          %v2324 = vxor.u32 %v2260, 2147483648
          %v2325 = vxor.u32 %v2261, 2147483648
          %v2326 = vxor.u32 %v2262, 2147483648
          %v2327 = vxor.u32 %v2263, 2147483648
          %v2328 = vxor.u32 %v2264, 2147483648
          %v2329 = vxor.u32 %v2265, 2147483648
          %v2330 = vxor.u32 %v2266, 2147483648
          %v2331 = vxor.u32 %v2267, 2147483648
          %v2332 = vxor.u32 %v2268, 2147483648
          %v2333 = vxor.u32 %v2269, 2147483648
          %v2334 = vxor.u32 %v2270, 2147483648
          %v2335 = vxor.u32 %v2271, 2147483648
          %v2336 = vxor.u32 %v2272, 2147483648
          %v2337 = vxor.u32 %v2273, 2147483648
          %v2338 = vxor.u32 %v2274, 2147483648
          %v2339 = vxor.u32 %v2275, 2147483648
          %v2340 = vxor.u32 %v2276, 2147483648
          %v2341 = vxor.u32 %v2277, 2147483648
          %v2342 = vxor.u32 %v2278, 2147483648
          %v2343 = vxor.u32 %v2279, 2147483648
          %v2344 = vxor.u32 %v2280, 2147483648
          %v2345 = vxor.u32 %v2281, 2147483648
          %v2346 = vxor.u32 %v2282, 2147483648
          %v2347 = vxor.u32 %v2283, 2147483648
          %v2348 = vxor.u32 %v2284, 2147483648
          %v2349 = vxor.u32 %v2285, 2147483648
          %v2350 = vxor.u32 %v2286, 2147483648
          %v2351 = vmul.f32 %v2287, 1.442695
          %v2352 = vpow.pop %v2351
          %v2353 = vmul.f32 %v2288, 1.442695
          %v2354 = vpow.pop %v2353
          %v2355 = vmul.f32 %v2289, 1.442695
          %v2356 = vpow.pop %v2355
          %v2357 = vmul.f32 %v2290, 1.442695
          %v2358 = vpow.pop %v2357
          %v2359 = vmul.f32 %v2291, 1.442695
          %v2360 = vpow.pop %v2359
          %v2361 = vmul.f32 %v2292, 1.442695
          %v2362 = vpow.pop %v2361
          %v2363 = vmul.f32 %v2293, 1.442695
          %v2364 = vpow.pop %v2363
          %v2365 = vmul.f32 %v2294, 1.442695
          %v2366 = vpow.pop %v2365
          %v2367 = vmul.f32 %v2295, 1.442695
          %v2368 = vpow.pop %v2367
          %v2369 = vmul.f32 %v2296, 1.442695
          %v2370 = vpow.pop %v2369
          %v2371 = vmul.f32 %v2297, 1.442695
          %v2372 = vpow.pop %v2371
          %v2373 = vmul.f32 %v2298, 1.442695
          %v2374 = vpow.pop %v2373
          %v2375 = vmul.f32 %v2299, 1.442695
          %v2376 = vpow.pop %v2375
          %v2377 = vmul.f32 %v2300, 1.442695
          %v2378 = vpow.pop %v2377
          %v2379 = vmul.f32 %v2301, 1.442695
          %v2380 = vpow.pop %v2379
          %v2381 = vmul.f32 %v2302, 1.442695
          %v2382 = vpow.pop %v2381
          %v2383 = vmul.f32 %v2303, 1.442695
          %v2384 = vpow.pop %v2383
          %v2385 = vmul.f32 %v2304, 1.442695
          %v2386 = vpow.pop %v2385
          %v2387 = vmul.f32 %v2305, 1.442695
          %v2388 = vpow.pop %v2387
          %v2389 = vmul.f32 %v2306, 1.442695
          %v2390 = vpow.pop %v2389
          %v2391 = vmul.f32 %v2307, 1.442695
          %v2392 = vpow.pop %v2391
          %v2393 = vmul.f32 %v2308, 1.442695
          %v2394 = vpow.pop %v2393
          %v2395 = vmul.f32 %v2309, 1.442695
          %v2396 = vpow.pop %v2395
          %v2397 = vmul.f32 %v2310, 1.442695
          %v2398 = vpow.pop %v2397
          %v2399 = vmul.f32 %v2311, 1.442695
          %v2400 = vpow.pop %v2399
          %v2401 = vmul.f32 %v2312, 1.442695
          %v2402 = vpow.pop %v2401
          %v2403 = vmul.f32 %v2313, 1.442695
          %v2404 = vpow.pop %v2403
          %v2405 = vmul.f32 %v2314, 1.442695
          %v2406 = vpow.pop %v2405
          %v2407 = vmul.f32 %v2315, 1.442695
          %v2408 = vpow.pop %v2407
          %v2409 = vmul.f32 %v2316, 1.442695
          %v2410 = vpow.pop %v2409
          %v2411 = vmul.f32 %v2317, 1.442695
          %v2412 = vpow.pop %v2411
          %v2413 = vmul.f32 %v2318, 1.442695
          %v2414 = vpow.pop %v2413
          %v2415 = vmul.f32 %v2319, 1.442695
          %v2416 = vpow.pop %v2415
          %v2417 = vmul.f32 %v2320, 1.442695
          %v2418 = vpow.pop %v2417
          %v2419 = vmul.f32 %v2321, 1.442695
          %v2420 = vpow.pop %v2419
          %v2421 = vmul.f32 %v2322, 1.442695
          %v2422 = vpow.pop %v2421
          %v2423 = vmul.f32 %v2323, 1.442695
          %v2424 = vpow.pop %v2423
          %v2425 = vmul.f32 %v2324, 1.442695
          %v2426 = vpow.pop %v2425
          %v2427 = vmul.f32 %v2325, 1.442695
          %v2428 = vpow.pop %v2427
          %v2429 = vmul.f32 %v2326, 1.442695
          %v2430 = vpow.pop %v2429
          %v2431 = vmul.f32 %v2327, 1.442695
          %v2432 = vpow.pop %v2431
          %v2433 = vmul.f32 %v2328, 1.442695
          %v2434 = vpow.pop %v2433
          %v2435 = vmul.f32 %v2329, 1.442695
          %v2436 = vpow.pop %v2435
          %v2437 = vmul.f32 %v2330, 1.442695
          %v2438 = vpow.pop %v2437
          %v2439 = vmul.f32 %v2331, 1.442695
          %v2440 = vpow.pop %v2439
          %v2441 = vmul.f32 %v2332, 1.442695
          %v2442 = vpow.pop %v2441
          %v2443 = vmul.f32 %v2333, 1.442695
          %v2444 = vpow.pop %v2443
          %v2445 = vmul.f32 %v2334, 1.442695
          %v2446 = vpow.pop %v2445
          %v2447 = vmul.f32 %v2335, 1.442695
          %v2448 = vpow.pop %v2447
          %v2449 = vmul.f32 %v2336, 1.442695
          %v2450 = vpow.pop %v2449
          %v2451 = vmul.f32 %v2337, 1.442695
          %v2452 = vpow.pop %v2451
          %v2453 = vmul.f32 %v2338, 1.442695
          %v2454 = vpow.pop %v2453
          %v2455 = vmul.f32 %v2339, 1.442695
          %v2456 = vpow.pop %v2455
          %v2457 = vmul.f32 %v2340, 1.442695
          %v2458 = vpow.pop %v2457
          %v2459 = vmul.f32 %v2341, 1.442695
          %v2460 = vpow.pop %v2459
          %v2461 = vmul.f32 %v2342, 1.442695
          %v2462 = vpow.pop %v2461
          %v2463 = vmul.f32 %v2343, 1.442695
          %v2464 = vpow.pop %v2463
          %v2465 = vmul.f32 %v2344, 1.442695
          %v2466 = vpow.pop %v2465
          %v2467 = vmul.f32 %v2345, 1.442695
          %v2468 = vpow.pop %v2467
          %v2469 = vmul.f32 %v2346, 1.442695
          %v2470 = vpow.pop %v2469
          %v2471 = vmul.f32 %v2347, 1.442695
          %v2472 = vpow.pop %v2471
          %v2473 = vmul.f32 %v2348, 1.442695
          %v2474 = vpow.pop %v2473
          %v2475 = vmul.f32 %v2349, 1.442695
          %v2476 = vpow.pop %v2475
          %v2477 = vmul.f32 %v2350, 1.442695
          %v2478 = vpow.pop %v2477
          %v2479 = vadd.f32 %v2352, 1.0
          %v2480 = vadd.f32 %v2354, 1.0
          %v2481 = vadd.f32 %v2356, 1.0
          %v2482 = vadd.f32 %v2358, 1.0
          %v2483 = vadd.f32 %v2360, 1.0
          %v2484 = vadd.f32 %v2362, 1.0
          %v2485 = vadd.f32 %v2364, 1.0
          %v2486 = vadd.f32 %v2366, 1.0
          %v2487 = vadd.f32 %v2368, 1.0
          %v2488 = vadd.f32 %v2370, 1.0
          %v2489 = vadd.f32 %v2372, 1.0
          %v2490 = vadd.f32 %v2374, 1.0
          %v2491 = vadd.f32 %v2376, 1.0
          %v2492 = vadd.f32 %v2378, 1.0
          %v2493 = vadd.f32 %v2380, 1.0
          %v2494 = vadd.f32 %v2382, 1.0
          %v2495 = vadd.f32 %v2384, 1.0
          %v2496 = vadd.f32 %v2386, 1.0
          %v2497 = vadd.f32 %v2388, 1.0
          %v2498 = vadd.f32 %v2390, 1.0
          %v2499 = vadd.f32 %v2392, 1.0
          %v2500 = vadd.f32 %v2394, 1.0
          %v2501 = vadd.f32 %v2396, 1.0
          %v2502 = vadd.f32 %v2398, 1.0
          %v2503 = vadd.f32 %v2400, 1.0
          %v2504 = vadd.f32 %v2402, 1.0
          %v2505 = vadd.f32 %v2404, 1.0
          %v2506 = vadd.f32 %v2406, 1.0
          %v2507 = vadd.f32 %v2408, 1.0
          %v2508 = vadd.f32 %v2410, 1.0
          %v2509 = vadd.f32 %v2412, 1.0
          %v2510 = vadd.f32 %v2414, 1.0
          %v2511 = vadd.f32 %v2416, 1.0
          %v2512 = vadd.f32 %v2418, 1.0
          %v2513 = vadd.f32 %v2420, 1.0
          %v2514 = vadd.f32 %v2422, 1.0
          %v2515 = vadd.f32 %v2424, 1.0
          %v2516 = vadd.f32 %v2426, 1.0
          %v2517 = vadd.f32 %v2428, 1.0
          %v2518 = vadd.f32 %v2430, 1.0
          %v2519 = vadd.f32 %v2432, 1.0
          %v2520 = vadd.f32 %v2434, 1.0
          %v2521 = vadd.f32 %v2436, 1.0
          %v2522 = vadd.f32 %v2438, 1.0
          %v2523 = vadd.f32 %v2440, 1.0
          %v2524 = vadd.f32 %v2442, 1.0
          %v2525 = vadd.f32 %v2444, 1.0
          %v2526 = vadd.f32 %v2446, 1.0
          %v2527 = vadd.f32 %v2448, 1.0
          %v2528 = vadd.f32 %v2450, 1.0
          %v2529 = vadd.f32 %v2452, 1.0
          %v2530 = vadd.f32 %v2454, 1.0
          %v2531 = vadd.f32 %v2456, 1.0
          %v2532 = vadd.f32 %v2458, 1.0
          %v2533 = vadd.f32 %v2460, 1.0
          %v2534 = vadd.f32 %v2462, 1.0
          %v2535 = vadd.f32 %v2464, 1.0
          %v2536 = vadd.f32 %v2466, 1.0
          %v2537 = vadd.f32 %v2468, 1.0
          %v2538 = vadd.f32 %v2470, 1.0
          %v2539 = vadd.f32 %v2472, 1.0
          %v2540 = vadd.f32 %v2474, 1.0
          %v2541 = vadd.f32 %v2476, 1.0
          %v2542 = vadd.f32 %v2478, 1.0
          %v2543 = vrcp.pop %v2479
          %v2544 = vmul.f32 1.0, %v2543
          %v2545 = vrcp.pop %v2480
          %v2546 = vmul.f32 1.0, %v2545
          %v2547 = vrcp.pop %v2481
          %v2548 = vmul.f32 1.0, %v2547
          %v2549 = vrcp.pop %v2482
          %v2550 = vmul.f32 1.0, %v2549
          %v2551 = vrcp.pop %v2483
          %v2552 = vmul.f32 1.0, %v2551
          %v2553 = vrcp.pop %v2484
          %v2554 = vmul.f32 1.0, %v2553
          %v2555 = vrcp.pop %v2485
          %v2556 = vmul.f32 1.0, %v2555
          %v2557 = vrcp.pop %v2486
          %v2558 = vmul.f32 1.0, %v2557
          %v2559 = vrcp.pop %v2487
          %v2560 = vmul.f32 1.0, %v2559
          %v2561 = vrcp.pop %v2488
          %v2562 = vmul.f32 1.0, %v2561
          %v2563 = vrcp.pop %v2489
          %v2564 = vmul.f32 1.0, %v2563
          %v2565 = vrcp.pop %v2490
          %v2566 = vmul.f32 1.0, %v2565
          %v2567 = vrcp.pop %v2491
          %v2568 = vmul.f32 1.0, %v2567
          %v2569 = vrcp.pop %v2492
          %v2570 = vmul.f32 1.0, %v2569
          %v2571 = vrcp.pop %v2493
          %v2572 = vmul.f32 1.0, %v2571
          %v2573 = vrcp.pop %v2494
          %v2574 = vmul.f32 1.0, %v2573
          %v2575 = vrcp.pop %v2495
          %v2576 = vmul.f32 1.0, %v2575
          %v2577 = vrcp.pop %v2496
          %v2578 = vmul.f32 1.0, %v2577
          %v2579 = vrcp.pop %v2497
          %v2580 = vmul.f32 1.0, %v2579
          %v2581 = vrcp.pop %v2498
          %v2582 = vmul.f32 1.0, %v2581
          %v2583 = vrcp.pop %v2499
          %v2584 = vmul.f32 1.0, %v2583
          %v2585 = vrcp.pop %v2500
          %v2586 = vmul.f32 1.0, %v2585
          %v2587 = vrcp.pop %v2501
          %v2588 = vmul.f32 1.0, %v2587
          %v2589 = vrcp.pop %v2502
          %v2590 = vmul.f32 1.0, %v2589
          %v2591 = vrcp.pop %v2503
          %v2592 = vmul.f32 1.0, %v2591
          %v2593 = vrcp.pop %v2504
          %v2594 = vmul.f32 1.0, %v2593
          %v2595 = vrcp.pop %v2505
          %v2596 = vmul.f32 1.0, %v2595
          %v2597 = vrcp.pop %v2506
          %v2598 = vmul.f32 1.0, %v2597
          %v2599 = vrcp.pop %v2507
          %v2600 = vmul.f32 1.0, %v2599
          %v2601 = vrcp.pop %v2508
          %v2602 = vmul.f32 1.0, %v2601
          %v2603 = vrcp.pop %v2509
          %v2604 = vmul.f32 1.0, %v2603
          %v2605 = vrcp.pop %v2510
          %v2606 = vmul.f32 1.0, %v2605
          %v2607 = vrcp.pop %v2511
          %v2608 = vmul.f32 1.0, %v2607
          %v2609 = vrcp.pop %v2512
          %v2610 = vmul.f32 1.0, %v2609
          %v2611 = vrcp.pop %v2513
          %v2612 = vmul.f32 1.0, %v2611
          %v2613 = vrcp.pop %v2514
          %v2614 = vmul.f32 1.0, %v2613
          %v2615 = vrcp.pop %v2515
          %v2616 = vmul.f32 1.0, %v2615
          %v2617 = vrcp.pop %v2516
          %v2618 = vmul.f32 1.0, %v2617
          %v2619 = vrcp.pop %v2517
          %v2620 = vmul.f32 1.0, %v2619
          %v2621 = vrcp.pop %v2518
          %v2622 = vmul.f32 1.0, %v2621
          %v2623 = vrcp.pop %v2519
          %v2624 = vmul.f32 1.0, %v2623
          %v2625 = vrcp.pop %v2520
          %v2626 = vmul.f32 1.0, %v2625
          %v2627 = vrcp.pop %v2521
          %v2628 = vmul.f32 1.0, %v2627
          %v2629 = vrcp.pop %v2522
          %v2630 = vmul.f32 1.0, %v2629
          %v2631 = vrcp.pop %v2523
          %v2632 = vmul.f32 1.0, %v2631
          %v2633 = vrcp.pop %v2524
          %v2634 = vmul.f32 1.0, %v2633
          %v2635 = vrcp.pop %v2525
          %v2636 = vmul.f32 1.0, %v2635
          %v2637 = vrcp.pop %v2526
          %v2638 = vmul.f32 1.0, %v2637
          %v2639 = vrcp.pop %v2527
          %v2640 = vmul.f32 1.0, %v2639
          %v2641 = vrcp.pop %v2528
          %v2642 = vmul.f32 1.0, %v2641
          %v2643 = vrcp.pop %v2529
          %v2644 = vmul.f32 1.0, %v2643
          %v2645 = vrcp.pop %v2530
          %v2646 = vmul.f32 1.0, %v2645
          %v2647 = vrcp.pop %v2531
          %v2648 = vmul.f32 1.0, %v2647
          %v2649 = vrcp.pop %v2532
          %v2650 = vmul.f32 1.0, %v2649
          %v2651 = vrcp.pop %v2533
          %v2652 = vmul.f32 1.0, %v2651
          %v2653 = vrcp.pop %v2534
          %v2654 = vmul.f32 1.0, %v2653
          %v2655 = vrcp.pop %v2535
          %v2656 = vmul.f32 1.0, %v2655
          %v2657 = vrcp.pop %v2536
          %v2658 = vmul.f32 1.0, %v2657
          %v2659 = vrcp.pop %v2537
          %v2660 = vmul.f32 1.0, %v2659
          %v2661 = vrcp.pop %v2538
          %v2662 = vmul.f32 1.0, %v2661
          %v2663 = vrcp.pop %v2539
          %v2664 = vmul.f32 1.0, %v2663
          %v2665 = vrcp.pop %v2540
          %v2666 = vmul.f32 1.0, %v2665
          %v2667 = vrcp.pop %v2541
          %v2668 = vmul.f32 1.0, %v2667
          %v2669 = vrcp.pop %v2542
          %v2670 = vmul.f32 1.0, %v2669
          %2671 = vst.msk [vmem:[#allocation9] sm:$0xff] %vm1125, %v2544
          %2672 = vst.msk [vmem:[#allocation9 + $0x8] sm:$0xff] %vm1125, %v2546
          %2673 = vst.msk [vmem:[#allocation9 + $0x10] sm:$0xff] %vm1125, %v2548
          %2674 = vst.msk [vmem:[#allocation9 + $0x18] sm:$0xff] %vm1125, %v2550
          %2675 = vst.msk [vmem:[#allocation9 + $0x20] sm:$0xff] %vm1125, %v2552
          %2676 = vst.msk [vmem:[#allocation9 + $0x28] sm:$0xff] %vm1125, %v2554
          %2677 = vst.msk [vmem:[#allocation9 + $0x30] sm:$0xff] %vm1125, %v2556
          %2678 = vst.msk [vmem:[#allocation9 + $0x38] sm:$0xff] %vm1125, %v2558
          %2679 = vst.msk [vmem:[#allocation9 + $0x40] sm:$0xff] %vm1125, %v2560
          %2680 = vst.msk [vmem:[#allocation9 + $0x48] sm:$0xff] %vm1125, %v2562
          %2681 = vst.msk [vmem:[#allocation9 + $0x50] sm:$0xff] %vm1125, %v2564
          %2682 = vst.msk [vmem:[#allocation9 + $0x58] sm:$0xff] %vm1125, %v2566
          %2683 = vst.msk [vmem:[#allocation9 + $0x60] sm:$0xff] %vm1125, %v2568
          %2684 = vst.msk [vmem:[#allocation9 + $0x68] sm:$0xff] %vm1125, %v2570
          %2685 = vst.msk [vmem:[#allocation9 + $0x70] sm:$0xff] %vm1125, %v2572
          %2686 = vst.msk [vmem:[#allocation9 + $0x78] sm:$0xff] %vm1125, %v2574
          %2687 = vst.msk [vmem:[#allocation9 + $0x80] sm:$0xff] %vm1125, %v2576
          %2688 = vst.msk [vmem:[#allocation9 + $0x88] sm:$0xff] %vm1125, %v2578
          %2689 = vst.msk [vmem:[#allocation9 + $0x90] sm:$0xff] %vm1125, %v2580
          %2690 = vst.msk [vmem:[#allocation9 + $0x98] sm:$0xff] %vm1125, %v2582
          %2691 = vst.msk [vmem:[#allocation9 + $0xa0] sm:$0xff] %vm1125, %v2584
          %2692 = vst.msk [vmem:[#allocation9 + $0xa8] sm:$0xff] %vm1125, %v2586
          %2693 = vst.msk [vmem:[#allocation9 + $0xb0] sm:$0xff] %vm1125, %v2588
          %2694 = vst.msk [vmem:[#allocation9 + $0xb8] sm:$0xff] %vm1125, %v2590
          %2695 = vst.msk [vmem:[#allocation9 + $0xc0] sm:$0xff] %vm1125, %v2592
          %2696 = vst.msk [vmem:[#allocation9 + $0xc8] sm:$0xff] %vm1125, %v2594
          %2697 = vst.msk [vmem:[#allocation9 + $0xd0] sm:$0xff] %vm1125, %v2596
          %2698 = vst.msk [vmem:[#allocation9 + $0xd8] sm:$0xff] %vm1125, %v2598
          %2699 = vst.msk [vmem:[#allocation9 + $0xe0] sm:$0xff] %vm1125, %v2600
          %2700 = vst.msk [vmem:[#allocation9 + $0xe8] sm:$0xff] %vm1125, %v2602
          %2701 = vst.msk [vmem:[#allocation9 + $0xf0] sm:$0xff] %vm1125, %v2604
          %2702 = vst.msk [vmem:[#allocation9 + $0xf8] sm:$0xff] %vm1125, %v2606
          %2703 = vst.msk [vmem:[#allocation9 + $0x100] sm:$0xff] %vm1125, %v2608
          %2704 = vst.msk [vmem:[#allocation9 + $0x108] sm:$0xff] %vm1125, %v2610
          %2705 = vst.msk [vmem:[#allocation9 + $0x110] sm:$0xff] %vm1125, %v2612
          %2706 = vst.msk [vmem:[#allocation9 + $0x118] sm:$0xff] %vm1125, %v2614
          %2707 = vst.msk [vmem:[#allocation9 + $0x120] sm:$0xff] %vm1125, %v2616
          %2708 = vst.msk [vmem:[#allocation9 + $0x128] sm:$0xff] %vm1125, %v2618
          %2709 = vst.msk [vmem:[#allocation9 + $0x130] sm:$0xff] %vm1125, %v2620
          %2710 = vst.msk [vmem:[#allocation9 + $0x138] sm:$0xff] %vm1125, %v2622
          %2711 = vst.msk [vmem:[#allocation9 + $0x140] sm:$0xff] %vm1125, %v2624
          %2712 = vst.msk [vmem:[#allocation9 + $0x148] sm:$0xff] %vm1125, %v2626
          %2713 = vst.msk [vmem:[#allocation9 + $0x150] sm:$0xff] %vm1125, %v2628
          %2714 = vst.msk [vmem:[#allocation9 + $0x158] sm:$0xff] %vm1125, %v2630
          %2715 = vst.msk [vmem:[#allocation9 + $0x160] sm:$0xff] %vm1125, %v2632
          %2716 = vst.msk [vmem:[#allocation9 + $0x168] sm:$0xff] %vm1125, %v2634
          %2717 = vst.msk [vmem:[#allocation9 + $0x170] sm:$0xff] %vm1125, %v2636
          %2718 = vst.msk [vmem:[#allocation9 + $0x178] sm:$0xff] %vm1125, %v2638
          %2719 = vst.msk [vmem:[#allocation9 + $0x180] sm:$0xff] %vm1125, %v2640
          %2720 = vst.msk [vmem:[#allocation9 + $0x188] sm:$0xff] %vm1125, %v2642
          %2721 = vst.msk [vmem:[#allocation9 + $0x190] sm:$0xff] %vm1125, %v2644
          %2722 = vst.msk [vmem:[#allocation9 + $0x198] sm:$0xff] %vm1125, %v2646
          %2723 = vst.msk [vmem:[#allocation9 + $0x1a0] sm:$0xff] %vm1125, %v2648
          %2724 = vst.msk [vmem:[#allocation9 + $0x1a8] sm:$0xff] %vm1125, %v2650
          %2725 = vst.msk [vmem:[#allocation9 + $0x1b0] sm:$0xff] %vm1125, %v2652
          %2726 = vst.msk [vmem:[#allocation9 + $0x1b8] sm:$0xff] %vm1125, %v2654
          %2727 = vst.msk [vmem:[#allocation9 + $0x1c0] sm:$0xff] %vm1125, %v2656
          %2728 = vst.msk [vmem:[#allocation9 + $0x1c8] sm:$0xff] %vm1125, %v2658
          %2729 = vst.msk [vmem:[#allocation9 + $0x1d0] sm:$0xff] %vm1125, %v2660
          %2730 = vst.msk [vmem:[#allocation9 + $0x1d8] sm:$0xff] %vm1125, %v2662
          %2731 = vst.msk [vmem:[#allocation9 + $0x1e0] sm:$0xff] %vm1125, %v2664
          %2732 = vst.msk [vmem:[#allocation9 + $0x1e8] sm:$0xff] %vm1125, %v2666
          %2733 = vst.msk [vmem:[#allocation9 + $0x1f0] sm:$0xff] %vm1125, %v2668
          %2734 = vst.msk [vmem:[#allocation9 + $0x1f8] sm:$0xff] %vm1125, %v2670
        $region52: #{gcn_layer_forward.3} parent=27 // pred_fallthru
          _
        %s2735 = sand.u32 %s108, 1
        %s2736 = scalar_lea.sflag [#allocation5], %s2735
        %s2737 = sand.u32 %s108, 1
        %s2738 = smul.addr %s2737, 256
        %s2739 = scalar_lea.vmem [#allocation8], %s2738
        // Predicated region
        $region53: #{gcn_layer_forward.3} parent=27 // pred_check
          %p2740 = pneg %p118
        $region54: #{gcn_layer_forward.3} parent=27 // pred_check_branch
          %2742 = sbr.rel (%p2740) target = $region56
        $region55: #{gcn_layer_forward.3} parent=27 // pred_region
          %s2743 = smul.u32 64, %s28
          %s2745 = ssub.s32 4096, 4096
          %2746 = vsyncadd %s2736, %s2745
          %s2747 = smul.addr %s29, 64
          %s2748 = sadd.s32 %s2743, %s2747
          %s2749 = smul.addr %s2748, 64
          %s2750 = scalar_lea.hbm %s2, %s2749
          %s2751 = sshll.u32 %s2739, 4
          %s2752 = int_to_ptr.vmem [resolvable:$true] %s2751
          %2757 = dma.vmem_to_hbm [thread:$0]  %s2752, 4096, %s2750, %s2736, 64, 64, 4
        $region56: #{gcn_layer_forward.3} parent=27 // pred_fallthru
          _
        // Predicated region
        $region57: #{gcn_layer_forward.3} parent=27 // pred_check
          %p2758 = pneg %p144
        $region58: #{gcn_layer_forward.3} parent=27 // pred_check_branch
          %2760 = sbr.rel (%p2758) target = $region60
        $region59: #{gcn_layer_forward.3} parent=27 // pred_region
          %s2761 = smul.u32 64, %s28
          %s2763 = ssub.s32 8192, 8192
          %2764 = vsyncadd [#allocation10], %s2763
          %s2765 = smul.addr %s2761, 128
          %s2766 = scalar_lea.hbm %s3, %s2765
          %s2767 = sshll.u32 [#allocation9], 4
          %s2768 = int_to_ptr.vmem [resolvable:$true] %s2767
          %2773 = dma.vmem_to_hbm [thread:$0]  %s2768, 8192, %s2766, [#allocation10], 128, 128, 8
        $region60: #{gcn_layer_forward.3} parent=27 // pred_fallthru
          _
        // Predicated region
        $region61: #{gcn_layer_forward.3} parent=27 // pred_check
          %p2774 = pneg %p144
        $region62: #{gcn_layer_forward.3} parent=27 // pred_check_branch
          %2776 = sbr.rel (%p2774) target = $region64
        $region63: #{gcn_layer_forward.3} parent=27 // pred_region
          %2777 = dma.done [#allocation10], 8192
        $region64: #{gcn_layer_forward.3} parent=27 // pred_fallthru
          _
      $region28: #{gcn_layer_forward.3} parent=5 // pred_fallthru
        _
      %p2778 = scmp.le.s32.totalorder 2, %s18
      // Predicated region
      $region65: #{gcn_layer_forward.3} parent=5 // pred_check
        %p2779 = pneg %p2778
      $region66: #{gcn_layer_forward.3} parent=5 // pred_check_branch
        %2781 = sbr.rel (%p2779) target = $region68
      $region67: #{gcn_layer_forward.3} parent=5 // pred_region
        %s2782 = ssub.s32 %s18, 2
        // Predicated region
        $region69: #{gcn_layer_forward.3} parent=67 // pred_check
          %p2783 = pneg %p124
        $region70: #{gcn_layer_forward.3} parent=67 // pred_check_branch
          %2785 = sbr.rel (%p2783) target = $region72
        $region71: #{gcn_layer_forward.3} parent=67 // pred_region
          %s2786 = sand.u32 %s109, 1
          %s2787 = scalar_lea.sflag [#allocation5], %s2786
          %s2788 = sand.u32 %s109, 1
          %s2789 = smul.addr %s2788, 256
          %s2790 = scalar_lea.vmem [#allocation8], %s2789
          %2791 = dma.done %s2787, 4096
        $region72: #{gcn_layer_forward.3} parent=67 // pred_fallthru
          _
      $region68: #{gcn_layer_forward.3} parent=5 // pred_fallthru
        _
    $region6: #{gcn_layer_forward.3} parent=1 // loop_footer
      %s22 = sadd.s32 1, %s18
    $region7: #{gcn_layer_forward.3} parent=1 // loop_footer_branch
      %17 = sbr.rel target = $region3
    $region8: #{gcn_layer_forward.3} parent=1 // loop_exit
      _
    %2792 = vsyncpa [#allocation4], 1
    %s2793 = scalar_lea.sflag [#allocation4], 1
    %2794 = vsyncpa %s2793, 1
    %2795 = vsyncpa [#allocation7], 1
    %2796 = vsyncpa [#allocation5], 1
    %s2797 = scalar_lea.sflag [#allocation5], 1
    %2798 = vsyncpa %s2797, 1
    %2799 = vsyncpa [#allocation10], 1

</llo_original>
